<compile_context>
chip_gen: v7x
topology: tpu7x:2x2x1
jax: 0.10.0
libtpu: 0.0.40
codegen_flags: <defaults>
</compile_context>

<pallas_src>
import functools

import jax
import jax.numpy as jnp
from jax import lax
from jax.experimental import pallas as pl
from jax.experimental.pallas import tpu as pltpu

C_IN = 256        # fixed by the module definition
C_DEEP = 512
EPS = 1e-5
_DEF_TILE = 1024  # spatial rows per grid step (multiple of 256 -> full MXU M)


# --------------------------------------------------------------------------- #
# helpers
# --------------------------------------------------------------------------- #
def _row_mask(tile_rows, rows_total, t):
    """[tile_rows, 1] bool mask of rows inside the real (unpadded) array."""
    valid = rows_total - t * tile_rows
    row_ids = lax.broadcasted_iota(jnp.int32, (tile_rows, 1), 0)
    return row_ids < valid


def _rows_spec(c, tile):
    return pl.BlockSpec((1, tile, c), lambda b, t: (b, t, 0))


def _full_spec(shape):
    zeros = (0,) * len(shape)
    return pl.BlockSpec(shape, lambda b, t: zeros)


def _per_batch_spec(c):
    return pl.BlockSpec((1, 1, c), lambda b, t: (b, 0, 0))


def _moments(sum_bc, sq_bc, count):
    """Combine per-batch partial sums -> (mu, rsqrt(var+eps)), shape (1, C)."""
    s = jnp.sum(sum_bc[:, 0, :], axis=0, keepdims=True)
    q = jnp.sum(sq_bc[:, 0, :], axis=0, keepdims=True)
    mu = s / count
    var = jnp.maximum(q / count - mu * mu, 0.0)
    return mu, lax.rsqrt(var + EPS)


# --------------------------------------------------------------------------- #
# kernels
# --------------------------------------------------------------------------- #
def _deep_stats_kernel(y_ref, wd_ref, sum_ref, sq_ref, max_ref,
                       *, s_total, tile, ragged):
    """fc_deep conv; accumulate per-batch sum / sumsq / spatial max of raw yd."""
    t = pl.program_id(1)

    @pl.when(t == 0)
    def _():
        sum_ref[...] = jnp.zeros_like(sum_ref)
        sq_ref[...] = jnp.zeros_like(sq_ref)
        max_ref[...] = jnp.full(max_ref.shape, -jnp.inf, max_ref.dtype)

    # bf16 operands, f32 accumulation on the MXU.  [tile, 512]
    yd = jnp.dot(y_ref[0], wd_ref[...], preferred_element_type=jnp.float32)

    if ragged:
        mask = _row_mask(tile, s_total, t)
        yd_s = jnp.where(mask, yd, 0.0)
        yd_q = jnp.where(mask, yd * yd, 0.0)
        yd_m = jnp.where(mask, yd, -jnp.inf)
    else:
        yd_s, yd_q, yd_m = yd, yd * yd, yd

    sum_ref[0] += jnp.sum(yd_s, axis=0, keepdims=True)
    sq_ref[0] += jnp.sum(yd_q, axis=0, keepdims=True)
    max_ref[0] = jnp.maximum(max_ref[0], jnp.max(yd_m, axis=0, keepdims=True))


def _skip_stats_kernel(x_ref, ws_ref, sum_ref, sq_ref, *, s_total, tile, ragged):
    """fc_skip conv; accumulate per-batch sum / sumsq (stats pass only)."""
    t = pl.program_id(1)

    @pl.when(t == 0)
    def _():
        sum_ref[...] = jnp.zeros_like(sum_ref)
        sq_ref[...] = jnp.zeros_like(sq_ref)

    xs = jnp.dot(x_ref[0], ws_ref[...], preferred_element_type=jnp.float32)
    if ragged:
        mask = _row_mask(tile, s_total, t)
        xs_s = jnp.where(mask, xs, 0.0)
        xs_q = jnp.where(mask, xs * xs, 0.0)
    else:
        xs_s, xs_q = xs, xs * xs
    sum_ref[0] += jnp.sum(xs_s, axis=0, keepdims=True)
    sq_ref[0] += jnp.sum(xs_q, axis=0, keepdims=True)


def _adin_cls_kernel(x_ref, ws_ref, wc_ref, mus_ref, invs_ref, g_ref, bta_ref,
                     xc_ref, sum_ref, sq_ref, *, s_total, tile, ragged):
    """fc_skip normalise + AdIN + ReLU + fc_cls conv, plus fc_cls BN stats."""
    t = pl.program_id(1)

    @pl.when(t == 0)
    def _():
        sum_ref[...] = jnp.zeros_like(sum_ref)
        sq_ref[...] = jnp.zeros_like(sq_ref)

    # fc_skip conv + affine-free BN normalise (single fused expression).
    xs = jnp.dot(x_ref[0], ws_ref[...], preferred_element_type=jnp.float32)
    xs = (xs - mus_ref[...]) * invs_ref[...]
    # AdIN + ReLU; gamma already has the +1 folded in by the wrapper.
    xa = jnp.maximum(xs * g_ref[0] + bta_ref[0], 0.0)
    # fc_cls conv (bf16 operands, f32 accumulation).
    xc = jnp.dot(xa.astype(jnp.bfloat16), wc_ref[...],
                 preferred_element_type=jnp.float32)
    xc_ref[0] = xc

    if ragged:
        mask = _row_mask(tile, s_total, t)
        xc_s = jnp.where(mask, xc, 0.0)
        xc_q = jnp.where(mask, xc * xc, 0.0)
    else:
        xc_s, xc_q = xc, xc * xc
    sum_ref[0] += jnp.sum(xc_s, axis=0, keepdims=True)
    sq_ref[0] += jnp.sum(xc_q, axis=0, keepdims=True)


def _finalize_kernel(xc_ref, muc_ref, invc_ref, o_ref):
    """Final BN normalise + ReLU (embarrassingly parallel, lane-dense stores)."""
    xc = xc_ref[0]
    o_ref[0] = jnp.maximum((xc - muc_ref[...]) * invc_ref[...], 0.0).astype(o_ref.dtype)


# --------------------------------------------------------------------------- #
# wrapper
# --------------------------------------------------------------------------- #
def gci_forward(x_nchw, y_nchw, w_deep, w_skip, w_cls, *, tile_rows=_DEF_TILE):
    """x_nchw: [B, 256, Hx, Wx], y_nchw: [B, 256, Hy, Wy] (NCHW, like PyTorch).

    Conv weights are passed as [Cin, Cout] (PyTorch [Cout, Cin, 1, 1] squeezed
    and transposed).  Returns NCHW [B, 256, Hx, Wx] float32.
    """
    B, C, Hx, Wx = x_nchw.shape
    By, Cy, Hy, Wy = y_nchw.shape
    assert C == C_IN and Cy == C_IN and By == B
    Sx, Sy = Hx * Wx, Hy * Wy
    f32 = jnp.float32

    # NCHW -> [B, H*W, C]; the bf16 cast fuses with the transpose so the
    # kernels DMA half the bytes (operands are bf16 for the MXU anyway).
    # TODO(synk): an NHWC-native caller would let us drop these HBM round-trips.
    x = jnp.transpose(x_nchw, (0, 2, 3, 1)).reshape(B, Sx, C).astype(jnp.bfloat16)
    y = jnp.transpose(y_nchw, (0, 2, 3, 1)).reshape(B, Sy, C).astype(jnp.bfloat16)
    wd = w_deep.astype(jnp.bfloat16)   # [256, 512]
    ws = w_skip.astype(jnp.bfloat16)   # [256, 256]
    wc = w_cls.astype(jnp.bfloat16)    # [256, 256]

    ty = Sy if Sy <= tile_rows else tile_rows
    tx = Sx if Sx <= tile_rows else tile_rows
    nty, ntx = pl.cdiv(Sy, ty), pl.cdiv(Sx, tx)

    par_arb = pltpu.CompilerParams(
        dimension_semantics=("parallel", "arbitrary"))

    # ---- pass 1: fc_deep statistics + per-batch pre-BN spatial max ---------
    sum_d, sq_d, max_d = pl.pallas_call(
        functools.partial(_deep_stats_kernel, s_total=Sy, tile=ty,
                          ragged=bool(Sy % ty)),
        grid=(B, nty),
        in_specs=[_rows_spec(C, ty), _full_spec((C, C_DEEP))],
        out_specs=[_per_batch_spec(C_DEEP)] * 3,
        out_shape=[jax.ShapeDtypeStruct((B, 1, C_DEEP), f32)] * 3,
        compiler_params=par_arb,
        cost_estimate=pl.CostEstimate(
            flops=2 * B * Sy * C * C_DEEP, transcendentals=0,
            bytes_accessed=B * Sy * C * 2 + C * C_DEEP * 2),
    )(y, wd)

    mu_d, inv_d = _moments(sum_d, sq_d, float(B * Sy))            # (1, 512)
    # BN + ReLU are monotone, so max(relu(BN(yd))) == relu(BN(max(yd))).
    attrs = jnp.maximum((max_d[:, 0, :] - mu_d) * inv_d, 0.0)     # (B, 512)
    gamma1 = (attrs[:, :C_IN] + 1.0)[:, None, :]                  # (B, 1, 256)
    beta = attrs[:, C_IN:][:, None, :]                            # (B, 1, 256)

    # ---- pass 2: fc_skip statistics -----------------------------------------
    sum_s, sq_s = pl.pallas_call(
        functools.partial(_skip_stats_kernel, s_total=Sx, tile=tx,
                          ragged=bool(Sx % tx)),
        grid=(B, ntx),
        in_specs=[_rows_spec(C, tx), _full_spec((C, C))],
        out_specs=[_per_batch_spec(C)] * 2,
        out_shape=[jax.ShapeDtypeStruct((B, 1, C), f32)] * 2,
        compiler_params=par_arb,
        cost_estimate=pl.CostEstimate(
            flops=2 * B * Sx * C * C, transcendentals=0,
            bytes_accessed=B * Sx * C * 2 + C * C * 2),
    )(x, ws)
    mu_s, inv_s = _moments(sum_s, sq_s, float(B * Sx))            # (1, 256)

    # ---- pass 3: fc_skip normalise + AdIN + ReLU + fc_cls conv + stats ------
    xc, sum_c, sq_c = pl.pallas_call(
        functools.partial(_adin_cls_kernel, s_total=Sx, tile=tx,
                          ragged=bool(Sx % tx)),
        grid=(B, ntx),
        in_specs=[_rows_spec(C, tx), _full_spec((C, C)), _full_spec((C, C)),
                  _full_spec((1, C)), _full_spec((1, C)),
                  _per_batch_spec(C), _per_batch_spec(C)],
        out_specs=[_rows_spec(C, tx), _per_batch_spec(C), _per_batch_spec(C)],
        out_shape=[jax.ShapeDtypeStruct((B, Sx, C), f32),
                   jax.ShapeDtypeStruct((B, 1, C), f32),
                   jax.ShapeDtypeStruct((B, 1, C), f32)],
        compiler_params=par_arb,
        cost_estimate=pl.CostEstimate(
            flops=4 * B * Sx * C * C, transcendentals=0,
            bytes_accessed=B * Sx * C * 6 + 2 * C * C * 2),
    )(x, ws, wc, mu_s, inv_s, gamma1, beta)
    mu_c, inv_c = _moments(sum_c, sq_c, float(B * Sx))            # (1, 256)

    # ---- pass 4: final BN normalise + ReLU (fully parallel) -----------------
    out = pl.pallas_call(
        _finalize_kernel,
        grid=(B, ntx),
        in_specs=[_rows_spec(C, tx), _full_spec((1, C)), _full_spec((1, C))],
        out_specs=_rows_spec(C, tx),
        out_shape=jax.ShapeDtypeStruct((B, Sx, C), f32),
        compiler_params=pltpu.CompilerParams(
            dimension_semantics=("parallel", "parallel")),
        cost_estimate=pl.CostEstimate(
            flops=2 * B * Sx * C, transcendentals=0,
            bytes_accessed=B * Sx * C * 8),
    )(xc, mu_c, inv_c)

    # [B, H*W, C] -> NCHW
    return jnp.transpose(out.reshape(B, Hx, Wx, C), (0, 3, 1, 2))


# --------------------------------------------------------------------------- #
# pure-JAX reference (f32 everywhere) and test
# --------------------------------------------------------------------------- #
def _reference(x_nchw, y_nchw, w_deep, w_skip, w_cls):
    def conv1x1(t, w):  # t: NCHW, w: [Cin, Cout]
        return jnp.einsum('bchw,cd->bdhw', t, w)

    def bn(t):  # training-mode BN, weight=1 / bias=0 (or affine=False)
        mu = jnp.mean(t, axis=(0, 2, 3), keepdims=True)
        var = jnp.mean((t - mu) ** 2, axis=(0, 2, 3), keepdims=True)
        return (t - mu) / jnp.sqrt(var + EPS)

    y = jax.nn.relu(bn(conv1x1(y_nchw, w_deep)))
    attrs = jnp.max(y.reshape(y.shape[0], y.shape[1], -1), axis=-1)  # [B, 512]
    x = bn(conv1x1(x_nchw, w_skip))
    gamma = attrs[:, :C_IN][:, :, None, None]
    beta = attrs[:, C_IN:][:, :, None, None]
    x = jax.nn.relu(x * (gamma + 1.0) + beta)
    return jax.nn.relu(bn(conv1x1(x, w_cls)))


def _kaiming_normal(key, cout, cin):
    # kaiming_normal_ default: fan_in mode, gain=sqrt(2) -> std = sqrt(2/fan_in)
    std = (2.0 / cin) ** 0.5
    return jax.random.normal(key, (cout, cin), dtype=jnp.float32) * std


if __name__ == "__main__":
    key = jax.random.PRNGKey(0)
    kx, ky, kd, ks, kc = jax.random.split(key, 5)

    B, Hx, Wx, Hy, Wy = 2, 8, 8, 4, 4
    x = jax.random.normal(kx, (B, C_IN, Hx, Wx), dtype=jnp.float32)
    y = jax.random.normal(ky, (B, C_IN, Hy, Wy), dtype=jnp.float32)

    # Conv2d weights [Cout, Cin, 1, 1] -> stored as [Cin, Cout] for the kernel.
    w_deep = _kaiming_normal(kd, C_DEEP, C_IN).T   # [256, 512]
    w_skip = _kaiming_normal(ks, C_IN, C_IN).T     # [256, 256]
    w_cls = _kaiming_normal(kc, C_IN, C_IN).T      # [256, 256]

    out = jax.jit(gci_forward)(x, y, w_deep, w_skip, w_cls)
    out = jax.block_until_ready(out)
    assert out.shape == (B, C_IN, Hx, Wx)

    # f32 reference; kernel uses bf16 MXU operands, so tolerances are relaxed.
    ref = _reference(x, y, w_deep, w_skip, w_cls)
    rel = float(jnp.linalg.norm(out - ref) / (jnp.linalg.norm(ref) + 1e-12))
    assert rel < 5e-2, f"relative error too large: {rel}"
    assert bool(jnp.allclose(out, ref, rtol=1e-1, atol=1e-1)), \
        "mismatch vs JAX reference"

    print("KERNEL_OK")
</pallas_src>

<mosaic_0001>
module attributes {stable_mosaic.version = 11 : i64} {
  func.func @_deep_stats_kernel(%arg0: i32, %arg1: i32, %arg2: memref<1x16x256xbf16, #tpu.memory_space<vmem>>, %arg3: memref<256x512xbf16, #tpu.memory_space<vmem>>, %arg4: memref<1x1x512xf32, #tpu.memory_space<vmem>>, %arg5: memref<1x1x512xf32, #tpu.memory_space<vmem>>, %arg6: memref<1x1x512xf32, #tpu.memory_space<vmem>>) attributes {dimension_semantics = [#tpu.dimension_semantics<parallel>, #tpu.dimension_semantics<arbitrary>], iteration_bounds = array<i64: 2, 1>, scalar_prefetch = 0 : i64, scratch_operands = 0 : i64, tpu.core_type = #tpu.core_type<tc>, window_params = [{transform_indices = @transform_0, window_bounds = array<i64: 1, 16, 256>}, {pipeline_mode = #tpu.pipeline_mode<synchronous>, transform_indices = @transform_1, window_bounds = array<i64: 256, 512>}, {transform_indices = @transform_2, window_bounds = array<i64: 1, 1, 512>}, {transform_indices = @transform_3, window_bounds = array<i64: 1, 1, 512>}, {transform_indices = @transform_4, window_bounds = array<i64: 1, 1, 512>}]} {
    %c0_i32 = arith.constant 0 : i32
    %0 = arith.cmpi eq, %arg1, %c0_i32 : i32
    %1 = arith.extui %0 : i1 to i32
    %c0_i32_0 = arith.constant 0 : i32
    %2 = arith.cmpi ne, %1, %c0_i32_0 : i32
    scf.if %2 {
      %cst_26 = arith.constant 0.000000e+00 : f32
      %32 = vector.broadcast %cst_26 : f32 to vector<1x1x512xf32>
      %c0_27 = arith.constant 0 : index
      %c0_28 = arith.constant 0 : index
      %c0_29 = arith.constant 0 : index
      %33 = vector.load %arg4[%c0_27, %c0_28, %c0_29] : memref<1x1x512xf32, #tpu.memory_space<vmem>>, vector<1x1x512xf32>
      tpu.vector_store %arg4[%c0_27, %c0_28, %c0_29], %32 {strides = array<i32>} : memref<1x1x512xf32, #tpu.memory_space<vmem>>, vector<1x1x512xf32>,
      %cst_30 = arith.constant 0.000000e+00 : f32
      %34 = vector.broadcast %cst_30 : f32 to vector<1x1x512xf32>
      %c0_31 = arith.constant 0 : index
      %c0_32 = arith.constant 0 : index
      %c0_33 = arith.constant 0 : index
      %35 = vector.load %arg5[%c0_31, %c0_32, %c0_33] : memref<1x1x512xf32, #tpu.memory_space<vmem>>, vector<1x1x512xf32>
      tpu.vector_store %arg5[%c0_31, %c0_32, %c0_33], %34 {strides = array<i32>} : memref<1x1x512xf32, #tpu.memory_space<vmem>>, vector<1x1x512xf32>,
      %cst_34 = arith.constant 0xFF800000 : f32
      %36 = vector.broadcast %cst_34 : f32 to vector<1x1x512xf32>
      %c0_35 = arith.constant 0 : index
      %c0_36 = arith.constant 0 : index
      %c0_37 = arith.constant 0 : index
      %37 = vector.load %arg6[%c0_35, %c0_36, %c0_37] : memref<1x1x512xf32, #tpu.memory_space<vmem>>, vector<1x1x512xf32>
      tpu.vector_store %arg6[%c0_35, %c0_36, %c0_37], %36 {strides = array<i32>} : memref<1x1x512xf32, #tpu.memory_space<vmem>>, vector<1x1x512xf32>,
    } else {
    }
    %c0 = arith.constant 0 : index
    %c0_1 = arith.constant 0 : index
    %c0_2 = arith.constant 0 : index
    %3 = vector.load %arg2[%c0, %c0_1, %c0_2] : memref<1x16x256xbf16, #tpu.memory_space<vmem>>, vector<1x16x256xbf16>
    %4 = vector.shape_cast %3 : vector<1x16x256xbf16> to vector<16x256xbf16>
    %c0_3 = arith.constant 0 : index
    %c0_4 = arith.constant 0 : index
    %5 = vector.load %arg3[%c0_3, %c0_4] : memref<256x512xbf16, #tpu.memory_space<vmem>>, vector<256x512xbf16>
    %cst = arith.constant dense<0.000000e+00> : vector<16x512xf32>
    %6 = tpu.matmul %4, %5, %cst {dimension_numbers = #tpu.dot_dimension_numbers<[1], [0], [0], [1], [0, 0, 1, 1], [], []>} : vector<16x256xbf16>, vector<256x512xbf16>, vector<16x512xf32> -> vector<16x512xf32>
    %7 = arith.mulf %6, %6 : vector<16x512xf32>
    %c0_5 = arith.constant 0 : index
    %c0_6 = arith.constant 0 : index
    %c0_7 = arith.constant 0 : index
    %8 = vector.load %arg4[%c0_5, %c0_6, %c0_7] : memref<1x1x512xf32, #tpu.memory_space<vmem>>, vector<1x1x512xf32>
    %9 = vector.shape_cast %8 : vector<1x1x512xf32> to vector<1x512xf32>
    %cst_8 = arith.constant dense<0.000000e+00> : vector<512xf32>
    %10 = vector.multi_reduction <add>, %6, %cst_8 [0] : vector<16x512xf32> to vector<512xf32>
    %11 = vector.shape_cast %10 : vector<512xf32> to vector<1x512xf32>
    %12 = arith.addf %9, %11 : vector<1x512xf32>
    %c0_9 = arith.constant 0 : index
    %c0_10 = arith.constant 0 : index
    %c0_11 = arith.constant 0 : index
    %13 = vector.load %arg4[%c0_9, %c0_10, %c0_11] : memref<1x1x512xf32, #tpu.memory_space<vmem>>, vector<1x1x512xf32>
    %14 = vector.shape_cast %13 : vector<1x1x512xf32> to vector<1x512xf32>
    %15 = vector.shape_cast %12 : vector<1x512xf32> to vector<1x1x512xf32>
    tpu.vector_store %arg4[%c0_9, %c0_10, %c0_11], %15 {strides = array<i32>} : memref<1x1x512xf32, #tpu.memory_space<vmem>>, vector<1x1x512xf32>,
    %c0_12 = arith.constant 0 : index
    %c0_13 = arith.constant 0 : index
    %c0_14 = arith.constant 0 : index
    %16 = vector.load %arg5[%c0_12, %c0_13, %c0_14] : memref<1x1x512xf32, #tpu.memory_space<vmem>>, vector<1x1x512xf32>
    %17 = vector.shape_cast %16 : vector<1x1x512xf32> to vector<1x512xf32>
    %cst_15 = arith.constant dense<0.000000e+00> : vector<512xf32>
    %18 = vector.multi_reduction <add>, %7, %cst_15 [0] : vector<16x512xf32> to vector<512xf32>
    %19 = vector.shape_cast %18 : vector<512xf32> to vector<1x512xf32>
    %20 = arith.addf %17, %19 : vector<1x512xf32>
    %c0_16 = arith.constant 0 : index
    %c0_17 = arith.constant 0 : index
    %c0_18 = arith.constant 0 : index
    %21 = vector.load %arg5[%c0_16, %c0_17, %c0_18] : memref<1x1x512xf32, #tpu.memory_space<vmem>>, vector<1x1x512xf32>
    %22 = vector.shape_cast %21 : vector<1x1x512xf32> to vector<1x512xf32>
    %23 = vector.shape_cast %20 : vector<1x512xf32> to vector<1x1x512xf32>
    tpu.vector_store %arg5[%c0_16, %c0_17, %c0_18], %23 {strides = array<i32>} : memref<1x1x512xf32, #tpu.memory_space<vmem>>, vector<1x1x512xf32>,
    %c0_19 = arith.constant 0 : index
    %c0_20 = arith.constant 0 : index
    %c0_21 = arith.constant 0 : index
    %24 = vector.load %arg6[%c0_19, %c0_20, %c0_21] : memref<1x1x512xf32, #tpu.memory_space<vmem>>, vector<1x1x512xf32>
    %25 = vector.shape_cast %24 : vector<1x1x512xf32> to vector<1x512xf32>
    %cst_22 = arith.constant dense<0xFF800000> : vector<512xf32>
    %26 = vector.multi_reduction <maximumf>, %6, %cst_22 [0] : vector<16x512xf32> to vector<512xf32>
    %27 = vector.shape_cast %26 : vector<512xf32> to vector<1x512xf32>
    %28 = arith.maximumf %25, %27 : vector<1x512xf32>
    %c0_23 = arith.constant 0 : index
    %c0_24 = arith.constant 0 : index
    %c0_25 = arith.constant 0 : index
    %29 = vector.load %arg6[%c0_23, %c0_24, %c0_25] : memref<1x1x512xf32, #tpu.memory_space<vmem>>, vector<1x1x512xf32>
    %30 = vector.shape_cast %29 : vector<1x1x512xf32> to vector<1x512xf32>
    %31 = vector.shape_cast %28 : vector<1x512xf32> to vector<1x1x512xf32>
    tpu.vector_store %arg6[%c0_23, %c0_24, %c0_25], %31 {strides = array<i32>} : memref<1x1x512xf32, #tpu.memory_space<vmem>>, vector<1x1x512xf32>,
    return
  }
  func.func @transform_0(%arg0: i32, %arg1: i32) -> (i32, i32, i32) {
    %c0_i32 = arith.constant 0 : i32
    %c0_i32_0 = arith.constant 0 : i32
    return %arg0, %arg1, %c0_i32 : i32, i32, i32
  }
  func.func @transform_1(%arg0: i32, %arg1: i32) -> (i32, i32) {
    %c0_i32 = arith.constant 0 : i32
    %c0_i32_0 = arith.constant 0 : i32
    %c0_i32_1 = arith.constant 0 : i32
    return %c0_i32, %c0_i32_0 : i32, i32
  }
  func.func @transform_2(%arg0: i32, %arg1: i32) -> (i32, i32, i32) {
    %c0_i32 = arith.constant 0 : i32
    %c0_i32_0 = arith.constant 0 : i32
    %c0_i32_1 = arith.constant 0 : i32
    return %arg0, %c0_i32, %c0_i32_0 : i32, i32, i32
  }
  func.func @transform_3(%arg0: i32, %arg1: i32) -> (i32, i32, i32) {
    %c0_i32 = arith.constant 0 : i32
    %c0_i32_0 = arith.constant 0 : i32
    %c0_i32_1 = arith.constant 0 : i32
    return %arg0, %c0_i32, %c0_i32_0 : i32, i32, i32
  }
  func.func @transform_4(%arg0: i32, %arg1: i32) -> (i32, i32, i32) {
    %c0_i32 = arith.constant 0 : i32
    %c0_i32_0 = arith.constant 0 : i32
    %c0_i32_1 = arith.constant 0 : i32
    return %arg0, %c0_i32, %c0_i32_0 : i32, i32, i32
  }
}

module attributes {stable_mosaic.version = 11 : i64} {
  func.func @_adin_cls_kernel(%arg0: i32, %arg1: i32, %arg2: memref<1x64x256xbf16, #tpu.memory_space<vmem>>, %arg3: memref<256x256xbf16, #tpu.memory_space<vmem>>, %arg4: memref<256x256xbf16, #tpu.memory_space<vmem>>, %arg5: memref<1x256xf32, #tpu.memory_space<vmem>>, %arg6: memref<1x256xf32, #tpu.memory_space<vmem>>, %arg7: memref<1x1x256xf32, #tpu.memory_space<vmem>>, %arg8: memref<1x1x256xf32, #tpu.memory_space<vmem>>, %arg9: memref<1x64x256xf32, #tpu.memory_space<vmem>>, %arg10: memref<1x1x256xf32, #tpu.memory_space<vmem>>, %arg11: memref<1x1x256xf32, #tpu.memory_space<vmem>>) attributes {dimension_semantics = [#tpu.dimension_semantics<parallel>, #tpu.dimension_semantics<arbitrary>], iteration_bounds = array<i64: 2, 1>, scalar_prefetch = 0 : i64, scratch_operands = 0 : i64, tpu.core_type = #tpu.core_type<tc>, window_params = [{transform_indices = @transform_0, window_bounds = array<i64: 1, 64, 256>}, {pipeline_mode = #tpu.pipeline_mode<synchronous>, transform_indices = @transform_1, window_bounds = array<i64: 256, 256>}, {pipeline_mode = #tpu.pipeline_mode<synchronous>, transform_indices = @transform_2, window_bounds = array<i64: 256, 256>}, {pipeline_mode = #tpu.pipeline_mode<synchronous>, transform_indices = @transform_3, window_bounds = array<i64: 1, 256>}, {pipeline_mode = #tpu.pipeline_mode<synchronous>, transform_indices = @transform_4, window_bounds = array<i64: 1, 256>}, {transform_indices = @transform_5, window_bounds = array<i64: 1, 1, 256>}, {transform_indices = @transform_6, window_bounds = array<i64: 1, 1, 256>}, {transform_indices = @transform_7, window_bounds = array<i64: 1, 64, 256>}, {transform_indices = @transform_8, window_bounds = array<i64: 1, 1, 256>}, {transform_indices = @transform_9, window_bounds = array<i64: 1, 1, 256>}]} {
    %c0_i32 = arith.constant 0 : i32
    %0 = arith.cmpi eq, %arg1, %c0_i32 : i32
    %1 = arith.extui %0 : i1 to i32
    %c0_i32_0 = arith.constant 0 : i32
    %2 = arith.cmpi ne, %1, %c0_i32_0 : i32
    scf.if %2 {
      %cst_36 = arith.constant 0.000000e+00 : f32
      %46 = vector.broadcast %cst_36 : f32 to vector<1x1x256xf32>
      %c0_37 = arith.constant 0 : index
      %c0_38 = arith.constant 0 : index
      %c0_39 = arith.constant 0 : index
      %47 = vector.load %arg10[%c0_37, %c0_38, %c0_39] : memref<1x1x256xf32, #tpu.memory_space<vmem>>, vector<1x1x256xf32>
      tpu.vector_store %arg10[%c0_37, %c0_38, %c0_39], %46 {strides = array<i32>} : memref<1x1x256xf32, #tpu.memory_space<vmem>>, vector<1x1x256xf32>,
      %cst_40 = arith.constant 0.000000e+00 : f32
      %48 = vector.broadcast %cst_40 : f32 to vector<1x1x256xf32>
      %c0_41 = arith.constant 0 : index
      %c0_42 = arith.constant 0 : index
      %c0_43 = arith.constant 0 : index
      %49 = vector.load %arg11[%c0_41, %c0_42, %c0_43] : memref<1x1x256xf32, #tpu.memory_space<vmem>>, vector<1x1x256xf32>
      tpu.vector_store %arg11[%c0_41, %c0_42, %c0_43], %48 {strides = array<i32>} : memref<1x1x256xf32, #tpu.memory_space<vmem>>, vector<1x1x256xf32>,
    } else {
    }
    %c0 = arith.constant 0 : index
    %c0_1 = arith.constant 0 : index
    %c0_2 = arith.constant 0 : index
    %3 = vector.load %arg2[%c0, %c0_1, %c0_2] : memref<1x64x256xbf16, #tpu.memory_space<vmem>>, vector<1x64x256xbf16>
    %4 = vector.shape_cast %3 : vector<1x64x256xbf16> to vector<64x256xbf16>
    %c0_3 = arith.constant 0 : index
    %c0_4 = arith.constant 0 : index
    %5 = vector.load %arg3[%c0_3, %c0_4] : memref<256x256xbf16, #tpu.memory_space<vmem>>, vector<256x256xbf16>
    %cst = arith.constant dense<0.000000e+00> : vector<64x256xf32>
    %6 = tpu.matmul %4, %5, %cst {dimension_numbers = #tpu.dot_dimension_numbers<[1], [0], [0], [1], [0, 0, 1, 1], [], []>} : vector<64x256xbf16>, vector<256x256xbf16>, vector<64x256xf32> -> vector<64x256xf32>
    %c0_5 = arith.constant 0 : index
    %c0_6 = arith.constant 0 : index
    %7 = vector.load %arg5[%c0_5, %c0_6] : memref<1x256xf32, #tpu.memory_space<vmem>>, vector<1x256xf32>
    %8 = vector.broadcast %7 : vector<1x256xf32> to vector<64x256xf32>
    %9 = arith.subf %6, %8 : vector<64x256xf32>
    %c0_7 = arith.constant 0 : index
    %c0_8 = arith.constant 0 : index
    %10 = vector.load %arg6[%c0_7, %c0_8] : memref<1x256xf32, #tpu.memory_space<vmem>>, vector<1x256xf32>
    %11 = vector.broadcast %10 : vector<1x256xf32> to vector<64x256xf32>
    %12 = arith.mulf %9, %11 : vector<64x256xf32>
    %c0_9 = arith.constant 0 : index
    %c0_10 = arith.constant 0 : index
    %c0_11 = arith.constant 0 : index
    %13 = vector.load %arg7[%c0_9, %c0_10, %c0_11] : memref<1x1x256xf32, #tpu.memory_space<vmem>>, vector<1x1x256xf32>
    %14 = vector.shape_cast %13 : vector<1x1x256xf32> to vector<1x256xf32>
    %15 = vector.broadcast %14 : vector<1x256xf32> to vector<64x256xf32>
    %16 = arith.mulf %12, %15 : vector<64x256xf32>
    %c0_12 = arith.constant 0 : index
    %c0_13 = arith.constant 0 : index
    %c0_14 = arith.constant 0 : index
    %17 = vector.load %arg8[%c0_12, %c0_13, %c0_14] : memref<1x1x256xf32, #tpu.memory_space<vmem>>, vector<1x1x256xf32>
    %18 = vector.shape_cast %17 : vector<1x1x256xf32> to vector<1x256xf32>
    %19 = vector.broadcast %18 : vector<1x256xf32> to vector<64x256xf32>
    %20 = arith.addf %16, %19 : vector<64x256xf32>
    %cst_15 = arith.constant 0.000000e+00 : f32
    %21 = vector.broadcast %cst_15 : f32 to vector<64x256xf32>
    %22 = arith.maximumf %20, %21 : vector<64x256xf32>
    %23 = arith.truncf %22 : vector<64x256xf32> to vector<64x256xbf16>
    %c0_16 = arith.constant 0 : index
    %c0_17 = arith.constant 0 : index
    %24 = vector.load %arg4[%c0_16, %c0_17] : memref<256x256xbf16, #tpu.memory_space<vmem>>, vector<256x256xbf16>
    %cst_18 = arith.constant dense<0.000000e+00> : vector<64x256xf32>
    %25 = tpu.matmul %23, %24, %cst_18 {dimension_numbers = #tpu.dot_dimension_numbers<[1], [0], [0], [1], [0, 0, 1, 1], [], []>} : vector<64x256xbf16>, vector<256x256xbf16>, vector<64x256xf32> -> vector<64x256xf32>
    %c0_19 = arith.constant 0 : index
    %c0_20 = arith.constant 0 : index
    %c0_21 = arith.constant 0 : index
    %26 = vector.load %arg9[%c0_19, %c0_20, %c0_21] : memref<1x64x256xf32, #tpu.memory_space<vmem>>, vector<1x64x256xf32>
    %27 = vector.shape_cast %26 : vector<1x64x256xf32> to vector<64x256xf32>
    %28 = vector.shape_cast %25 : vector<64x256xf32> to vector<1x64x256xf32>
    tpu.vector_store %arg9[%c0_19, %c0_20, %c0_21], %28 {strides = array<i32>} : memref<1x64x256xf32, #tpu.memory_space<vmem>>, vector<1x64x256xf32>,
    %29 = arith.mulf %25, %25 : vector<64x256xf32>
    %c0_22 = arith.constant 0 : index
    %c0_23 = arith.constant 0 : index
    %c0_24 = arith.constant 0 : index
    %30 = vector.load %arg10[%c0_22, %c0_23, %c0_24] : memref<1x1x256xf32, #tpu.memory_space<vmem>>, vector<1x1x256xf32>
    %31 = vector.shape_cast %30 : vector<1x1x256xf32> to vector<1x256xf32>
    %cst_25 = arith.constant dense<0.000000e+00> : vector<256xf32>
    %32 = vector.multi_reduction <add>, %25, %cst_25 [0] : vector<64x256xf32> to vector<256xf32>
    %33 = vector.shape_cast %32 : vector<256xf32> to vector<1x256xf32>
    %34 = arith.addf %31, %33 : vector<1x256xf32>
    %c0_26 = arith.constant 0 : index
    %c0_27 = arith.constant 0 : index
    %c0_28 = arith.constant 0 : index
    %35 = vector.load %arg10[%c0_26, %c0_27, %c0_28] : memref<1x1x256xf32, #tpu.memory_space<vmem>>, vector<1x1x256xf32>
    %36 = vector.shape_cast %35 : vector<1x1x256xf32> to vector<1x256xf32>
    %37 = vector.shape_cast %34 : vector<1x256xf32> to vector<1x1x256xf32>
    tpu.vector_store %arg10[%c0_26, %c0_27, %c0_28], %37 {strides = array<i32>} : memref<1x1x256xf32, #tpu.memory_space<vmem>>, vector<1x1x256xf32>,
    %c0_29 = arith.constant 0 : index
    %c0_30 = arith.constant 0 : index
    %c0_31 = arith.constant 0 : index
    %38 = vector.load %arg11[%c0_29, %c0_30, %c0_31] : memref<1x1x256xf32, #tpu.memory_space<vmem>>, vector<1x1x256xf32>
    %39 = vector.shape_cast %38 : vector<1x1x256xf32> to vector<1x256xf32>
    %cst_32 = arith.constant dense<0.000000e+00> : vector<256xf32>
    %40 = vector.multi_reduction <add>, %29, %cst_32 [0] : vector<64x256xf32> to vector<256xf32>
    %41 = vector.shape_cast %40 : vector<256xf32> to vector<1x256xf32>
    %42 = arith.addf %39, %41 : vector<1x256xf32>
    %c0_33 = arith.constant 0 : index
    %c0_34 = arith.constant 0 : index
    %c0_35 = arith.constant 0 : index
    %43 = vector.load %arg11[%c0_33, %c0_34, %c0_35] : memref<1x1x256xf32, #tpu.memory_space<vmem>>, vector<1x1x256xf32>
    %44 = vector.shape_cast %43 : vector<1x1x256xf32> to vector<1x256xf32>
    %45 = vector.shape_cast %42 : vector<1x256xf32> to vector<1x1x256xf32>
    tpu.vector_store %arg11[%c0_33, %c0_34, %c0_35], %45 {strides = array<i32>} : memref<1x1x256xf32, #tpu.memory_space<vmem>>, vector<1x1x256xf32>,
    return
  }
  func.func @transform_0(%arg0: i32, %arg1: i32) -> (i32, i32, i32) {
    %c0_i32 = arith.constant 0 : i32
    %c0_i32_0 = arith.constant 0 : i32
    return %arg0, %arg1, %c0_i32 : i32, i32, i32
  }
  func.func @transform_1(%arg0: i32, %arg1: i32) -> (i32, i32) {
    %c0_i32 = arith.constant 0 : i32
    %c0_i32_0 = arith.constant 0 : i32
    %c0_i32_1 = arith.constant 0 : i32
    return %c0_i32, %c0_i32_0 : i32, i32
  }
  func.func @transform_2(%arg0: i32, %arg1: i32) -> (i32, i32) {
    %c0_i32 = arith.constant 0 : i32
    %c0_i32_0 = arith.constant 0 : i32
    %c0_i32_1 = arith.constant 0 : i32
    return %c0_i32, %c0_i32_0 : i32, i32
  }
  func.func @transform_3(%arg0: i32, %arg1: i32) -> (i32, i32) {
    %c0_i32 = arith.constant 0 : i32
    %c0_i32_0 = arith.constant 0 : i32
    %c0_i32_1 = arith.constant 0 : i32
    return %c0_i32, %c0_i32_0 : i32, i32
  }
  func.func @transform_4(%arg0: i32, %arg1: i32) -> (i32, i32) {
    %c0_i32 = arith.constant 0 : i32
    %c0_i32_0 = arith.constant 0 : i32
    %c0_i32_1 = arith.constant 0 : i32
    return %c0_i32, %c0_i32_0 : i32, i32
  }
  func.func @transform_5(%arg0: i32, %arg1: i32) -> (i32, i32, i32) {
    %c0_i32 = arith.constant 0 : i32
    %c0_i32_0 = arith.constant 0 : i32
    %c0_i32_1 = arith.constant 0 : i32
    return %arg0, %c0_i32, %c0_i32_0 : i32, i32, i32
  }
  func.func @transform_6(%arg0: i32, %arg1: i32) -> (i32, i32, i32) {
    %c0_i32 = arith.constant 0 : i32
    %c0_i32_0 = arith.constant 0 : i32
    %c0_i32_1 = arith.constant 0 : i32
    return %arg0, %c0_i32, %c0_i32_0 : i32, i32, i32
  }
  func.func @transform_7(%arg0: i32, %arg1: i32) -> (i32, i32, i32) {
    %c0_i32 = arith.constant 0 : i32
    %c0_i32_0 = arith.constant 0 : i32
    return %arg0, %arg1, %c0_i32 : i32, i32, i32
  }
  func.func @transform_8(%arg0: i32, %arg1: i32) -> (i32, i32, i32) {
    %c0_i32 = arith.constant 0 : i32
    %c0_i32_0 = arith.constant 0 : i32
    %c0_i32_1 = arith.constant 0 : i32
    return %arg0, %c0_i32, %c0_i32_0 : i32, i32, i32
  }
  func.func @transform_9(%arg0: i32, %arg1: i32) -> (i32, i32, i32) {
    %c0_i32 = arith.constant 0 : i32
    %c0_i32_0 = arith.constant 0 : i32
    %c0_i32_1 = arith.constant 0 : i32
    return %arg0, %c0_i32, %c0_i32_0 : i32, i32, i32
  }
}

module attributes {stable_mosaic.version = 11 : i64} {
  func.func @_skip_stats_kernel(%arg0: i32, %arg1: i32, %arg2: memref<1x64x256xbf16, #tpu.memory_space<vmem>>, %arg3: memref<256x256xbf16, #tpu.memory_space<vmem>>, %arg4: memref<1x1x256xf32, #tpu.memory_space<vmem>>, %arg5: memref<1x1x256xf32, #tpu.memory_space<vmem>>) attributes {dimension_semantics = [#tpu.dimension_semantics<parallel>, #tpu.dimension_semantics<arbitrary>], iteration_bounds = array<i64: 2, 1>, scalar_prefetch = 0 : i64, scratch_operands = 0 : i64, tpu.core_type = #tpu.core_type<tc>, window_params = [{transform_indices = @transform_0, window_bounds = array<i64: 1, 64, 256>}, {pipeline_mode = #tpu.pipeline_mode<synchronous>, transform_indices = @transform_1, window_bounds = array<i64: 256, 256>}, {transform_indices = @transform_2, window_bounds = array<i64: 1, 1, 256>}, {transform_indices = @transform_3, window_bounds = array<i64: 1, 1, 256>}]} {
    %c0_i32 = arith.constant 0 : i32
    %0 = arith.cmpi eq, %arg1, %c0_i32 : i32
    %1 = arith.extui %0 : i1 to i32
    %c0_i32_0 = arith.constant 0 : i32
    %2 = arith.cmpi ne, %1, %c0_i32_0 : i32
    scf.if %2 {
      %cst_19 = arith.constant 0.000000e+00 : f32
      %24 = vector.broadcast %cst_19 : f32 to vector<1x1x256xf32>
      %c0_20 = arith.constant 0 : index
      %c0_21 = arith.constant 0 : index
      %c0_22 = arith.constant 0 : index
      %25 = vector.load %arg4[%c0_20, %c0_21, %c0_22] : memref<1x1x256xf32, #tpu.memory_space<vmem>>, vector<1x1x256xf32>
      tpu.vector_store %arg4[%c0_20, %c0_21, %c0_22], %24 {strides = array<i32>} : memref<1x1x256xf32, #tpu.memory_space<vmem>>, vector<1x1x256xf32>,
      %cst_23 = arith.constant 0.000000e+00 : f32
      %26 = vector.broadcast %cst_23 : f32 to vector<1x1x256xf32>
      %c0_24 = arith.constant 0 : index
      %c0_25 = arith.constant 0 : index
      %c0_26 = arith.constant 0 : index
      %27 = vector.load %arg5[%c0_24, %c0_25, %c0_26] : memref<1x1x256xf32, #tpu.memory_space<vmem>>, vector<1x1x256xf32>
      tpu.vector_store %arg5[%c0_24, %c0_25, %c0_26], %26 {strides = array<i32>} : memref<1x1x256xf32, #tpu.memory_space<vmem>>, vector<1x1x256xf32>,
    } else {
    }
    %c0 = arith.constant 0 : index
    %c0_1 = arith.constant 0 : index
    %c0_2 = arith.constant 0 : index
    %3 = vector.load %arg2[%c0, %c0_1, %c0_2] : memref<1x64x256xbf16, #tpu.memory_space<vmem>>, vector<1x64x256xbf16>
    %4 = vector.shape_cast %3 : vector<1x64x256xbf16> to vector<64x256xbf16>
    %c0_3 = arith.constant 0 : index
    %c0_4 = arith.constant 0 : index
    %5 = vector.load %arg3[%c0_3, %c0_4] : memref<256x256xbf16, #tpu.memory_space<vmem>>, vector<256x256xbf16>
    %cst = arith.constant dense<0.000000e+00> : vector<64x256xf32>
    %6 = tpu.matmul %4, %5, %cst {dimension_numbers = #tpu.dot_dimension_numbers<[1], [0], [0], [1], [0, 0, 1, 1], [], []>} : vector<64x256xbf16>, vector<256x256xbf16>, vector<64x256xf32> -> vector<64x256xf32>
    %7 = arith.mulf %6, %6 : vector<64x256xf32>
    %c0_5 = arith.constant 0 : index
    %c0_6 = arith.constant 0 : index
    %c0_7 = arith.constant 0 : index
    %8 = vector.load %arg4[%c0_5, %c0_6, %c0_7] : memref<1x1x256xf32, #tpu.memory_space<vmem>>, vector<1x1x256xf32>
    %9 = vector.shape_cast %8 : vector<1x1x256xf32> to vector<1x256xf32>
    %cst_8 = arith.constant dense<0.000000e+00> : vector<256xf32>
    %10 = vector.multi_reduction <add>, %6, %cst_8 [0] : vector<64x256xf32> to vector<256xf32>
    %11 = vector.shape_cast %10 : vector<256xf32> to vector<1x256xf32>
    %12 = arith.addf %9, %11 : vector<1x256xf32>
    %c0_9 = arith.constant 0 : index
    %c0_10 = arith.constant 0 : index
    %c0_11 = arith.constant 0 : index
    %13 = vector.load %arg4[%c0_9, %c0_10, %c0_11] : memref<1x1x256xf32, #tpu.memory_space<vmem>>, vector<1x1x256xf32>
    %14 = vector.shape_cast %13 : vector<1x1x256xf32> to vector<1x256xf32>
    %15 = vector.shape_cast %12 : vector<1x256xf32> to vector<1x1x256xf32>
    tpu.vector_store %arg4[%c0_9, %c0_10, %c0_11], %15 {strides = array<i32>} : memref<1x1x256xf32, #tpu.memory_space<vmem>>, vector<1x1x256xf32>,
    %c0_12 = arith.constant 0 : index
    %c0_13 = arith.constant 0 : index
    %c0_14 = arith.constant 0 : index
    %16 = vector.load %arg5[%c0_12, %c0_13, %c0_14] : memref<1x1x256xf32, #tpu.memory_space<vmem>>, vector<1x1x256xf32>
    %17 = vector.shape_cast %16 : vector<1x1x256xf32> to vector<1x256xf32>
    %cst_15 = arith.constant dense<0.000000e+00> : vector<256xf32>
    %18 = vector.multi_reduction <add>, %7, %cst_15 [0] : vector<64x256xf32> to vector<256xf32>
    %19 = vector.shape_cast %18 : vector<256xf32> to vector<1x256xf32>
    %20 = arith.addf %17, %19 : vector<1x256xf32>
    %c0_16 = arith.constant 0 : index
    %c0_17 = arith.constant 0 : index
    %c0_18 = arith.constant 0 : index
    %21 = vector.load %arg5[%c0_16, %c0_17, %c0_18] : memref<1x1x256xf32, #tpu.memory_space<vmem>>, vector<1x1x256xf32>
    %22 = vector.shape_cast %21 : vector<1x1x256xf32> to vector<1x256xf32>
    %23 = vector.shape_cast %20 : vector<1x256xf32> to vector<1x1x256xf32>
    tpu.vector_store %arg5[%c0_16, %c0_17, %c0_18], %23 {strides = array<i32>} : memref<1x1x256xf32, #tpu.memory_space<vmem>>, vector<1x1x256xf32>,
    return
  }
  func.func @transform_0(%arg0: i32, %arg1: i32) -> (i32, i32, i32) {
    %c0_i32 = arith.constant 0 : i32
    %c0_i32_0 = arith.constant 0 : i32
    return %arg0, %arg1, %c0_i32 : i32, i32, i32
  }
  func.func @transform_1(%arg0: i32, %arg1: i32) -> (i32, i32) {
    %c0_i32 = arith.constant 0 : i32
    %c0_i32_0 = arith.constant 0 : i32
    %c0_i32_1 = arith.constant 0 : i32
    return %c0_i32, %c0_i32_0 : i32, i32
  }
  func.func @transform_2(%arg0: i32, %arg1: i32) -> (i32, i32, i32) {
    %c0_i32 = arith.constant 0 : i32
    %c0_i32_0 = arith.constant 0 : i32
    %c0_i32_1 = arith.constant 0 : i32
    return %arg0, %c0_i32, %c0_i32_0 : i32, i32, i32
  }
  func.func @transform_3(%arg0: i32, %arg1: i32) -> (i32, i32, i32) {
    %c0_i32 = arith.constant 0 : i32
    %c0_i32_0 = arith.constant 0 : i32
    %c0_i32_1 = arith.constant 0 : i32
    return %arg0, %c0_i32, %c0_i32_0 : i32, i32, i32
  }
}

module attributes {stable_mosaic.version = 11 : i64} {
  func.func @_finalize_kernel(%arg0: i32, %arg1: i32, %arg2: memref<1x64x256xf32, #tpu.memory_space<vmem>>, %arg3: memref<1x256xf32, #tpu.memory_space<vmem>>, %arg4: memref<1x256xf32, #tpu.memory_space<vmem>>, %arg5: memref<1x64x256xf32, #tpu.memory_space<vmem>>) attributes {dimension_semantics = [#tpu.dimension_semantics<parallel>, #tpu.dimension_semantics<parallel>], iteration_bounds = array<i64: 2, 1>, scalar_prefetch = 0 : i64, scratch_operands = 0 : i64, tpu.core_type = #tpu.core_type<tc>, window_params = [{transform_indices = @transform_0, window_bounds = array<i64: 1, 64, 256>}, {pipeline_mode = #tpu.pipeline_mode<synchronous>, transform_indices = @transform_1, window_bounds = array<i64: 1, 256>}, {pipeline_mode = #tpu.pipeline_mode<synchronous>, transform_indices = @transform_2, window_bounds = array<i64: 1, 256>}, {transform_indices = @transform_3, window_bounds = array<i64: 1, 64, 256>}]} {
    %c0 = arith.constant 0 : index
    %c0_0 = arith.constant 0 : index
    %c0_1 = arith.constant 0 : index
    %0 = vector.load %arg2[%c0, %c0_0, %c0_1] : memref<1x64x256xf32, #tpu.memory_space<vmem>>, vector<1x64x256xf32>
    %1 = vector.shape_cast %0 : vector<1x64x256xf32> to vector<64x256xf32>
    %c0_2 = arith.constant 0 : index
    %c0_3 = arith.constant 0 : index
    %2 = vector.load %arg3[%c0_2, %c0_3] : memref<1x256xf32, #tpu.memory_space<vmem>>, vector<1x256xf32>
    %3 = vector.broadcast %2 : vector<1x256xf32> to vector<64x256xf32>
    %4 = arith.subf %1, %3 : vector<64x256xf32>
    %c0_4 = arith.constant 0 : index
    %c0_5 = arith.constant 0 : index
    %5 = vector.load %arg4[%c0_4, %c0_5] : memref<1x256xf32, #tpu.memory_space<vmem>>, vector<1x256xf32>
    %6 = vector.broadcast %5 : vector<1x256xf32> to vector<64x256xf32>
    %7 = arith.mulf %4, %6 : vector<64x256xf32>
    %cst = arith.constant 0.000000e+00 : f32
    %8 = vector.broadcast %cst : f32 to vector<64x256xf32>
    %9 = arith.maximumf %7, %8 : vector<64x256xf32>
    %c0_6 = arith.constant 0 : index
    %c0_7 = arith.constant 0 : index
    %c0_8 = arith.constant 0 : index
    %10 = vector.load %arg5[%c0_6, %c0_7, %c0_8] : memref<1x64x256xf32, #tpu.memory_space<vmem>>, vector<1x64x256xf32>
    %11 = vector.shape_cast %10 : vector<1x64x256xf32> to vector<64x256xf32>
    %12 = vector.shape_cast %9 : vector<64x256xf32> to vector<1x64x256xf32>
    tpu.vector_store %arg5[%c0_6, %c0_7, %c0_8], %12 {strides = array<i32>} : memref<1x64x256xf32, #tpu.memory_space<vmem>>, vector<1x64x256xf32>,
    return
  }
  func.func @transform_0(%arg0: i32, %arg1: i32) -> (i32, i32, i32) {
    %c0_i32 = arith.constant 0 : i32
    %c0_i32_0 = arith.constant 0 : i32
    return %arg0, %arg1, %c0_i32 : i32, i32, i32
  }
  func.func @transform_1(%arg0: i32, %arg1: i32) -> (i32, i32) {
    %c0_i32 = arith.constant 0 : i32
    %c0_i32_0 = arith.constant 0 : i32
    %c0_i32_1 = arith.constant 0 : i32
    return %c0_i32, %c0_i32_0 : i32, i32
  }
  func.func @transform_2(%arg0: i32, %arg1: i32) -> (i32, i32) {
    %c0_i32 = arith.constant 0 : i32
    %c0_i32_0 = arith.constant 0 : i32
    %c0_i32_1 = arith.constant 0 : i32
    return %c0_i32, %c0_i32_0 : i32, i32
  }
  func.func @transform_3(%arg0: i32, %arg1: i32) -> (i32, i32, i32) {
    %c0_i32 = arith.constant 0 : i32
    %c0_i32_0 = arith.constant 0 : i32
    return %arg0, %arg1, %c0_i32 : i32, i32, i32
  }
}

</mosaic_0001>

<llo_original>
// kernel: gci_forward.4
$region0: #{gci_forward.4}
  #allocation0 [shape = 'u32[]', space=smem, size = 0x4, offset = 0x4, fixed_abs, tag = 'smem constant byte address 0x4 - core index']
  #allocation1 [shape = 'u32[144,128]{1,0:T(1,128)}', space=vmem, size = 0x12000, scoped, tag = 'internal scratch']
  %s0 = inlined_call_operand.vmem [shape: bf16[2,16,256], index: 0, kind: input, shape index: {}]
  %s1 = inlined_call_operand.vmem [shape: bf16[256,512], index: 1, kind: input, shape index: {}]
  %s2 = inlined_call_operand.vmem [shape: f32[2,1,512], index: 2, kind: output, shape index: {0}]
  %s3 = inlined_call_operand.vmem [shape: f32[2,1,512], index: 3, kind: output, shape index: {1}]
  %s4 = inlined_call_operand.vmem [shape: f32[2,1,512], index: 4, kind: output, shape index: {2}]
  %5 = xla_tuple %s2, %s3, %s4
  %s6 = sld [smem:[#allocation0]]
  $region61: #{gci_forward.4} parent=0
    _
  %s8 = ssub.s32 1, %s6
  %s9 = scalar_select 0, %s8, %s6
  loop: start=0, step=1, limit=4
  $region2: #{gci_forward.4} parent=0 // loop_pre_header
    _
  $region3: #{gci_forward.4} parent=0 // loop_header
    %s11 = sphi 0, %s15
    %p12 = scmp.ge.s32.totalorder %s11, 4
    %s18 = sphi 0, %s30
    %s19 = sphi 0, %s26
    %s20 = sphi 0, %s18
    %s21 = sphi 0, %s19
    %s22 = sphi 0, %s20
    %s23 = sphi 0, %s21
    %s35 = sphi 0, %s37
    %s38 = sphi 0, %s35
    %s39 = sphi 0, %s38
    %s55 = sphi 0, %s39
    %s59 = sphi 0, %s59
    %s61 = sphi 0, %s59
    %s62 = sphi 0, %s61
    %s76 = sphi 0, %s62
    %s82 = sphi 0, %s84
    %s85 = sphi 0, %s82
    %s86 = sphi 0, %s85
    %s102 = sphi 0, %s86
    %s108 = sphi 0, %s110
    %s111 = sphi 0, %s108
    %s112 = sphi 0, %s111
    %s128 = sphi 0, %s112
    %s134 = sphi 0, %s136
    %s137 = sphi 0, %s134
    %s138 = sphi 0, %s137
    %s154 = sphi 0, %s138
  $region4: #{gci_forward.4} parent=0 // loop_header_branch
    %14 = sbr.rel (%p12) target = $region8
  $region5: #{gci_forward.4} parent=0 // loop_body
    %s16 = ssub.s32 %s11, 1
    %s17 = ssub.s32 %s11, 2
    %s24 = sadd.s32 1, %s19
    %p25 = scmp.ge.s32.totalorder %s24, 1
    %s26 = scalar_select %p25, 0, %s24
    %s27 = sadd.s32 1, %s18
    %s28 = scalar_select %p25, %s27, %s18
    %p29 = scmp.ge.s32.totalorder %s28, 2
    %s30 = scalar_select %p29, 0, %s28
    %s31 = ssub.s32 %s18, %s30
    %s32 = ssub.s32 %s19, %s26
    %s33 = sor.u32 %s31, %s32
    %p34 = scmp.eq.s32.totalorder %s33, 0
    %s36 = sadd.s32 %s35, 1
    %s37 = scalar_select %p34, %s35, %s36
    %p40 = pneg %p34
    %p41 = scmp.eq.s32.totalorder %s11, 1
    %p42 = por %p40, %p41
    %p43 = scmp.ne.s32.totalorder %s35, %s38
    %p44 = scmp.eq.s32.totalorder %s11, 0
    %p45 = por %p43, %p44
    %p46 = scmp.ne.s32.totalorder %s35, %s38
    %p47 = scmp.eq.s32.totalorder %s16, 1
    %p48 = por %p46, %p47
    %p49 = scmp.ne.s32.totalorder %s38, %s39
    %p50 = scmp.eq.s32.totalorder %s16, 0
    %p51 = por %p49, %p50
    %p52 = scmp.ne.s32.totalorder %s38, %s39
    %p53 = scmp.eq.s32.totalorder %s17, 1
    %p54 = por %p52, %p53
    %p56 = scmp.ne.s32.totalorder %s39, %s55
    %p57 = scmp.eq.s32.totalorder %s17, 0
    %p58 = por %p56, %p57
    %s60 = sadd.s32 %s59, 1
    %p63 = scmp.eq.s32.totalorder %s11, 1
    %p64 = scmp.ne.s32.totalorder %s59, %s61
    %p65 = scmp.eq.s32.totalorder %s11, 0
    %p66 = por %p64, %p65
    %p67 = scmp.ne.s32.totalorder %s59, %s61
    %p68 = scmp.eq.s32.totalorder %s16, 1
    %p69 = por %p67, %p68
    %p70 = scmp.ne.s32.totalorder %s61, %s62
    %p71 = scmp.eq.s32.totalorder %s16, 0
    %p72 = por %p70, %p71
    %p73 = scmp.ne.s32.totalorder %s61, %s62
    %p74 = scmp.eq.s32.totalorder %s17, 1
    %p75 = por %p73, %p74
    %p77 = scmp.ne.s32.totalorder %s62, %s76
    %p78 = scmp.eq.s32.totalorder %s17, 0
    %p79 = por %p77, %p78
    %s80 = ssub.s32 %s18, %s30
    %p81 = scmp.eq.s32.totalorder %s80, 0
    %s83 = sadd.s32 %s82, 1
    %s84 = scalar_select %p81, %s82, %s83
    %p87 = pneg %p81
    %p88 = scmp.eq.s32.totalorder %s11, 1
    %p89 = por %p87, %p88
    %p90 = scmp.ne.s32.totalorder %s82, %s85
    %p91 = scmp.eq.s32.totalorder %s11, 0
    %p92 = por %p90, %p91
    %p93 = scmp.ne.s32.totalorder %s82, %s85
    %p94 = scmp.eq.s32.totalorder %s16, 1
    %p95 = por %p93, %p94
    %p96 = scmp.ne.s32.totalorder %s85, %s86
    %p97 = scmp.eq.s32.totalorder %s16, 0
    %p98 = por %p96, %p97
    %p99 = scmp.ne.s32.totalorder %s85, %s86
    %p100 = scmp.eq.s32.totalorder %s17, 1
    %p101 = por %p99, %p100
    %p103 = scmp.ne.s32.totalorder %s86, %s102
    %p104 = scmp.eq.s32.totalorder %s17, 0
    %p105 = por %p103, %p104
    %s106 = ssub.s32 %s18, %s30
    %p107 = scmp.eq.s32.totalorder %s106, 0
    %s109 = sadd.s32 %s108, 1
    %s110 = scalar_select %p107, %s108, %s109
    %p113 = pneg %p107
    %p114 = scmp.eq.s32.totalorder %s11, 1
    %p115 = por %p113, %p114
    %p116 = scmp.ne.s32.totalorder %s108, %s111
    %p117 = scmp.eq.s32.totalorder %s11, 0
    %p118 = por %p116, %p117
    %p119 = scmp.ne.s32.totalorder %s108, %s111
    %p120 = scmp.eq.s32.totalorder %s16, 1
    %p121 = por %p119, %p120
    %p122 = scmp.ne.s32.totalorder %s111, %s112
    %p123 = scmp.eq.s32.totalorder %s16, 0
    %p124 = por %p122, %p123
    %p125 = scmp.ne.s32.totalorder %s111, %s112
    %p126 = scmp.eq.s32.totalorder %s17, 1
    %p127 = por %p125, %p126
    %p129 = scmp.ne.s32.totalorder %s112, %s128
    %p130 = scmp.eq.s32.totalorder %s17, 0
    %p131 = por %p129, %p130
    %s132 = ssub.s32 %s18, %s30
    %p133 = scmp.eq.s32.totalorder %s132, 0
    %s135 = sadd.s32 %s134, 1
    %s136 = scalar_select %p133, %s134, %s135
    %p139 = pneg %p133
    %p140 = scmp.eq.s32.totalorder %s11, 1
    %p141 = por %p139, %p140
    %p142 = scmp.ne.s32.totalorder %s134, %s137
    %p143 = scmp.eq.s32.totalorder %s11, 0
    %p144 = por %p142, %p143
    %p145 = scmp.ne.s32.totalorder %s134, %s137
    %p146 = scmp.eq.s32.totalorder %s16, 1
    %p147 = por %p145, %p146
    %p148 = scmp.ne.s32.totalorder %s137, %s138
    %p149 = scmp.eq.s32.totalorder %s16, 0
    %p150 = por %p148, %p149
    %p151 = scmp.ne.s32.totalorder %s137, %s138
    %p152 = scmp.eq.s32.totalorder %s17, 1
    %p153 = por %p151, %p152
    %p155 = scmp.ne.s32.totalorder %s138, %s154
    %p156 = scmp.eq.s32.totalorder %s17, 0
    %p157 = por %p155, %p156
    %p158 = scmp.le.s32.totalorder 1, %s11
    %p159 = scmp.lt.s32.totalorder %s11, 3
    %p160 = pnand %p158, %p159
    %p161 = pneg %p160
    // Predicated region
    $region9: #{gci_forward.4} parent=5 // pred_check
      _
    $region10: #{gci_forward.4} parent=5 // pred_check_branch
      %163 = sbr.rel (%p160) target = $region12
    $region11: #{gci_forward.4} parent=5 // pred_region
      %s164 = ssub.s32 %s11, 1
      // Predicated region
      $region13: #{gci_forward.4} parent=11 // pred_check
        %p165 = pneg %p72
      $region14: #{gci_forward.4} parent=11 // pred_check_branch
        %167 = sbr.rel (%p165) target = $region16
      $region15: #{gci_forward.4} parent=11 // pred_region
        _
      $region16: #{gci_forward.4} parent=11 // pred_fallthru
        _
    $region12: #{gci_forward.4} parent=5 // pred_fallthru
      _
    %p168 = scmp.lt.s32.totalorder %s11, 2
    // Predicated region
    $region17: #{gci_forward.4} parent=5 // pred_check
      %p169 = pneg %p168
    $region18: #{gci_forward.4} parent=5 // pred_check_branch
      %171 = sbr.rel (%p169) target = $region20
    $region19: #{gci_forward.4} parent=5 // pred_region
      // Predicated region
      $region21: #{gci_forward.4} parent=19 // pred_check
        %p172 = pneg %p45
      $region22: #{gci_forward.4} parent=19 // pred_check_branch
        %174 = sbr.rel (%p172) target = $region24
      $region23: #{gci_forward.4} parent=19 // pred_region
        %s175 = smul.u32 2, %s19
        %p176 = scmp.lt.s32.totalorder %s18, 1
        %s177 = scalar_select %p176, %s18, 1
        %p178 = scmp.lt.s32.totalorder %s175, 1
        %s179 = scalar_select %p178, %s175, 1
        %s180 = smul.addr %s179, 2
        %s181 = smul.addr %s177, 4
        %s182 = sadd.s32 %s180, %s181
        %s183 = smul.addr %s182, 4
        %s184 = scalar_lea.vmem %s0, %s183
        %s185 = smul.u32 2, %s19
      $region24: #{gci_forward.4} parent=19 // pred_fallthru
        _
    $region20: #{gci_forward.4} parent=5 // pred_fallthru
      _
    %p186 = scmp.le.s32.totalorder 1, %s11
    %p187 = scmp.lt.s32.totalorder %s11, 3
    %p188 = pnand %p186, %p187
    %p189 = pneg %p188
    // Predicated region
    $region25: #{gci_forward.4} parent=5 // pred_check
      _
    $region26: #{gci_forward.4} parent=5 // pred_check_branch
      %191 = sbr.rel (%p188) target = $region28
    $region27: #{gci_forward.4} parent=5 // pred_region
      %s192 = ssub.s32 %s11, 1
      %s193 = smul.u32 2, %s21
      %p194 = scmp.lt.s32.totalorder %s20, 1
      %s195 = scalar_select %p194, %s20, 1
      %p196 = scmp.lt.s32.totalorder %s193, 1
      %s197 = scalar_select %p196, %s193, 1
      %s198 = smul.addr %s197, 2
      %s199 = smul.addr %s195, 4
      %s200 = sadd.s32 %s198, %s199
      %s201 = smul.addr %s200, 4
      %s202 = scalar_lea.vmem %s0, %s201
      %p203 = pneg %p51
      %p204 = pneg %p48
      %p205 = pneg %p72
      %p206 = pneg %p69
      %p207 = pneg %p98
      %p208 = pneg %p95
      %p209 = scmp.lt.s32.totalorder %s20, 1
      %s210 = scalar_select %p209, %s20, 1
      %s211 = smul.addr %s210, 4
      %s212 = scalar_lea.vmem %s2, %s211
      %p213 = pneg %p124
      %p214 = pneg %p121
      %p215 = scmp.lt.s32.totalorder %s20, 1
      %s216 = scalar_select %p215, %s20, 1
      %s217 = smul.addr %s216, 4
      %s218 = scalar_lea.vmem %s3, %s217
      %p219 = pneg %p150
      %p220 = pneg %p147
      %p221 = scmp.lt.s32.totalorder %s20, 1
      %s222 = scalar_select %p221, %s20, 1
      %s223 = smul.addr %s222, 4
      %s224 = scalar_lea.vmem %s4, %s223
      %s225 = smul.u32 2, %s21
      %p226 = scmp.lt.s32.totalorder %s20, 1
      %s227 = scalar_select %p226, %s20, 1
      %p228 = scmp.lt.s32.totalorder %s225, 1
      %s229 = scalar_select %p228, %s225, 1
      %s230 = smul.addr %s229, 2
      %s231 = smul.addr %s227, 4
      %s232 = sadd.s32 %s230, %s231
      %s233 = smul.addr %s232, 4
      %s234 = scalar_lea.vmem %s0, %s233
      %s235 = smul.u32 2, %s21
      %p236 = scmp.lt.s32.totalorder %s20, 1
      %s237 = scalar_select %p236, %s20, 1
      %s238 = smul.addr %s237, 4
      %s239 = scalar_lea.vmem %s2, %s238
      %p240 = scmp.lt.s32.totalorder %s20, 1
      %s241 = scalar_select %p240, %s20, 1
      %s242 = smul.addr %s241, 4
      %s243 = scalar_lea.vmem %s3, %s242
      %p244 = scmp.lt.s32.totalorder %s20, 1
      %s245 = scalar_select %p244, %s20, 1
      %s246 = smul.addr %s245, 4
      %s247 = scalar_lea.vmem %s4, %s246
      %p248 = scmp.eq.s32.totalorder %s21, 0
      // Predicated region
      $region29: #{gci_forward.4} parent=27 // pred_check
        %p249 = pneg %p248
      $region30: #{gci_forward.4} parent=27 // pred_check_branch
        %251 = sbr.rel (%p249) target = $region32
      $region31: #{gci_forward.4} parent=27 // pred_region
        %v252 = vlaneseq
        %vm253 = vcmp.ge.s32.totalorder %v252, 0
        %vm254 = vcmp.lt.s32.totalorder %v252, 512
        %vm255 = vmand %vm253, %vm254
        %256 = vst.msk [vmem:[%s239] sm:$0xf] %vm255, 0.0
        %257 = vst.msk [vmem:[%s243] sm:$0xf] %vm255, 0.0
        %258 = vst.msk [vmem:[%s247] sm:$0xf] %vm255, -inf
      $region32: #{gci_forward.4} parent=27 // pred_fallthru
        _
      %v259 = vld [vmem:[%s234] sm:$0xff]
      %v260 = vld [vmem:[%s234 + $0x8] sm:$0xff]
      %v261 = vld [vmem:[%s1] sm:$0xff]
      %v262 = vld [vmem:[%s1 + $0x8] sm:$0xff]
      %v263 = vld [vmem:[%s1 + $0x10] sm:$0xff]
      %v264 = vld [vmem:[%s1 + $0x18] sm:$0xff]
      %v265 = vld [vmem:[%s1 + $0x20] sm:$0xff]
      %v266 = vld [vmem:[%s1 + $0x28] sm:$0xff]
      %v267 = vld [vmem:[%s1 + $0x30] sm:$0xff]
      %v268 = vld [vmem:[%s1 + $0x38] sm:$0xff]
      %v269 = vld [vmem:[%s1 + $0x40] sm:$0xff]
      %v270 = vld [vmem:[%s1 + $0x48] sm:$0xff]
      %v271 = vld [vmem:[%s1 + $0x50] sm:$0xff]
      %v272 = vld [vmem:[%s1 + $0x58] sm:$0xff]
      %v273 = vld [vmem:[%s1 + $0x60] sm:$0xff]
      %v274 = vld [vmem:[%s1 + $0x68] sm:$0xff]
      %v275 = vld [vmem:[%s1 + $0x70] sm:$0xff]
      %v276 = vld [vmem:[%s1 + $0x78] sm:$0xff]
      %v277 = vld [vmem:[%s1 + $0x80] sm:$0xff]
      %v278 = vld [vmem:[%s1 + $0x88] sm:$0xff]
      %v279 = vld [vmem:[%s1 + $0x90] sm:$0xff]
      %v280 = vld [vmem:[%s1 + $0x98] sm:$0xff]
      %v281 = vld [vmem:[%s1 + $0xa0] sm:$0xff]
      %v282 = vld [vmem:[%s1 + $0xa8] sm:$0xff]
      %v283 = vld [vmem:[%s1 + $0xb0] sm:$0xff]
      %v284 = vld [vmem:[%s1 + $0xb8] sm:$0xff]
      %v285 = vld [vmem:[%s1 + $0xc0] sm:$0xff]
      %v286 = vld [vmem:[%s1 + $0xc8] sm:$0xff]
      %v287 = vld [vmem:[%s1 + $0xd0] sm:$0xff]
      %v288 = vld [vmem:[%s1 + $0xd8] sm:$0xff]
      %v289 = vld [vmem:[%s1 + $0xe0] sm:$0xff]
      %v290 = vld [vmem:[%s1 + $0xe8] sm:$0xff]
      %v291 = vld [vmem:[%s1 + $0xf0] sm:$0xff]
      %v292 = vld [vmem:[%s1 + $0xf8] sm:$0xff]
      %v293 = vld [vmem:[%s1 + $0x100] sm:$0xff]
      %v294 = vld [vmem:[%s1 + $0x108] sm:$0xff]
      %v295 = vld [vmem:[%s1 + $0x110] sm:$0xff]
      %v296 = vld [vmem:[%s1 + $0x118] sm:$0xff]
      %v297 = vld [vmem:[%s1 + $0x120] sm:$0xff]
      %v298 = vld [vmem:[%s1 + $0x128] sm:$0xff]
      %v299 = vld [vmem:[%s1 + $0x130] sm:$0xff]
      %v300 = vld [vmem:[%s1 + $0x138] sm:$0xff]
      %v301 = vld [vmem:[%s1 + $0x140] sm:$0xff]
      %v302 = vld [vmem:[%s1 + $0x148] sm:$0xff]
      %v303 = vld [vmem:[%s1 + $0x150] sm:$0xff]
      %v304 = vld [vmem:[%s1 + $0x158] sm:$0xff]
      %v305 = vld [vmem:[%s1 + $0x160] sm:$0xff]
      %v306 = vld [vmem:[%s1 + $0x168] sm:$0xff]
      %v307 = vld [vmem:[%s1 + $0x170] sm:$0xff]
      %v308 = vld [vmem:[%s1 + $0x178] sm:$0xff]
      %v309 = vld [vmem:[%s1 + $0x180] sm:$0xff]
      %v310 = vld [vmem:[%s1 + $0x188] sm:$0xff]
      %v311 = vld [vmem:[%s1 + $0x190] sm:$0xff]
      %v312 = vld [vmem:[%s1 + $0x198] sm:$0xff]
      %v313 = vld [vmem:[%s1 + $0x1a0] sm:$0xff]
      %v314 = vld [vmem:[%s1 + $0x1a8] sm:$0xff]
      %v315 = vld [vmem:[%s1 + $0x1b0] sm:$0xff]
      %v316 = vld [vmem:[%s1 + $0x1b8] sm:$0xff]
      %v317 = vld [vmem:[%s1 + $0x1c0] sm:$0xff]
      %v318 = vld [vmem:[%s1 + $0x1c8] sm:$0xff]
      %v319 = vld [vmem:[%s1 + $0x1d0] sm:$0xff]
      %v320 = vld [vmem:[%s1 + $0x1d8] sm:$0xff]
      %v321 = vld [vmem:[%s1 + $0x1e0] sm:$0xff]
      %v322 = vld [vmem:[%s1 + $0x1e8] sm:$0xff]
      %v323 = vld [vmem:[%s1 + $0x1f0] sm:$0xff]
      %v324 = vld [vmem:[%s1 + $0x1f8] sm:$0xff]
      %v327 = vunpack.c.l.b16 %v259
      %v328 = vunpack.c.h.b16 %v259
      %v329 = vunpack.c.l.b16 %v260
      %v330 = vunpack.c.h.b16 %v260
      %v331 = vpack.c.b16 %v329, %v327
      %v332 = vpack.c.b16 %v330, %v328
      %v399 = vunpack.c.l.b16 %v261
      %v400 = vunpack.c.h.b16 %v261
      %v401 = vunpack.c.l.b16 %v262
      %v402 = vunpack.c.h.b16 %v262
      %v403 = vunpack.c.l.b16 %v263
      %v404 = vunpack.c.h.b16 %v263
      %v405 = vunpack.c.l.b16 %v264
      %v406 = vunpack.c.h.b16 %v264
      %v407 = vunpack.c.l.b16 %v265
      %v408 = vunpack.c.h.b16 %v265
      %v409 = vunpack.c.l.b16 %v266
      %v410 = vunpack.c.h.b16 %v266
      %v411 = vunpack.c.l.b16 %v267
      %v412 = vunpack.c.h.b16 %v267
      %v413 = vunpack.c.l.b16 %v268
      %v414 = vunpack.c.h.b16 %v268
      %v415 = vunpack.c.l.b16 %v269
      %v416 = vunpack.c.h.b16 %v269
      %v417 = vunpack.c.l.b16 %v270
      %v418 = vunpack.c.h.b16 %v270
      %v419 = vunpack.c.l.b16 %v271
      %v420 = vunpack.c.h.b16 %v271
      %v421 = vunpack.c.l.b16 %v272
      %v422 = vunpack.c.h.b16 %v272
      %v423 = vunpack.c.l.b16 %v273
      %v424 = vunpack.c.h.b16 %v273
      %v425 = vunpack.c.l.b16 %v274
      %v426 = vunpack.c.h.b16 %v274
      %v427 = vunpack.c.l.b16 %v275
      %v428 = vunpack.c.h.b16 %v275
      %v429 = vunpack.c.l.b16 %v276
      %v430 = vunpack.c.h.b16 %v276
      %v431 = vunpack.c.l.b16 %v277
      %v432 = vunpack.c.h.b16 %v277
      %v433 = vunpack.c.l.b16 %v278
      %v434 = vunpack.c.h.b16 %v278
      %v435 = vunpack.c.l.b16 %v279
      %v436 = vunpack.c.h.b16 %v279
      %v437 = vunpack.c.l.b16 %v280
      %v438 = vunpack.c.h.b16 %v280
      %v439 = vunpack.c.l.b16 %v281
      %v440 = vunpack.c.h.b16 %v281
      %v441 = vunpack.c.l.b16 %v282
      %v442 = vunpack.c.h.b16 %v282
      %v443 = vunpack.c.l.b16 %v283
      %v444 = vunpack.c.h.b16 %v283
      %v445 = vunpack.c.l.b16 %v284
      %v446 = vunpack.c.h.b16 %v284
      %v447 = vunpack.c.l.b16 %v285
      %v448 = vunpack.c.h.b16 %v285
      %v449 = vunpack.c.l.b16 %v286
      %v450 = vunpack.c.h.b16 %v286
      %v451 = vunpack.c.l.b16 %v287
      %v452 = vunpack.c.h.b16 %v287
      %v453 = vunpack.c.l.b16 %v288
      %v454 = vunpack.c.h.b16 %v288
      %v455 = vunpack.c.l.b16 %v289
      %v456 = vunpack.c.h.b16 %v289
      %v457 = vunpack.c.l.b16 %v290
      %v458 = vunpack.c.h.b16 %v290
      %v459 = vunpack.c.l.b16 %v291
      %v460 = vunpack.c.h.b16 %v291
      %v461 = vunpack.c.l.b16 %v292
      %v462 = vunpack.c.h.b16 %v292
      %v463 = vunpack.c.l.b16 %v293
      %v464 = vunpack.c.h.b16 %v293
      %v465 = vunpack.c.l.b16 %v294
      %v466 = vunpack.c.h.b16 %v294
      %v467 = vunpack.c.l.b16 %v295
      %v468 = vunpack.c.h.b16 %v295
      %v469 = vunpack.c.l.b16 %v296
      %v470 = vunpack.c.h.b16 %v296
      %v471 = vunpack.c.l.b16 %v297
      %v472 = vunpack.c.h.b16 %v297
      %v473 = vunpack.c.l.b16 %v298
      %v474 = vunpack.c.h.b16 %v298
      %v475 = vunpack.c.l.b16 %v299
      %v476 = vunpack.c.h.b16 %v299
      %v477 = vunpack.c.l.b16 %v300
      %v478 = vunpack.c.h.b16 %v300
      %v479 = vunpack.c.l.b16 %v301
      %v480 = vunpack.c.h.b16 %v301
      %v481 = vunpack.c.l.b16 %v302
      %v482 = vunpack.c.h.b16 %v302
      %v483 = vunpack.c.l.b16 %v303
      %v484 = vunpack.c.h.b16 %v303
      %v485 = vunpack.c.l.b16 %v304
      %v486 = vunpack.c.h.b16 %v304
      %v487 = vunpack.c.l.b16 %v305
      %v488 = vunpack.c.h.b16 %v305
      %v489 = vunpack.c.l.b16 %v306
      %v490 = vunpack.c.h.b16 %v306
      %v491 = vunpack.c.l.b16 %v307
      %v492 = vunpack.c.h.b16 %v307
      %v493 = vunpack.c.l.b16 %v308
      %v494 = vunpack.c.h.b16 %v308
      %v495 = vunpack.c.l.b16 %v309
      %v496 = vunpack.c.h.b16 %v309
      %v497 = vunpack.c.l.b16 %v310
      %v498 = vunpack.c.h.b16 %v310
      %v499 = vunpack.c.l.b16 %v311
      %v500 = vunpack.c.h.b16 %v311
      %v501 = vunpack.c.l.b16 %v312
      %v502 = vunpack.c.h.b16 %v312
      %v503 = vunpack.c.l.b16 %v313
      %v504 = vunpack.c.h.b16 %v313
      %v505 = vunpack.c.l.b16 %v314
      %v506 = vunpack.c.h.b16 %v314
      %v507 = vunpack.c.l.b16 %v315
      %v508 = vunpack.c.h.b16 %v315
      %v509 = vunpack.c.l.b16 %v316
      %v510 = vunpack.c.h.b16 %v316
      %v511 = vunpack.c.l.b16 %v317
      %v512 = vunpack.c.h.b16 %v317
      %v513 = vunpack.c.l.b16 %v318
      %v514 = vunpack.c.h.b16 %v318
      %v515 = vunpack.c.l.b16 %v319
      %v516 = vunpack.c.h.b16 %v319
      %v517 = vunpack.c.l.b16 %v320
      %v518 = vunpack.c.h.b16 %v320
      %v519 = vunpack.c.l.b16 %v321
      %v520 = vunpack.c.h.b16 %v321
      %v521 = vunpack.c.l.b16 %v322
      %v522 = vunpack.c.h.b16 %v322
      %v523 = vunpack.c.l.b16 %v323
      %v524 = vunpack.c.h.b16 %v323
      %v525 = vunpack.c.l.b16 %v324
      %v526 = vunpack.c.h.b16 %v324
      %v527 = vpack.c.b16 %v403, %v399
      %v528 = vpack.c.b16 %v404, %v400
      %v529 = vpack.c.b16 %v405, %v401
      %v530 = vpack.c.b16 %v406, %v402
      %v531 = vpack.c.b16 %v411, %v407
      %v532 = vpack.c.b16 %v412, %v408
      %v533 = vpack.c.b16 %v413, %v409
      %v534 = vpack.c.b16 %v414, %v410
      %v535 = vpack.c.b16 %v419, %v415
      %v536 = vpack.c.b16 %v420, %v416
      %v537 = vpack.c.b16 %v421, %v417
      %v538 = vpack.c.b16 %v422, %v418
      %v539 = vpack.c.b16 %v427, %v423
      %v540 = vpack.c.b16 %v428, %v424
      %v541 = vpack.c.b16 %v429, %v425
      %v542 = vpack.c.b16 %v430, %v426
      %v543 = vpack.c.b16 %v435, %v431
      %v544 = vpack.c.b16 %v436, %v432
      %v545 = vpack.c.b16 %v437, %v433
      %v546 = vpack.c.b16 %v438, %v434
      %v547 = vpack.c.b16 %v443, %v439
      %v548 = vpack.c.b16 %v444, %v440
      %v549 = vpack.c.b16 %v445, %v441
      %v550 = vpack.c.b16 %v446, %v442
      %v551 = vpack.c.b16 %v451, %v447
      %v552 = vpack.c.b16 %v452, %v448
      %v553 = vpack.c.b16 %v453, %v449
      %v554 = vpack.c.b16 %v454, %v450
      %v555 = vpack.c.b16 %v459, %v455
      %v556 = vpack.c.b16 %v460, %v456
      %v557 = vpack.c.b16 %v461, %v457
      %v558 = vpack.c.b16 %v462, %v458
      %v559 = vpack.c.b16 %v467, %v463
      %v560 = vpack.c.b16 %v468, %v464
      %v561 = vpack.c.b16 %v469, %v465
      %v562 = vpack.c.b16 %v470, %v466
      %v563 = vpack.c.b16 %v475, %v471
      %v564 = vpack.c.b16 %v476, %v472
      %v565 = vpack.c.b16 %v477, %v473
      %v566 = vpack.c.b16 %v478, %v474
      %v567 = vpack.c.b16 %v483, %v479
      %v568 = vpack.c.b16 %v484, %v480
      %v569 = vpack.c.b16 %v485, %v481
      %v570 = vpack.c.b16 %v486, %v482
      %v571 = vpack.c.b16 %v491, %v487
      %v572 = vpack.c.b16 %v492, %v488
      %v573 = vpack.c.b16 %v493, %v489
      %v574 = vpack.c.b16 %v494, %v490
      %v575 = vpack.c.b16 %v499, %v495
      %v576 = vpack.c.b16 %v500, %v496
      %v577 = vpack.c.b16 %v501, %v497
      %v578 = vpack.c.b16 %v502, %v498
      %v579 = vpack.c.b16 %v507, %v503
      %v580 = vpack.c.b16 %v508, %v504
      %v581 = vpack.c.b16 %v509, %v505
      %v582 = vpack.c.b16 %v510, %v506
      %v583 = vpack.c.b16 %v515, %v511
      %v584 = vpack.c.b16 %v516, %v512
      %v585 = vpack.c.b16 %v517, %v513
      %v586 = vpack.c.b16 %v518, %v514
      %v587 = vpack.c.b16 %v523, %v519
      %v588 = vpack.c.b16 %v524, %v520
      %v589 = vpack.c.b16 %v525, %v521
      %v590 = vpack.c.b16 %v526, %v522
      %655 = vmatprep.subr.bf16.mxu0 %v528
      %656 = vmatpush1.bf16.msra.mxu0 %v527
      %657 = vmatprep.subr.bf16.mxu0 %v532
      %658 = vmatpush1.bf16.msra.mxu0 %v531
      %659 = vmatprep.subr.bf16.mxu0 %v536
      %660 = vmatpush1.bf16.msra.mxu0 %v535
      %661 = vmatprep.subr.bf16.mxu0 %v540
      %662 = vmatpush1.bf16.msra.mxu0 %v539
      %663 = vmatprep.subr.bf16.mxu0 %v544
      %664 = vmatpush1.bf16.msra.mxu0 %v543
      %665 = vmatprep.subr.bf16.mxu0 %v548
      %666 = vmatpush1.bf16.msra.mxu0 %v547
      %667 = vmatprep.subr.bf16.mxu0 %v552
      %668 = vmatpush1.bf16.msra.mxu0 %v551
      %669 = vmatprep.subr.bf16.mxu0 %v556
      %670 = vmatpush1.bf16.msra.mxu0 %v555
      %671 = vmatprep.subr.bf16.mxu0 %v560
      %672 = vmatpush1.bf16.msra.mxu0 %v559
      %673 = vmatprep.subr.bf16.mxu0 %v564
      %674 = vmatpush1.bf16.msra.mxu0 %v563
      %675 = vmatprep.subr.bf16.mxu0 %v568
      %676 = vmatpush1.bf16.msra.mxu0 %v567
      %677 = vmatprep.subr.bf16.mxu0 %v572
      %678 = vmatpush1.bf16.msra.mxu0 %v571
      %679 = vmatprep.subr.bf16.mxu0 %v576
      %680 = vmatpush1.bf16.msra.mxu0 %v575
      %681 = vmatprep.subr.bf16.mxu0 %v580
      %682 = vmatpush1.bf16.msra.mxu0 %v579
      %683 = vmatprep.subr.bf16.mxu0 %v584
      %684 = vmatpush1.bf16.msra.mxu0 %v583
      %685 = vmatprep.subr.bf16.mxu0 %v588
      %686 = vmatpush1.bf16.msra.mxu0 %v587
      %687 = vmatprep.mubr.bf16.mxu0 %v332
      %688 = vmatmul.mubr.bf16.gmra.mrb[0].mxu0 %v331
      %v689 = vpop.f32.mrb[0].mxu0
      %v690 = vadd.f32 0.0, %v689
      %v691 = vpop.f32.mrb[0].mxu0
      %v692 = vadd.f32 0.0, %v691
      %v693 = vpop.f32.mrb[0].mxu0
      %v694 = vadd.f32 0.0, %v693
      %v695 = vpop.f32.mrb[0].mxu0
      %v696 = vadd.f32 0.0, %v695
      %697 = vdwg.mxu0
      %698 = vmatprep.subr.bf16.mxu0 %v530
      %699 = vmatpush1.bf16.msra.mxu0 %v529
      %700 = vmatprep.subr.bf16.mxu0 %v534
      %701 = vmatpush1.bf16.msra.mxu0 %v533
      %702 = vmatprep.subr.bf16.mxu0 %v538
      %703 = vmatpush1.bf16.msra.mxu0 %v537
      %704 = vmatprep.subr.bf16.mxu0 %v542
      %705 = vmatpush1.bf16.msra.mxu0 %v541
      %706 = vmatprep.subr.bf16.mxu0 %v546
      %707 = vmatpush1.bf16.msra.mxu0 %v545
      %708 = vmatprep.subr.bf16.mxu0 %v550
      %709 = vmatpush1.bf16.msra.mxu0 %v549
      %710 = vmatprep.subr.bf16.mxu0 %v554
      %711 = vmatpush1.bf16.msra.mxu0 %v553
      %712 = vmatprep.subr.bf16.mxu0 %v558
      %713 = vmatpush1.bf16.msra.mxu0 %v557
      %714 = vmatprep.subr.bf16.mxu0 %v562
      %715 = vmatpush1.bf16.msra.mxu0 %v561
      %716 = vmatprep.subr.bf16.mxu0 %v566
      %717 = vmatpush1.bf16.msra.mxu0 %v565
      %718 = vmatprep.subr.bf16.mxu0 %v570
      %719 = vmatpush1.bf16.msra.mxu0 %v569
      %720 = vmatprep.subr.bf16.mxu0 %v574
      %721 = vmatpush1.bf16.msra.mxu0 %v573
      %722 = vmatprep.subr.bf16.mxu0 %v578
      %723 = vmatpush1.bf16.msra.mxu0 %v577
      %724 = vmatprep.subr.bf16.mxu0 %v582
      %725 = vmatpush1.bf16.msra.mxu0 %v581
      %726 = vmatprep.subr.bf16.mxu0 %v586
      %727 = vmatpush1.bf16.msra.mxu0 %v585
      %728 = vmatprep.subr.bf16.mxu0 %v590
      %729 = vmatpush1.bf16.msra.mxu0 %v589
      %730 = vmatprep.mubr.bf16.mxu0 %v332
      %731 = vmatmul.mubr.bf16.gmra.mrb[0].mxu0 %v331
      %v732 = vpop.f32.mrb[0].mxu0
      %v733 = vadd.f32 0.0, %v732
      %v734 = vpop.f32.mrb[0].mxu0
      %v735 = vadd.f32 0.0, %v734
      %v736 = vpop.f32.mrb[0].mxu0
      %v737 = vadd.f32 0.0, %v736
      %v738 = vpop.f32.mrb[0].mxu0
      %v739 = vadd.f32 0.0, %v738
      %740 = vdwg.mxu0
      %v741 = vmul.f32 %v690, %v690
      %v742 = vmul.f32 %v692, %v692
      %v743 = vmul.f32 %v733, %v733
      %v744 = vmul.f32 %v735, %v735
      %v745 = vmul.f32 %v694, %v694
      %v746 = vmul.f32 %v696, %v696
      %v747 = vmul.f32 %v737, %v737
      %v748 = vmul.f32 %v739, %v739
      %v749 = vld [vmem:[%s239] sm:$0xf]
      %v750 = vadd.f32 %v690, %v694
      %v751 = vrot.slane %v750, 4
      %v752 = vadd.f32 %v750, %v751
      %v753 = vrot.slane %v752, 2
      %v754 = vadd.f32 %v752, %v753
      %v755 = vrot.slane %v754, 1
      %v756 = vadd.f32 %v754, %v755
      %v757 = vadd.f32 %v692, %v696
      %v758 = vrot.slane %v757, 4
      %v759 = vadd.f32 %v757, %v758
      %v760 = vrot.slane %v759, 2
      %v761 = vadd.f32 %v759, %v760
      %v762 = vrot.slane %v761, 1
      %v763 = vadd.f32 %v761, %v762
      %v764 = vadd.f32 %v733, %v737
      %v765 = vrot.slane %v764, 4
      %v766 = vadd.f32 %v764, %v765
      %v767 = vrot.slane %v766, 2
      %v768 = vadd.f32 %v766, %v767
      %v769 = vrot.slane %v768, 1
      %v770 = vadd.f32 %v768, %v769
      %v771 = vadd.f32 %v735, %v739
      %v772 = vrot.slane %v771, 4
      %v773 = vadd.f32 %v771, %v772
      %v774 = vrot.slane %v773, 2
      %v775 = vadd.f32 %v773, %v774
      %v776 = vrot.slane %v775, 1
      %v777 = vadd.f32 %v775, %v776
      %v782 = vcombine.low %v756, %v763
      %v783 = vcombine.low %v770, %v777
      %v785 = vunpack.c.l.s4 1966171168
      %v786 = vunpack.c.0.s8 %v785
      %v787 = vlaneseq
      %v788 = vshrl.u32 %v787, 7
      %v789 = vsub.s32 %v786, %v788
      %v790 = vrot.slane %v782, %v789
      %v792 = vunpack.c.l.s4 1966171168
      %v793 = vunpack.c.0.s8 %v792
      %v794 = vlaneseq
      %v795 = vshrl.u32 %v794, 7
      %v796 = vsub.s32 %v793, %v795
      %v797 = vrot.slane %v783, %v796
      %v798 = vcombine.low %v790, %v797
      %v800 = vunpack.c.l.s4 1966171168
      %v801 = vunpack.c.0.s8 %v800
      %v802 = vlaneseq
      %v803 = vshrl.u32 %v802, 7
      %v804 = vsub.s32 %v801, %v803
      %v805 = vrot.slane %v798, %v804
      %v807 = vadd.f32 %v749, %v805
      %v808 = vlaneseq
      %vm809 = vcmp.ge.s32.totalorder %v808, 0
      %vm810 = vcmp.lt.s32.totalorder %v808, 512
      %vm811 = vmand %vm809, %vm810
      %812 = vst.msk [vmem:[%s239] sm:$0xf] %vm811, %v807
      %v813 = vld [vmem:[%s243] sm:$0xf]
      %v814 = vadd.f32 %v741, %v745
      %v815 = vrot.slane %v814, 4
      %v816 = vadd.f32 %v814, %v815
      %v817 = vrot.slane %v816, 2
      %v818 = vadd.f32 %v816, %v817
      %v819 = vrot.slane %v818, 1
      %v820 = vadd.f32 %v818, %v819
      %v821 = vadd.f32 %v742, %v746
      %v822 = vrot.slane %v821, 4
      %v823 = vadd.f32 %v821, %v822
      %v824 = vrot.slane %v823, 2
      %v825 = vadd.f32 %v823, %v824
      %v826 = vrot.slane %v825, 1
      %v827 = vadd.f32 %v825, %v826
      %v828 = vadd.f32 %v743, %v747
      %v829 = vrot.slane %v828, 4
      %v830 = vadd.f32 %v828, %v829
      %v831 = vrot.slane %v830, 2
      %v832 = vadd.f32 %v830, %v831
      %v833 = vrot.slane %v832, 1
      %v834 = vadd.f32 %v832, %v833
      %v835 = vadd.f32 %v744, %v748
      %v836 = vrot.slane %v835, 4
      %v837 = vadd.f32 %v835, %v836
      %v838 = vrot.slane %v837, 2
      %v839 = vadd.f32 %v837, %v838
      %v840 = vrot.slane %v839, 1
      %v841 = vadd.f32 %v839, %v840
      %v846 = vcombine.low %v820, %v827
      %v847 = vcombine.low %v834, %v841
      %v849 = vunpack.c.l.s4 1966171168
      %v850 = vunpack.c.0.s8 %v849
      %v851 = vlaneseq
      %v852 = vshrl.u32 %v851, 7
      %v853 = vsub.s32 %v850, %v852
      %v854 = vrot.slane %v846, %v853
      %v856 = vunpack.c.l.s4 1966171168
      %v857 = vunpack.c.0.s8 %v856
      %v858 = vlaneseq
      %v859 = vshrl.u32 %v858, 7
      %v860 = vsub.s32 %v857, %v859
      %v861 = vrot.slane %v847, %v860
      %v862 = vcombine.low %v854, %v861
      %v864 = vunpack.c.l.s4 1966171168
      %v865 = vunpack.c.0.s8 %v864
      %v866 = vlaneseq
      %v867 = vshrl.u32 %v866, 7
      %v868 = vsub.s32 %v865, %v867
      %v869 = vrot.slane %v862, %v868
      %v871 = vadd.f32 %v813, %v869
      %872 = vst.msk [vmem:[%s243] sm:$0xf] %vm811, %v871
      %v873 = vld [vmem:[%s247] sm:$0xf]
      %v874 = vmax.f32 %v690, %v694
      %v875 = vrot.slane %v874, 4
      %v876 = vmax.f32 %v874, %v875
      %v877 = vrot.slane %v876, 2
      %v878 = vmax.f32 %v876, %v877
      %v879 = vrot.slane %v878, 1
      %v880 = vmax.f32 %v878, %v879
      %v881 = vmax.f32 %v692, %v696
      %v882 = vrot.slane %v881, 4
      %v883 = vmax.f32 %v881, %v882
      %v884 = vrot.slane %v883, 2
      %v885 = vmax.f32 %v883, %v884
      %v886 = vrot.slane %v885, 1
      %v887 = vmax.f32 %v885, %v886
      %v888 = vmax.f32 %v733, %v737
      %v889 = vrot.slane %v888, 4
      %v890 = vmax.f32 %v888, %v889
      %v891 = vrot.slane %v890, 2
      %v892 = vmax.f32 %v890, %v891
      %v893 = vrot.slane %v892, 1
      %v894 = vmax.f32 %v892, %v893
      %v895 = vmax.f32 %v735, %v739
      %v896 = vrot.slane %v895, 4
      %v897 = vmax.f32 %v895, %v896
      %v898 = vrot.slane %v897, 2
      %v899 = vmax.f32 %v897, %v898
      %v900 = vrot.slane %v899, 1
      %v901 = vmax.f32 %v899, %v900
      %v906 = vcombine.low %v880, %v887
      %v907 = vcombine.low %v894, %v901
      %v909 = vunpack.c.l.s4 1966171168
      %v910 = vunpack.c.0.s8 %v909
      %v911 = vlaneseq
      %v912 = vshrl.u32 %v911, 7
      %v913 = vsub.s32 %v910, %v912
      %v914 = vrot.slane %v906, %v913
      %v916 = vunpack.c.l.s4 1966171168
      %v917 = vunpack.c.0.s8 %v916
      %v918 = vlaneseq
      %v919 = vshrl.u32 %v918, 7
      %v920 = vsub.s32 %v917, %v919
      %v921 = vrot.slane %v907, %v920
      %v922 = vcombine.low %v914, %v921
      %v924 = vunpack.c.l.s4 1966171168
      %v925 = vunpack.c.0.s8 %v924
      %v926 = vlaneseq
      %v927 = vshrl.u32 %v926, 7
      %v928 = vsub.s32 %v925, %v927
      %v929 = vrot.slane %v922, %v928
      %v931 = vmax.f32 %v873, %v929
      %932 = vst.msk [vmem:[%s247] sm:$0xf] %vm811, %v931
      %p933 = scmp.lt.s32.totalorder %s20, 1
      %s934 = scalar_select %p933, %s20, 1
      %s935 = smul.addr %s934, 4
      %s936 = scalar_lea.vmem %s2, %s935
      %p937 = scmp.lt.s32.totalorder %s20, 1
      %s938 = scalar_select %p937, %s20, 1
      %s939 = smul.addr %s938, 4
      %s940 = scalar_lea.vmem %s3, %s939
      %p941 = scmp.lt.s32.totalorder %s20, 1
      %s942 = scalar_select %p941, %s20, 1
      %s943 = smul.addr %s942, 4
      %s944 = scalar_lea.vmem %s4, %s943
      // Predicated region
      $region33: #{gci_forward.4} parent=27 // pred_check
        %p945 = pneg %p95
      $region34: #{gci_forward.4} parent=27 // pred_check_branch
        %947 = sbr.rel (%p945) target = $region36
      $region35: #{gci_forward.4} parent=27 // pred_region
        _
      $region36: #{gci_forward.4} parent=27 // pred_fallthru
        _
      // Predicated region
      $region37: #{gci_forward.4} parent=27 // pred_check
        %p948 = pneg %p121
      $region38: #{gci_forward.4} parent=27 // pred_check_branch
        %950 = sbr.rel (%p948) target = $region40
      $region39: #{gci_forward.4} parent=27 // pred_region
        _
      $region40: #{gci_forward.4} parent=27 // pred_fallthru
        _
      // Predicated region
      $region41: #{gci_forward.4} parent=27 // pred_check
        %p951 = pneg %p147
      $region42: #{gci_forward.4} parent=27 // pred_check_branch
        %953 = sbr.rel (%p951) target = $region44
      $region43: #{gci_forward.4} parent=27 // pred_region
        _
      $region44: #{gci_forward.4} parent=27 // pred_fallthru
        _
    $region28: #{gci_forward.4} parent=5 // pred_fallthru
      _
    %p954 = scmp.le.s32.totalorder 2, %s11
    // Predicated region
    $region45: #{gci_forward.4} parent=5 // pred_check
      %p955 = pneg %p954
    $region46: #{gci_forward.4} parent=5 // pred_check_branch
      %957 = sbr.rel (%p955) target = $region48
    $region47: #{gci_forward.4} parent=5 // pred_region
      %s958 = ssub.s32 %s11, 2
      // Predicated region
      $region49: #{gci_forward.4} parent=47 // pred_check
        %p959 = pneg %p101
      $region50: #{gci_forward.4} parent=47 // pred_check_branch
        %961 = sbr.rel (%p959) target = $region52
      $region51: #{gci_forward.4} parent=47 // pred_region
        %p962 = scmp.lt.s32.totalorder %s22, 1
        %s963 = scalar_select %p962, %s22, 1
        %s964 = smul.addr %s963, 4
        %s965 = scalar_lea.vmem %s2, %s964
      $region52: #{gci_forward.4} parent=47 // pred_fallthru
        _
      // Predicated region
      $region53: #{gci_forward.4} parent=47 // pred_check
        %p966 = pneg %p127
      $region54: #{gci_forward.4} parent=47 // pred_check_branch
        %968 = sbr.rel (%p966) target = $region56
      $region55: #{gci_forward.4} parent=47 // pred_region
        %p969 = scmp.lt.s32.totalorder %s22, 1
        %s970 = scalar_select %p969, %s22, 1
        %s971 = smul.addr %s970, 4
        %s972 = scalar_lea.vmem %s3, %s971
      $region56: #{gci_forward.4} parent=47 // pred_fallthru
        _
      // Predicated region
      $region57: #{gci_forward.4} parent=47 // pred_check
        %p973 = pneg %p153
      $region58: #{gci_forward.4} parent=47 // pred_check_branch
        %975 = sbr.rel (%p973) target = $region60
      $region59: #{gci_forward.4} parent=47 // pred_region
        %p976 = scmp.lt.s32.totalorder %s22, 1
        %s977 = scalar_select %p976, %s22, 1
        %s978 = smul.addr %s977, 4
        %s979 = scalar_lea.vmem %s4, %s978
      $region60: #{gci_forward.4} parent=47 // pred_fallthru
        _
    $region48: #{gci_forward.4} parent=5 // pred_fallthru
      _
  $region6: #{gci_forward.4} parent=0 // loop_footer
    %s15 = sadd.s32 1, %s11
  $region7: #{gci_forward.4} parent=0 // loop_footer_branch
    %10 = sbr.rel target = $region3
  $region8: #{gci_forward.4} parent=0 // loop_exit
    _

// kernel: gci_forward.7
$region0: #{gci_forward.7}
  #allocation0 [shape = 'u32[]', space=smem, size = 0x4, offset = 0x4, fixed_abs, tag = 'smem constant byte address 0x4 - core index']
  #allocation1 [shape = 'u32[144,128]{1,0:T(1,128)}', space=vmem, size = 0x12000, scoped, tag = 'internal scratch']
  %s0 = inlined_call_operand.vmem [shape: f32[2,64,256], index: 0, kind: input, shape index: {}]
  %s1 = inlined_call_operand.vmem [shape: f32[1,256], index: 1, kind: input, shape index: {}]
  %s2 = inlined_call_operand.vmem [shape: f32[1,256], index: 2, kind: input, shape index: {}]
  %s3 = inlined_call_operand.hbm [shape: f32[2,64,256], index: 3, kind: output, shape index: {}]
  %s4 = sld [smem:[#allocation0]]
  $region45: #{gci_forward.7} parent=0
    _
  %s6 = ssub.s32 1, %s4
  %s7 = scalar_select 0, %s6, %s4
  $region1: #{gci_forward.7} parent=0
    #allocation2 [shape = 'u8[131072]{0}', space=vmem, size = 0x20000, scoped, tag = 'output window, operand 0']
    #allocation3 [shape = 's32[2]{0}', space=sflag, size = 0x8, scoped, tag = 'scoped memory for gci_forward.7']
    %8 = vsyncpa [#allocation3], 0
    %s9 = scalar_lea.sflag [#allocation3], 1
    %10 = vsyncpa %s9, 0
    loop: start=0, step=1, limit=4
    $region2: #{gci_forward.7} parent=1 // loop_pre_header
      _
    $region3: #{gci_forward.7} parent=1 // loop_header
      %s12 = sphi 0, %s16
      %p13 = scmp.ge.s32.totalorder %s12, 4
      %s19 = sphi 0, %s31
      %s20 = sphi 0, %s27
      %s21 = sphi 0, %s19
      %s22 = sphi 0, %s20
      %s23 = sphi 0, %s21
      %s24 = sphi 0, %s22
      %s36 = sphi 0, %s38
      %s39 = sphi 0, %s36
      %s40 = sphi 0, %s39
      %s56 = sphi 0, %s40
      %s60 = sphi 0, %s60
      %s62 = sphi 0, %s60
      %s63 = sphi 0, %s62
      %s77 = sphi 0, %s63
      %s81 = sphi 0, %s81
      %s83 = sphi 0, %s81
      %s84 = sphi 0, %s83
      %s98 = sphi 0, %s84
      %s106 = sphi 0, %s108
      %s109 = sphi 0, %s106
      %s110 = sphi 0, %s109
      %s126 = sphi 0, %s110
    $region4: #{gci_forward.7} parent=1 // loop_header_branch
      %15 = sbr.rel (%p13) target = $region8
    $region5: #{gci_forward.7} parent=1 // loop_body
      %s17 = ssub.s32 %s12, 1
      %s18 = ssub.s32 %s12, 2
      %s25 = sadd.s32 1, %s20
      %p26 = scmp.ge.s32.totalorder %s25, 1
      %s27 = scalar_select %p26, 0, %s25
      %s28 = sadd.s32 1, %s19
      %s29 = scalar_select %p26, %s28, %s19
      %p30 = scmp.ge.s32.totalorder %s29, 2
      %s31 = scalar_select %p30, 0, %s29
      %s32 = ssub.s32 %s19, %s31
      %s33 = ssub.s32 %s20, %s27
      %s34 = sor.u32 %s32, %s33
      %p35 = scmp.eq.s32.totalorder %s34, 0
      %s37 = sadd.s32 %s36, 1
      %s38 = scalar_select %p35, %s36, %s37
      %p41 = pneg %p35
      %p42 = scmp.eq.s32.totalorder %s12, 1
      %p43 = por %p41, %p42
      %p44 = scmp.ne.s32.totalorder %s36, %s39
      %p45 = scmp.eq.s32.totalorder %s12, 0
      %p46 = por %p44, %p45
      %p47 = scmp.ne.s32.totalorder %s36, %s39
      %p48 = scmp.eq.s32.totalorder %s17, 1
      %p49 = por %p47, %p48
      %p50 = scmp.ne.s32.totalorder %s39, %s40
      %p51 = scmp.eq.s32.totalorder %s17, 0
      %p52 = por %p50, %p51
      %p53 = scmp.ne.s32.totalorder %s39, %s40
      %p54 = scmp.eq.s32.totalorder %s18, 1
      %p55 = por %p53, %p54
      %p57 = scmp.ne.s32.totalorder %s40, %s56
      %p58 = scmp.eq.s32.totalorder %s18, 0
      %p59 = por %p57, %p58
      %s61 = sadd.s32 %s60, 1
      %p64 = scmp.eq.s32.totalorder %s12, 1
      %p65 = scmp.ne.s32.totalorder %s60, %s62
      %p66 = scmp.eq.s32.totalorder %s12, 0
      %p67 = por %p65, %p66
      %p68 = scmp.ne.s32.totalorder %s60, %s62
      %p69 = scmp.eq.s32.totalorder %s17, 1
      %p70 = por %p68, %p69
      %p71 = scmp.ne.s32.totalorder %s62, %s63
      %p72 = scmp.eq.s32.totalorder %s17, 0
      %p73 = por %p71, %p72
      %p74 = scmp.ne.s32.totalorder %s62, %s63
      %p75 = scmp.eq.s32.totalorder %s18, 1
      %p76 = por %p74, %p75
      %p78 = scmp.ne.s32.totalorder %s63, %s77
      %p79 = scmp.eq.s32.totalorder %s18, 0
      %p80 = por %p78, %p79
      %s82 = sadd.s32 %s81, 1
      %p85 = scmp.eq.s32.totalorder %s12, 1
      %p86 = scmp.ne.s32.totalorder %s81, %s83
      %p87 = scmp.eq.s32.totalorder %s12, 0
      %p88 = por %p86, %p87
      %p89 = scmp.ne.s32.totalorder %s81, %s83
      %p90 = scmp.eq.s32.totalorder %s17, 1
      %p91 = por %p89, %p90
      %p92 = scmp.ne.s32.totalorder %s83, %s84
      %p93 = scmp.eq.s32.totalorder %s17, 0
      %p94 = por %p92, %p93
      %p95 = scmp.ne.s32.totalorder %s83, %s84
      %p96 = scmp.eq.s32.totalorder %s18, 1
      %p97 = por %p95, %p96
      %p99 = scmp.ne.s32.totalorder %s84, %s98
      %p100 = scmp.eq.s32.totalorder %s18, 0
      %p101 = por %p99, %p100
      %s102 = ssub.s32 %s19, %s31
      %s103 = ssub.s32 %s20, %s27
      %s104 = sor.u32 %s102, %s103
      %p105 = scmp.eq.s32.totalorder %s104, 0
      %s107 = sadd.s32 %s106, 1
      %s108 = scalar_select %p105, %s106, %s107
      %p111 = pneg %p105
      %p112 = scmp.eq.s32.totalorder %s12, 1
      %p113 = por %p111, %p112
      %p114 = scmp.ne.s32.totalorder %s106, %s109
      %p115 = scmp.eq.s32.totalorder %s12, 0
      %p116 = por %p114, %p115
      %p117 = scmp.ne.s32.totalorder %s106, %s109
      %p118 = scmp.eq.s32.totalorder %s17, 1
      %p119 = por %p117, %p118
      %p120 = scmp.ne.s32.totalorder %s109, %s110
      %p121 = scmp.eq.s32.totalorder %s17, 0
      %p122 = por %p120, %p121
      %p123 = scmp.ne.s32.totalorder %s109, %s110
      %p124 = scmp.eq.s32.totalorder %s18, 1
      %p125 = por %p123, %p124
      %p127 = scmp.ne.s32.totalorder %s110, %s126
      %p128 = scmp.eq.s32.totalorder %s18, 0
      %p129 = por %p127, %p128
      %p130 = scmp.le.s32.totalorder 1, %s12
      %p131 = scmp.lt.s32.totalorder %s12, 3
      %p132 = pnand %p130, %p131
      %p133 = pneg %p132
      // Predicated region
      $region9: #{gci_forward.7} parent=5 // pred_check
        _
      $region10: #{gci_forward.7} parent=5 // pred_check_branch
        %135 = sbr.rel (%p132) target = $region12
      $region11: #{gci_forward.7} parent=5 // pred_region
        %s136 = ssub.s32 %s12, 1
        // Predicated region
        $region13: #{gci_forward.7} parent=11 // pred_check
          %p137 = pneg %p73
        $region14: #{gci_forward.7} parent=11 // pred_check_branch
          %139 = sbr.rel (%p137) target = $region16
        $region15: #{gci_forward.7} parent=11 // pred_region
          _
        $region16: #{gci_forward.7} parent=11 // pred_fallthru
          _
        // Predicated region
        $region17: #{gci_forward.7} parent=11 // pred_check
          %p140 = pneg %p94
        $region18: #{gci_forward.7} parent=11 // pred_check_branch
          %142 = sbr.rel (%p140) target = $region20
        $region19: #{gci_forward.7} parent=11 // pred_region
          _
        $region20: #{gci_forward.7} parent=11 // pred_fallthru
          _
      $region12: #{gci_forward.7} parent=5 // pred_fallthru
        _
      %p143 = scmp.lt.s32.totalorder %s12, 2
      // Predicated region
      $region21: #{gci_forward.7} parent=5 // pred_check
        %p144 = pneg %p143
      $region22: #{gci_forward.7} parent=5 // pred_check_branch
        %146 = sbr.rel (%p144) target = $region24
      $region23: #{gci_forward.7} parent=5 // pred_region
        // Predicated region
        $region25: #{gci_forward.7} parent=23 // pred_check
          %p147 = pneg %p46
        $region26: #{gci_forward.7} parent=23 // pred_check_branch
          %149 = sbr.rel (%p147) target = $region28
        $region27: #{gci_forward.7} parent=23 // pred_region
          %s150 = smul.u32 8, %s20
          %p151 = scmp.lt.s32.totalorder %s19, 1
          %s152 = scalar_select %p151, %s19, 1
          %p153 = scmp.lt.s32.totalorder %s150, 7
          %s154 = scalar_select %p153, %s150, 7
          %s155 = smul.addr %s154, 2
          %s156 = smul.addr %s152, 16
          %s157 = sadd.s32 %s155, %s156
          %s158 = smul.addr %s157, 8
          %s159 = scalar_lea.vmem %s0, %s158
          %s160 = smul.u32 8, %s20
        $region28: #{gci_forward.7} parent=23 // pred_fallthru
          _
      $region24: #{gci_forward.7} parent=5 // pred_fallthru
        _
      %p161 = scmp.le.s32.totalorder 1, %s12
      %p162 = scmp.lt.s32.totalorder %s12, 3
      %p163 = pnand %p161, %p162
      %p164 = pneg %p163
      // Predicated region
      $region29: #{gci_forward.7} parent=5 // pred_check
        _
      $region30: #{gci_forward.7} parent=5 // pred_check_branch
        %166 = sbr.rel (%p163) target = $region32
      $region31: #{gci_forward.7} parent=5 // pred_region
        %s167 = ssub.s32 %s12, 1
        %s168 = smul.u32 8, %s22
        %p169 = scmp.lt.s32.totalorder %s21, 1
        %s170 = scalar_select %p169, %s21, 1
        %p171 = scmp.lt.s32.totalorder %s168, 7
        %s172 = scalar_select %p171, %s168, 7
        %s173 = smul.addr %s172, 2
        %s174 = smul.addr %s170, 16
        %s175 = sadd.s32 %s173, %s174
        %s176 = smul.addr %s175, 8
        %s177 = scalar_lea.vmem %s0, %s176
        %p178 = pneg %p52
        %p179 = pneg %p49
        %p180 = pneg %p73
        %p181 = pneg %p70
        %p182 = pneg %p94
        %p183 = pneg %p91
        %p184 = pneg %p122
        %p185 = pneg %p119
        %s186 = sand.u32 %s109, 1
        %s187 = scalar_lea.sflag [#allocation3], %s186
        %s188 = sand.u32 %s109, 1
        %s189 = smul.addr %s188, 128
        %s190 = scalar_lea.vmem [#allocation2], %s189
        %s191 = smul.u32 8, %s22
        %p192 = scmp.lt.s32.totalorder %s21, 1
        %s193 = scalar_select %p192, %s21, 1
        %p194 = scmp.lt.s32.totalorder %s191, 7
        %s195 = scalar_select %p194, %s191, 7
        %s196 = smul.addr %s195, 2
        %s197 = smul.addr %s193, 16
        %s198 = sadd.s32 %s196, %s197
        %s199 = smul.addr %s198, 8
        %s200 = scalar_lea.vmem %s0, %s199
        %s201 = smul.u32 8, %s22
        %s202 = smul.u32 8, %s22
        %v203 = vld [vmem:[%s200] sm:$0xff]
        %v204 = vld [vmem:[%s200 + $0x8] sm:$0xff]
        %v205 = vld [vmem:[%s200 + $0x10] sm:$0xff]
        %v206 = vld [vmem:[%s200 + $0x18] sm:$0xff]
        %v207 = vld [vmem:[%s200 + $0x20] sm:$0xff]
        %v208 = vld [vmem:[%s200 + $0x28] sm:$0xff]
        %v209 = vld [vmem:[%s200 + $0x30] sm:$0xff]
        %v210 = vld [vmem:[%s200 + $0x38] sm:$0xff]
        %v211 = vld [vmem:[%s200 + $0x40] sm:$0xff]
        %v212 = vld [vmem:[%s200 + $0x48] sm:$0xff]
        %v213 = vld [vmem:[%s200 + $0x50] sm:$0xff]
        %v214 = vld [vmem:[%s200 + $0x58] sm:$0xff]
        %v215 = vld [vmem:[%s200 + $0x60] sm:$0xff]
        %v216 = vld [vmem:[%s200 + $0x68] sm:$0xff]
        %v217 = vld [vmem:[%s200 + $0x70] sm:$0xff]
        %v218 = vld [vmem:[%s200 + $0x78] sm:$0xff]
        %v219 = vld [vmem:[%s1] sm:$0x3]
        %v221 = vlaneseq
        %v222 = vshrl.u32 %v221, 7
        %v223 = vsub.s32 0, %v222
        %v224 = vrot.slane %v219, %v223
        %v225 = vlaneseq
        %v226 = vshrl.u32 %v225, 7
        %v227 = vsub.s32 1, %v226
        %v228 = vrot.slane %v219, %v227
        %v231 = vsub.f32 %v203, %v224
        %v232 = vsub.f32 %v204, %v228
        %v233 = vsub.f32 %v205, %v224
        %v234 = vsub.f32 %v206, %v228
        %v235 = vsub.f32 %v207, %v224
        %v236 = vsub.f32 %v208, %v228
        %v237 = vsub.f32 %v209, %v224
        %v238 = vsub.f32 %v210, %v228
        %v239 = vsub.f32 %v211, %v224
        %v240 = vsub.f32 %v212, %v228
        %v241 = vsub.f32 %v213, %v224
        %v242 = vsub.f32 %v214, %v228
        %v243 = vsub.f32 %v215, %v224
        %v244 = vsub.f32 %v216, %v228
        %v245 = vsub.f32 %v217, %v224
        %v246 = vsub.f32 %v218, %v228
        %v247 = vld [vmem:[%s2] sm:$0x3]
        %v249 = vlaneseq
        %v250 = vshrl.u32 %v249, 7
        %v251 = vsub.s32 0, %v250
        %v252 = vrot.slane %v247, %v251
        %v253 = vlaneseq
        %v254 = vshrl.u32 %v253, 7
        %v255 = vsub.s32 1, %v254
        %v256 = vrot.slane %v247, %v255
        %v259 = vmul.f32 %v231, %v252
        %v260 = vmul.f32 %v232, %v256
        %v261 = vmul.f32 %v233, %v252
        %v262 = vmul.f32 %v234, %v256
        %v263 = vmul.f32 %v235, %v252
        %v264 = vmul.f32 %v236, %v256
        %v265 = vmul.f32 %v237, %v252
        %v266 = vmul.f32 %v238, %v256
        %v267 = vmul.f32 %v239, %v252
        %v268 = vmul.f32 %v240, %v256
        %v269 = vmul.f32 %v241, %v252
        %v270 = vmul.f32 %v242, %v256
        %v271 = vmul.f32 %v243, %v252
        %v272 = vmul.f32 %v244, %v256
        %v273 = vmul.f32 %v245, %v252
        %v274 = vmul.f32 %v246, %v256
        %v275 = vmax.f32 %v259, 0.0
        %v276 = vmax.f32 %v260, 0.0
        %v277 = vmax.f32 %v261, 0.0
        %v278 = vmax.f32 %v262, 0.0
        %v279 = vmax.f32 %v263, 0.0
        %v280 = vmax.f32 %v264, 0.0
        %v281 = vmax.f32 %v265, 0.0
        %v282 = vmax.f32 %v266, 0.0
        %v283 = vmax.f32 %v267, 0.0
        %v284 = vmax.f32 %v268, 0.0
        %v285 = vmax.f32 %v269, 0.0
        %v286 = vmax.f32 %v270, 0.0
        %v287 = vmax.f32 %v271, 0.0
        %v288 = vmax.f32 %v272, 0.0
        %v289 = vmax.f32 %v273, 0.0
        %v290 = vmax.f32 %v274, 0.0
        %291 = vst [vmem:[%s190] sm:$0xff] %v275
        %292 = vst [vmem:[%s190 + $0x8] sm:$0xff] %v276
        %293 = vst [vmem:[%s190 + $0x10] sm:$0xff] %v277
        %294 = vst [vmem:[%s190 + $0x18] sm:$0xff] %v278
        %295 = vst [vmem:[%s190 + $0x20] sm:$0xff] %v279
        %296 = vst [vmem:[%s190 + $0x28] sm:$0xff] %v280
        %297 = vst [vmem:[%s190 + $0x30] sm:$0xff] %v281
        %298 = vst [vmem:[%s190 + $0x38] sm:$0xff] %v282
        %299 = vst [vmem:[%s190 + $0x40] sm:$0xff] %v283
        %300 = vst [vmem:[%s190 + $0x48] sm:$0xff] %v284
        %301 = vst [vmem:[%s190 + $0x50] sm:$0xff] %v285
        %302 = vst [vmem:[%s190 + $0x58] sm:$0xff] %v286
        %303 = vst [vmem:[%s190 + $0x60] sm:$0xff] %v287
        %304 = vst [vmem:[%s190 + $0x68] sm:$0xff] %v288
        %305 = vst [vmem:[%s190 + $0x70] sm:$0xff] %v289
        %306 = vst [vmem:[%s190 + $0x78] sm:$0xff] %v290
        %s307 = sand.u32 %s109, 1
        %s308 = scalar_lea.sflag [#allocation3], %s307
        %s309 = sand.u32 %s109, 1
        %s310 = smul.addr %s309, 128
        %s311 = scalar_lea.vmem [#allocation2], %s310
        // Predicated region
        $region33: #{gci_forward.7} parent=31 // pred_check
          %p312 = pneg %p119
        $region34: #{gci_forward.7} parent=31 // pred_check_branch
          %314 = sbr.rel (%p312) target = $region36
        $region35: #{gci_forward.7} parent=31 // pred_region
          %s315 = smul.u32 8, %s22
          %s317 = ssub.s32 2048, 2048
          %318 = vsyncadd %s308, %s317
          %s319 = smul.addr %s315, 2
          %s320 = smul.addr %s21, 16
          %s321 = sadd.s32 %s319, %s320
          %s322 = smul.addr %s321, 128
          %s323 = scalar_lea.hbm %s3, %s322
          %s324 = sshll.u32 %s311, 4
          %s325 = int_to_ptr.vmem [resolvable:$true] %s324
          %330 = dma.vmem_to_hbm [thread:$0]  %s325, 2048, %s323, %s308, 256, 256, 16
        $region36: #{gci_forward.7} parent=31 // pred_fallthru
          _
      $region32: #{gci_forward.7} parent=5 // pred_fallthru
        _
      %p331 = scmp.le.s32.totalorder 2, %s12
      // Predicated region
      $region37: #{gci_forward.7} parent=5 // pred_check
        %p332 = pneg %p331
      $region38: #{gci_forward.7} parent=5 // pred_check_branch
        %334 = sbr.rel (%p332) target = $region40
      $region39: #{gci_forward.7} parent=5 // pred_region
        %s335 = ssub.s32 %s12, 2
        // Predicated region
        $region41: #{gci_forward.7} parent=39 // pred_check
          %p336 = pneg %p125
        $region42: #{gci_forward.7} parent=39 // pred_check_branch
          %338 = sbr.rel (%p336) target = $region44
        $region43: #{gci_forward.7} parent=39 // pred_region
          %s339 = sand.u32 %s110, 1
          %s340 = scalar_lea.sflag [#allocation3], %s339
          %s341 = sand.u32 %s110, 1
          %s342 = smul.addr %s341, 128
          %s343 = scalar_lea.vmem [#allocation2], %s342
          %344 = dma.done %s340, 2048
        $region44: #{gci_forward.7} parent=39 // pred_fallthru
          _
      $region40: #{gci_forward.7} parent=5 // pred_fallthru
        _
    $region6: #{gci_forward.7} parent=1 // loop_footer
      %s16 = sadd.s32 1, %s12
    $region7: #{gci_forward.7} parent=1 // loop_footer_branch
      %11 = sbr.rel target = $region3
    $region8: #{gci_forward.7} parent=1 // loop_exit
      _
    %345 = vsyncpa [#allocation3], 1
    %s346 = scalar_lea.sflag [#allocation3], 1
    %347 = vsyncpa %s346, 1

// kernel: gci_forward.5
$region0: #{gci_forward.5}
  #allocation0 [shape = 'u32[]', space=smem, size = 0x4, offset = 0x4, fixed_abs, tag = 'smem constant byte address 0x4 - core index']
  #allocation1 [shape = 'u32[144,128]{1,0:T(1,128)}', space=vmem, size = 0x12000, scoped, tag = 'internal scratch']
  %s0 = inlined_call_operand.vmem [shape: bf16[2,64,256], index: 0, kind: input, shape index: {}]
  %s1 = inlined_call_operand.vmem [shape: bf16[256,256], index: 1, kind: input, shape index: {}]
  %s2 = inlined_call_operand.vmem [shape: f32[2,1,256], index: 2, kind: output, shape index: {0}]
  %s3 = inlined_call_operand.vmem [shape: f32[2,1,256], index: 3, kind: output, shape index: {1}]
  %4 = xla_tuple %s2, %s3
  %s5 = sld [smem:[#allocation0]]
  $region53: #{gci_forward.5} parent=0
    _
  %s7 = ssub.s32 1, %s5
  %s8 = scalar_select 0, %s7, %s5
  loop: start=0, step=1, limit=4
  $region2: #{gci_forward.5} parent=0 // loop_pre_header
    _
  $region3: #{gci_forward.5} parent=0 // loop_header
    %s10 = sphi 0, %s14
    %p11 = scmp.ge.s32.totalorder %s10, 4
    %s17 = sphi 0, %s29
    %s18 = sphi 0, %s25
    %s19 = sphi 0, %s17
    %s20 = sphi 0, %s18
    %s21 = sphi 0, %s19
    %s22 = sphi 0, %s20
    %s34 = sphi 0, %s36
    %s37 = sphi 0, %s34
    %s38 = sphi 0, %s37
    %s54 = sphi 0, %s38
    %s58 = sphi 0, %s58
    %s60 = sphi 0, %s58
    %s61 = sphi 0, %s60
    %s75 = sphi 0, %s61
    %s81 = sphi 0, %s83
    %s84 = sphi 0, %s81
    %s85 = sphi 0, %s84
    %s101 = sphi 0, %s85
    %s107 = sphi 0, %s109
    %s110 = sphi 0, %s107
    %s111 = sphi 0, %s110
    %s127 = sphi 0, %s111
  $region4: #{gci_forward.5} parent=0 // loop_header_branch
    %13 = sbr.rel (%p11) target = $region8
  $region5: #{gci_forward.5} parent=0 // loop_body
    %s15 = ssub.s32 %s10, 1
    %s16 = ssub.s32 %s10, 2
    %s23 = sadd.s32 1, %s18
    %p24 = scmp.ge.s32.totalorder %s23, 1
    %s25 = scalar_select %p24, 0, %s23
    %s26 = sadd.s32 1, %s17
    %s27 = scalar_select %p24, %s26, %s17
    %p28 = scmp.ge.s32.totalorder %s27, 2
    %s29 = scalar_select %p28, 0, %s27
    %s30 = ssub.s32 %s17, %s29
    %s31 = ssub.s32 %s18, %s25
    %s32 = sor.u32 %s30, %s31
    %p33 = scmp.eq.s32.totalorder %s32, 0
    %s35 = sadd.s32 %s34, 1
    %s36 = scalar_select %p33, %s34, %s35
    %p39 = pneg %p33
    %p40 = scmp.eq.s32.totalorder %s10, 1
    %p41 = por %p39, %p40
    %p42 = scmp.ne.s32.totalorder %s34, %s37
    %p43 = scmp.eq.s32.totalorder %s10, 0
    %p44 = por %p42, %p43
    %p45 = scmp.ne.s32.totalorder %s34, %s37
    %p46 = scmp.eq.s32.totalorder %s15, 1
    %p47 = por %p45, %p46
    %p48 = scmp.ne.s32.totalorder %s37, %s38
    %p49 = scmp.eq.s32.totalorder %s15, 0
    %p50 = por %p48, %p49
    %p51 = scmp.ne.s32.totalorder %s37, %s38
    %p52 = scmp.eq.s32.totalorder %s16, 1
    %p53 = por %p51, %p52
    %p55 = scmp.ne.s32.totalorder %s38, %s54
    %p56 = scmp.eq.s32.totalorder %s16, 0
    %p57 = por %p55, %p56
    %s59 = sadd.s32 %s58, 1
    %p62 = scmp.eq.s32.totalorder %s10, 1
    %p63 = scmp.ne.s32.totalorder %s58, %s60
    %p64 = scmp.eq.s32.totalorder %s10, 0
    %p65 = por %p63, %p64
    %p66 = scmp.ne.s32.totalorder %s58, %s60
    %p67 = scmp.eq.s32.totalorder %s15, 1
    %p68 = por %p66, %p67
    %p69 = scmp.ne.s32.totalorder %s60, %s61
    %p70 = scmp.eq.s32.totalorder %s15, 0
    %p71 = por %p69, %p70
    %p72 = scmp.ne.s32.totalorder %s60, %s61
    %p73 = scmp.eq.s32.totalorder %s16, 1
    %p74 = por %p72, %p73
    %p76 = scmp.ne.s32.totalorder %s61, %s75
    %p77 = scmp.eq.s32.totalorder %s16, 0
    %p78 = por %p76, %p77
    %s79 = ssub.s32 %s17, %s29
    %p80 = scmp.eq.s32.totalorder %s79, 0
    %s82 = sadd.s32 %s81, 1
    %s83 = scalar_select %p80, %s81, %s82
    %p86 = pneg %p80
    %p87 = scmp.eq.s32.totalorder %s10, 1
    %p88 = por %p86, %p87
    %p89 = scmp.ne.s32.totalorder %s81, %s84
    %p90 = scmp.eq.s32.totalorder %s10, 0
    %p91 = por %p89, %p90
    %p92 = scmp.ne.s32.totalorder %s81, %s84
    %p93 = scmp.eq.s32.totalorder %s15, 1
    %p94 = por %p92, %p93
    %p95 = scmp.ne.s32.totalorder %s84, %s85
    %p96 = scmp.eq.s32.totalorder %s15, 0
    %p97 = por %p95, %p96
    %p98 = scmp.ne.s32.totalorder %s84, %s85
    %p99 = scmp.eq.s32.totalorder %s16, 1
    %p100 = por %p98, %p99
    %p102 = scmp.ne.s32.totalorder %s85, %s101
    %p103 = scmp.eq.s32.totalorder %s16, 0
    %p104 = por %p102, %p103
    %s105 = ssub.s32 %s17, %s29
    %p106 = scmp.eq.s32.totalorder %s105, 0
    %s108 = sadd.s32 %s107, 1
    %s109 = scalar_select %p106, %s107, %s108
    %p112 = pneg %p106
    %p113 = scmp.eq.s32.totalorder %s10, 1
    %p114 = por %p112, %p113
    %p115 = scmp.ne.s32.totalorder %s107, %s110
    %p116 = scmp.eq.s32.totalorder %s10, 0
    %p117 = por %p115, %p116
    %p118 = scmp.ne.s32.totalorder %s107, %s110
    %p119 = scmp.eq.s32.totalorder %s15, 1
    %p120 = por %p118, %p119
    %p121 = scmp.ne.s32.totalorder %s110, %s111
    %p122 = scmp.eq.s32.totalorder %s15, 0
    %p123 = por %p121, %p122
    %p124 = scmp.ne.s32.totalorder %s110, %s111
    %p125 = scmp.eq.s32.totalorder %s16, 1
    %p126 = por %p124, %p125
    %p128 = scmp.ne.s32.totalorder %s111, %s127
    %p129 = scmp.eq.s32.totalorder %s16, 0
    %p130 = por %p128, %p129
    %p131 = scmp.le.s32.totalorder 1, %s10
    %p132 = scmp.lt.s32.totalorder %s10, 3
    %p133 = pnand %p131, %p132
    %p134 = pneg %p133
    // Predicated region
    $region9: #{gci_forward.5} parent=5 // pred_check
      _
    $region10: #{gci_forward.5} parent=5 // pred_check_branch
      %136 = sbr.rel (%p133) target = $region12
    $region11: #{gci_forward.5} parent=5 // pred_region
      %s137 = ssub.s32 %s10, 1
      // Predicated region
      $region13: #{gci_forward.5} parent=11 // pred_check
        %p138 = pneg %p71
      $region14: #{gci_forward.5} parent=11 // pred_check_branch
        %140 = sbr.rel (%p138) target = $region16
      $region15: #{gci_forward.5} parent=11 // pred_region
        _
      $region16: #{gci_forward.5} parent=11 // pred_fallthru
        _
    $region12: #{gci_forward.5} parent=5 // pred_fallthru
      _
    %p141 = scmp.lt.s32.totalorder %s10, 2
    // Predicated region
    $region17: #{gci_forward.5} parent=5 // pred_check
      %p142 = pneg %p141
    $region18: #{gci_forward.5} parent=5 // pred_check_branch
      %144 = sbr.rel (%p142) target = $region20
    $region19: #{gci_forward.5} parent=5 // pred_region
      // Predicated region
      $region21: #{gci_forward.5} parent=19 // pred_check
        %p145 = pneg %p44
      $region22: #{gci_forward.5} parent=19 // pred_check_branch
        %147 = sbr.rel (%p145) target = $region24
      $region23: #{gci_forward.5} parent=19 // pred_region
        %s148 = smul.u32 8, %s18
        %p149 = scmp.lt.s32.totalorder %s17, 1
        %s150 = scalar_select %p149, %s17, 1
        %p151 = scmp.lt.s32.totalorder %s148, 7
        %s152 = scalar_select %p151, %s148, 7
        %s153 = smul.addr %s152, 2
        %s154 = smul.addr %s150, 16
        %s155 = sadd.s32 %s153, %s154
        %s156 = smul.addr %s155, 4
        %s157 = scalar_lea.vmem %s0, %s156
        %s158 = smul.u32 8, %s18
      $region24: #{gci_forward.5} parent=19 // pred_fallthru
        _
    $region20: #{gci_forward.5} parent=5 // pred_fallthru
      _
    %p159 = scmp.le.s32.totalorder 1, %s10
    %p160 = scmp.lt.s32.totalorder %s10, 3
    %p161 = pnand %p159, %p160
    %p162 = pneg %p161
    // Predicated region
    $region25: #{gci_forward.5} parent=5 // pred_check
      _
    $region26: #{gci_forward.5} parent=5 // pred_check_branch
      %164 = sbr.rel (%p161) target = $region28
    $region27: #{gci_forward.5} parent=5 // pred_region
      %s165 = ssub.s32 %s10, 1
      %s166 = smul.u32 8, %s20
      %p167 = scmp.lt.s32.totalorder %s19, 1
      %s168 = scalar_select %p167, %s19, 1
      %p169 = scmp.lt.s32.totalorder %s166, 7
      %s170 = scalar_select %p169, %s166, 7
      %s171 = smul.addr %s170, 2
      %s172 = smul.addr %s168, 16
      %s173 = sadd.s32 %s171, %s172
      %s174 = smul.addr %s173, 4
      %s175 = scalar_lea.vmem %s0, %s174
      %p176 = pneg %p50
      %p177 = pneg %p47
      %p178 = pneg %p71
      %p179 = pneg %p68
      %p180 = pneg %p97
      %p181 = pneg %p94
      %p182 = scmp.lt.s32.totalorder %s19, 1
      %s183 = scalar_select %p182, %s19, 1
      %s184 = smul.addr %s183, 2
      %s185 = scalar_lea.vmem %s2, %s184
      %p186 = pneg %p123
      %p187 = pneg %p120
      %p188 = scmp.lt.s32.totalorder %s19, 1
      %s189 = scalar_select %p188, %s19, 1
      %s190 = smul.addr %s189, 2
      %s191 = scalar_lea.vmem %s3, %s190
      %s192 = smul.u32 8, %s20
      %p193 = scmp.lt.s32.totalorder %s19, 1
      %s194 = scalar_select %p193, %s19, 1
      %p195 = scmp.lt.s32.totalorder %s192, 7
      %s196 = scalar_select %p195, %s192, 7
      %s197 = smul.addr %s196, 2
      %s198 = smul.addr %s194, 16
      %s199 = sadd.s32 %s197, %s198
      %s200 = smul.addr %s199, 4
      %s201 = scalar_lea.vmem %s0, %s200
      %s202 = smul.u32 8, %s20
      %p203 = scmp.lt.s32.totalorder %s19, 1
      %s204 = scalar_select %p203, %s19, 1
      %s205 = smul.addr %s204, 2
      %s206 = scalar_lea.vmem %s2, %s205
      %p207 = scmp.lt.s32.totalorder %s19, 1
      %s208 = scalar_select %p207, %s19, 1
      %s209 = smul.addr %s208, 2
      %s210 = scalar_lea.vmem %s3, %s209
      %p211 = scmp.eq.s32.totalorder %s20, 0
      // Predicated region
      $region29: #{gci_forward.5} parent=27 // pred_check
        %p212 = pneg %p211
      $region30: #{gci_forward.5} parent=27 // pred_check_branch
        %214 = sbr.rel (%p212) target = $region32
      $region31: #{gci_forward.5} parent=27 // pred_region
        %v215 = vlaneseq
        %vm216 = vcmp.ge.s32.totalorder %v215, 0
        %vm217 = vcmp.lt.s32.totalorder %v215, 256
        %vm218 = vmand %vm216, %vm217
        %219 = vst.msk [vmem:[%s206] sm:$0x3] %vm218, 0.0
        %220 = vst.msk [vmem:[%s210] sm:$0x3] %vm218, 0.0
      $region32: #{gci_forward.5} parent=27 // pred_fallthru
        _
      %v221 = vld [vmem:[%s201] sm:$0xff]
      %v222 = vld [vmem:[%s201 + $0x8] sm:$0xff]
      %v223 = vld [vmem:[%s201 + $0x10] sm:$0xff]
      %v224 = vld [vmem:[%s201 + $0x18] sm:$0xff]
      %v225 = vld [vmem:[%s201 + $0x20] sm:$0xff]
      %v226 = vld [vmem:[%s201 + $0x28] sm:$0xff]
      %v227 = vld [vmem:[%s201 + $0x30] sm:$0xff]
      %v228 = vld [vmem:[%s201 + $0x38] sm:$0xff]
      %v229 = vld [vmem:[%s1] sm:$0xff]
      %v230 = vld [vmem:[%s1 + $0x8] sm:$0xff]
      %v231 = vld [vmem:[%s1 + $0x10] sm:$0xff]
      %v232 = vld [vmem:[%s1 + $0x18] sm:$0xff]
      %v233 = vld [vmem:[%s1 + $0x20] sm:$0xff]
      %v234 = vld [vmem:[%s1 + $0x28] sm:$0xff]
      %v235 = vld [vmem:[%s1 + $0x30] sm:$0xff]
      %v236 = vld [vmem:[%s1 + $0x38] sm:$0xff]
      %v237 = vld [vmem:[%s1 + $0x40] sm:$0xff]
      %v238 = vld [vmem:[%s1 + $0x48] sm:$0xff]
      %v239 = vld [vmem:[%s1 + $0x50] sm:$0xff]
      %v240 = vld [vmem:[%s1 + $0x58] sm:$0xff]
      %v241 = vld [vmem:[%s1 + $0x60] sm:$0xff]
      %v242 = vld [vmem:[%s1 + $0x68] sm:$0xff]
      %v243 = vld [vmem:[%s1 + $0x70] sm:$0xff]
      %v244 = vld [vmem:[%s1 + $0x78] sm:$0xff]
      %v245 = vld [vmem:[%s1 + $0x80] sm:$0xff]
      %v246 = vld [vmem:[%s1 + $0x88] sm:$0xff]
      %v247 = vld [vmem:[%s1 + $0x90] sm:$0xff]
      %v248 = vld [vmem:[%s1 + $0x98] sm:$0xff]
      %v249 = vld [vmem:[%s1 + $0xa0] sm:$0xff]
      %v250 = vld [vmem:[%s1 + $0xa8] sm:$0xff]
      %v251 = vld [vmem:[%s1 + $0xb0] sm:$0xff]
      %v252 = vld [vmem:[%s1 + $0xb8] sm:$0xff]
      %v253 = vld [vmem:[%s1 + $0xc0] sm:$0xff]
      %v254 = vld [vmem:[%s1 + $0xc8] sm:$0xff]
      %v255 = vld [vmem:[%s1 + $0xd0] sm:$0xff]
      %v256 = vld [vmem:[%s1 + $0xd8] sm:$0xff]
      %v257 = vld [vmem:[%s1 + $0xe0] sm:$0xff]
      %v258 = vld [vmem:[%s1 + $0xe8] sm:$0xff]
      %v259 = vld [vmem:[%s1 + $0xf0] sm:$0xff]
      %v260 = vld [vmem:[%s1 + $0xf8] sm:$0xff]
      %v269 = vunpack.c.l.b16 %v221
      %v270 = vunpack.c.h.b16 %v221
      %v271 = vunpack.c.l.b16 %v222
      %v272 = vunpack.c.h.b16 %v222
      %v273 = vunpack.c.l.b16 %v223
      %v274 = vunpack.c.h.b16 %v223
      %v275 = vunpack.c.l.b16 %v224
      %v276 = vunpack.c.h.b16 %v224
      %v277 = vunpack.c.l.b16 %v225
      %v278 = vunpack.c.h.b16 %v225
      %v279 = vunpack.c.l.b16 %v226
      %v280 = vunpack.c.h.b16 %v226
      %v281 = vunpack.c.l.b16 %v227
      %v282 = vunpack.c.h.b16 %v227
      %v283 = vunpack.c.l.b16 %v228
      %v284 = vunpack.c.h.b16 %v228
      %v285 = vpack.c.b16 %v271, %v269
      %v286 = vpack.c.b16 %v272, %v270
      %v287 = vpack.c.b16 %v275, %v273
      %v288 = vpack.c.b16 %v276, %v274
      %v289 = vpack.c.b16 %v279, %v277
      %v290 = vpack.c.b16 %v280, %v278
      %v291 = vpack.c.b16 %v283, %v281
      %v292 = vpack.c.b16 %v284, %v282
      %v333 = vunpack.c.l.b16 %v229
      %v334 = vunpack.c.h.b16 %v229
      %v335 = vunpack.c.l.b16 %v230
      %v336 = vunpack.c.h.b16 %v230
      %v337 = vunpack.c.l.b16 %v231
      %v338 = vunpack.c.h.b16 %v231
      %v339 = vunpack.c.l.b16 %v232
      %v340 = vunpack.c.h.b16 %v232
      %v341 = vunpack.c.l.b16 %v233
      %v342 = vunpack.c.h.b16 %v233
      %v343 = vunpack.c.l.b16 %v234
      %v344 = vunpack.c.h.b16 %v234
      %v345 = vunpack.c.l.b16 %v235
      %v346 = vunpack.c.h.b16 %v235
      %v347 = vunpack.c.l.b16 %v236
      %v348 = vunpack.c.h.b16 %v236
      %v349 = vunpack.c.l.b16 %v237
      %v350 = vunpack.c.h.b16 %v237
      %v351 = vunpack.c.l.b16 %v238
      %v352 = vunpack.c.h.b16 %v238
      %v353 = vunpack.c.l.b16 %v239
      %v354 = vunpack.c.h.b16 %v239
      %v355 = vunpack.c.l.b16 %v240
      %v356 = vunpack.c.h.b16 %v240
      %v357 = vunpack.c.l.b16 %v241
      %v358 = vunpack.c.h.b16 %v241
      %v359 = vunpack.c.l.b16 %v242
      %v360 = vunpack.c.h.b16 %v242
      %v361 = vunpack.c.l.b16 %v243
      %v362 = vunpack.c.h.b16 %v243
      %v363 = vunpack.c.l.b16 %v244
      %v364 = vunpack.c.h.b16 %v244
      %v365 = vunpack.c.l.b16 %v245
      %v366 = vunpack.c.h.b16 %v245
      %v367 = vunpack.c.l.b16 %v246
      %v368 = vunpack.c.h.b16 %v246
      %v369 = vunpack.c.l.b16 %v247
      %v370 = vunpack.c.h.b16 %v247
      %v371 = vunpack.c.l.b16 %v248
      %v372 = vunpack.c.h.b16 %v248
      %v373 = vunpack.c.l.b16 %v249
      %v374 = vunpack.c.h.b16 %v249
      %v375 = vunpack.c.l.b16 %v250
      %v376 = vunpack.c.h.b16 %v250
      %v377 = vunpack.c.l.b16 %v251
      %v378 = vunpack.c.h.b16 %v251
      %v379 = vunpack.c.l.b16 %v252
      %v380 = vunpack.c.h.b16 %v252
      %v381 = vunpack.c.l.b16 %v253
      %v382 = vunpack.c.h.b16 %v253
      %v383 = vunpack.c.l.b16 %v254
      %v384 = vunpack.c.h.b16 %v254
      %v385 = vunpack.c.l.b16 %v255
      %v386 = vunpack.c.h.b16 %v255
      %v387 = vunpack.c.l.b16 %v256
      %v388 = vunpack.c.h.b16 %v256
      %v389 = vunpack.c.l.b16 %v257
      %v390 = vunpack.c.h.b16 %v257
      %v391 = vunpack.c.l.b16 %v258
      %v392 = vunpack.c.h.b16 %v258
      %v393 = vunpack.c.l.b16 %v259
      %v394 = vunpack.c.h.b16 %v259
      %v395 = vunpack.c.l.b16 %v260
      %v396 = vunpack.c.h.b16 %v260
      %v397 = vpack.c.b16 %v335, %v333
      %v398 = vpack.c.b16 %v336, %v334
      %v399 = vpack.c.b16 %v339, %v337
      %v400 = vpack.c.b16 %v340, %v338
      %v401 = vpack.c.b16 %v343, %v341
      %v402 = vpack.c.b16 %v344, %v342
      %v403 = vpack.c.b16 %v347, %v345
      %v404 = vpack.c.b16 %v348, %v346
      %v405 = vpack.c.b16 %v351, %v349
      %v406 = vpack.c.b16 %v352, %v350
      %v407 = vpack.c.b16 %v355, %v353
      %v408 = vpack.c.b16 %v356, %v354
      %v409 = vpack.c.b16 %v359, %v357
      %v410 = vpack.c.b16 %v360, %v358
      %v411 = vpack.c.b16 %v363, %v361
      %v412 = vpack.c.b16 %v364, %v362
      %v413 = vpack.c.b16 %v367, %v365
      %v414 = vpack.c.b16 %v368, %v366
      %v415 = vpack.c.b16 %v371, %v369
      %v416 = vpack.c.b16 %v372, %v370
      %v417 = vpack.c.b16 %v375, %v373
      %v418 = vpack.c.b16 %v376, %v374
      %v419 = vpack.c.b16 %v379, %v377
      %v420 = vpack.c.b16 %v380, %v378
      %v421 = vpack.c.b16 %v383, %v381
      %v422 = vpack.c.b16 %v384, %v382
      %v423 = vpack.c.b16 %v387, %v385
      %v424 = vpack.c.b16 %v388, %v386
      %v425 = vpack.c.b16 %v391, %v389
      %v426 = vpack.c.b16 %v392, %v390
      %v427 = vpack.c.b16 %v395, %v393
      %v428 = vpack.c.b16 %v396, %v394
      %461 = vmatprep.subr.bf16.mxu0 %v398
      %462 = vmatpush1.bf16.msra.mxu0 %v397
      %463 = vmatprep.subr.bf16.mxu0 %v400
      %464 = vmatpush1.bf16.msra.mxu0 %v399
      %465 = vmatprep.subr.bf16.mxu0 %v402
      %466 = vmatpush1.bf16.msra.mxu0 %v401
      %467 = vmatprep.subr.bf16.mxu0 %v404
      %468 = vmatpush1.bf16.msra.mxu0 %v403
      %469 = vmatprep.subr.bf16.mxu0 %v406
      %470 = vmatpush1.bf16.msra.mxu0 %v405
      %471 = vmatprep.subr.bf16.mxu0 %v408
      %472 = vmatpush1.bf16.msra.mxu0 %v407
      %473 = vmatprep.subr.bf16.mxu0 %v410
      %474 = vmatpush1.bf16.msra.mxu0 %v409
      %475 = vmatprep.subr.bf16.mxu0 %v412
      %476 = vmatpush1.bf16.msra.mxu0 %v411
      %477 = vmatprep.subr.bf16.mxu0 %v414
      %478 = vmatpush1.bf16.msra.mxu0 %v413
      %479 = vmatprep.subr.bf16.mxu0 %v416
      %480 = vmatpush1.bf16.msra.mxu0 %v415
      %481 = vmatprep.subr.bf16.mxu0 %v418
      %482 = vmatpush1.bf16.msra.mxu0 %v417
      %483 = vmatprep.subr.bf16.mxu0 %v420
      %484 = vmatpush1.bf16.msra.mxu0 %v419
      %485 = vmatprep.subr.bf16.mxu0 %v422
      %486 = vmatpush1.bf16.msra.mxu0 %v421
      %487 = vmatprep.subr.bf16.mxu0 %v424
      %488 = vmatpush1.bf16.msra.mxu0 %v423
      %489 = vmatprep.subr.bf16.mxu0 %v426
      %490 = vmatpush1.bf16.msra.mxu0 %v425
      %491 = vmatprep.subr.bf16.mxu0 %v428
      %492 = vmatpush1.bf16.msra.mxu0 %v427
      %493 = vmatprep.mubr.bf16.mxu0 %v286
      %494 = vmatmul.mubr.bf16.gmra.mrb[0].mxu0 %v285
      %v495 = vpop.f32.mrb[0].mxu0
      %v496 = vadd.f32 0.0, %v495
      %v497 = vpop.f32.mrb[0].mxu0
      %v498 = vadd.f32 0.0, %v497
      %v499 = vpop.f32.mrb[0].mxu0
      %v500 = vadd.f32 0.0, %v499
      %v501 = vpop.f32.mrb[0].mxu0
      %v502 = vadd.f32 0.0, %v501
      %503 = vmatprep.mubr.bf16.mxu0 %v288
      %504 = vmatmul.mubr.bf16.gmra.mrb[0].mxu0 %v287
      %v505 = vpop.f32.mrb[0].mxu0
      %v506 = vadd.f32 0.0, %v505
      %v507 = vpop.f32.mrb[0].mxu0
      %v508 = vadd.f32 0.0, %v507
      %v509 = vpop.f32.mrb[0].mxu0
      %v510 = vadd.f32 0.0, %v509
      %v511 = vpop.f32.mrb[0].mxu0
      %v512 = vadd.f32 0.0, %v511
      %513 = vmatprep.mubr.bf16.mxu0 %v290
      %514 = vmatmul.mubr.bf16.gmra.mrb[0].mxu0 %v289
      %v515 = vpop.f32.mrb[0].mxu0
      %v516 = vadd.f32 0.0, %v515
      %v517 = vpop.f32.mrb[0].mxu0
      %v518 = vadd.f32 0.0, %v517
      %v519 = vpop.f32.mrb[0].mxu0
      %v520 = vadd.f32 0.0, %v519
      %v521 = vpop.f32.mrb[0].mxu0
      %v522 = vadd.f32 0.0, %v521
      %523 = vmatprep.mubr.bf16.mxu0 %v292
      %524 = vmatmul.mubr.bf16.gmra.mrb[0].mxu0 %v291
      %v525 = vpop.f32.mrb[0].mxu0
      %v526 = vadd.f32 0.0, %v525
      %v527 = vpop.f32.mrb[0].mxu0
      %v528 = vadd.f32 0.0, %v527
      %v529 = vpop.f32.mrb[0].mxu0
      %v530 = vadd.f32 0.0, %v529
      %v531 = vpop.f32.mrb[0].mxu0
      %v532 = vadd.f32 0.0, %v531
      %533 = vdwg.mxu0
      %v534 = vmul.f32 %v496, %v496
      %v535 = vmul.f32 %v498, %v498
      %v536 = vmul.f32 %v500, %v500
      %v537 = vmul.f32 %v502, %v502
      %v538 = vmul.f32 %v506, %v506
      %v539 = vmul.f32 %v508, %v508
      %v540 = vmul.f32 %v510, %v510
      %v541 = vmul.f32 %v512, %v512
      %v542 = vmul.f32 %v516, %v516
      %v543 = vmul.f32 %v518, %v518
      %v544 = vmul.f32 %v520, %v520
      %v545 = vmul.f32 %v522, %v522
      %v546 = vmul.f32 %v526, %v526
      %v547 = vmul.f32 %v528, %v528
      %v548 = vmul.f32 %v530, %v530
      %v549 = vmul.f32 %v532, %v532
      %v550 = vld [vmem:[%s206] sm:$0x3]
      %v551 = vadd.f32 %v496, %v500
      %v552 = vadd.f32 %v551, %v506
      %v553 = vadd.f32 %v552, %v510
      %v554 = vadd.f32 %v553, %v516
      %v555 = vadd.f32 %v554, %v520
      %v556 = vadd.f32 %v555, %v526
      %v557 = vadd.f32 %v556, %v530
      %v558 = vrot.slane %v557, 4
      %v559 = vadd.f32 %v557, %v558
      %v560 = vrot.slane %v559, 2
      %v561 = vadd.f32 %v559, %v560
      %v562 = vrot.slane %v561, 1
      %v563 = vadd.f32 %v561, %v562
      %v564 = vadd.f32 %v498, %v502
      %v565 = vadd.f32 %v564, %v508
      %v566 = vadd.f32 %v565, %v512
      %v567 = vadd.f32 %v566, %v518
      %v568 = vadd.f32 %v567, %v522
      %v569 = vadd.f32 %v568, %v528
      %v570 = vadd.f32 %v569, %v532
      %v571 = vrot.slane %v570, 4
      %v572 = vadd.f32 %v570, %v571
      %v573 = vrot.slane %v572, 2
      %v574 = vadd.f32 %v572, %v573
      %v575 = vrot.slane %v574, 1
      %v576 = vadd.f32 %v574, %v575
      %v579 = vcombine.low %v563, %v576
      %v581 = vunpack.c.l.s4 1966171168
      %v582 = vunpack.c.0.s8 %v581
      %v583 = vlaneseq
      %v584 = vshrl.u32 %v583, 7
      %v585 = vsub.s32 %v582, %v584
      %v586 = vrot.slane %v579, %v585
      %v588 = vunpack.c.l.s4 1966171168
      %v589 = vunpack.c.0.s8 %v588
      %v590 = vlaneseq
      %v591 = vshrl.u32 %v590, 7
      %v592 = vsub.s32 %v589, %v591
      %v593 = vrot.slane %v586, %v592
      %v595 = vadd.f32 %v550, %v593
      %v596 = vlaneseq
      %vm597 = vcmp.ge.s32.totalorder %v596, 0
      %vm598 = vcmp.lt.s32.totalorder %v596, 256
      %vm599 = vmand %vm597, %vm598
      %600 = vst.msk [vmem:[%s206] sm:$0x3] %vm599, %v595
      %v601 = vld [vmem:[%s210] sm:$0x3]
      %v602 = vadd.f32 %v534, %v536
      %v603 = vadd.f32 %v602, %v538
      %v604 = vadd.f32 %v603, %v540
      %v605 = vadd.f32 %v604, %v542
      %v606 = vadd.f32 %v605, %v544
      %v607 = vadd.f32 %v606, %v546
      %v608 = vadd.f32 %v607, %v548
      %v609 = vrot.slane %v608, 4
      %v610 = vadd.f32 %v608, %v609
      %v611 = vrot.slane %v610, 2
      %v612 = vadd.f32 %v610, %v611
      %v613 = vrot.slane %v612, 1
      %v614 = vadd.f32 %v612, %v613
      %v615 = vadd.f32 %v535, %v537
      %v616 = vadd.f32 %v615, %v539
      %v617 = vadd.f32 %v616, %v541
      %v618 = vadd.f32 %v617, %v543
      %v619 = vadd.f32 %v618, %v545
      %v620 = vadd.f32 %v619, %v547
      %v621 = vadd.f32 %v620, %v549
      %v622 = vrot.slane %v621, 4
      %v623 = vadd.f32 %v621, %v622
      %v624 = vrot.slane %v623, 2
      %v625 = vadd.f32 %v623, %v624
      %v626 = vrot.slane %v625, 1
      %v627 = vadd.f32 %v625, %v626
      %v630 = vcombine.low %v614, %v627
      %v632 = vunpack.c.l.s4 1966171168
      %v633 = vunpack.c.0.s8 %v632
      %v634 = vlaneseq
      %v635 = vshrl.u32 %v634, 7
      %v636 = vsub.s32 %v633, %v635
      %v637 = vrot.slane %v630, %v636
      %v639 = vunpack.c.l.s4 1966171168
      %v640 = vunpack.c.0.s8 %v639
      %v641 = vlaneseq
      %v642 = vshrl.u32 %v641, 7
      %v643 = vsub.s32 %v640, %v642
      %v644 = vrot.slane %v637, %v643
      %v646 = vadd.f32 %v601, %v644
      %647 = vst.msk [vmem:[%s210] sm:$0x3] %vm599, %v646
      %p648 = scmp.lt.s32.totalorder %s19, 1
      %s649 = scalar_select %p648, %s19, 1
      %s650 = smul.addr %s649, 2
      %s651 = scalar_lea.vmem %s2, %s650
      %p652 = scmp.lt.s32.totalorder %s19, 1
      %s653 = scalar_select %p652, %s19, 1
      %s654 = smul.addr %s653, 2
      %s655 = scalar_lea.vmem %s3, %s654
      // Predicated region
      $region33: #{gci_forward.5} parent=27 // pred_check
        %p656 = pneg %p94
      $region34: #{gci_forward.5} parent=27 // pred_check_branch
        %658 = sbr.rel (%p656) target = $region36
      $region35: #{gci_forward.5} parent=27 // pred_region
        _
      $region36: #{gci_forward.5} parent=27 // pred_fallthru
        _
      // Predicated region
      $region37: #{gci_forward.5} parent=27 // pred_check
        %p659 = pneg %p120
      $region38: #{gci_forward.5} parent=27 // pred_check_branch
        %661 = sbr.rel (%p659) target = $region40
      $region39: #{gci_forward.5} parent=27 // pred_region
        _
      $region40: #{gci_forward.5} parent=27 // pred_fallthru
        _
    $region28: #{gci_forward.5} parent=5 // pred_fallthru
      _
    %p662 = scmp.le.s32.totalorder 2, %s10
    // Predicated region
    $region41: #{gci_forward.5} parent=5 // pred_check
      %p663 = pneg %p662
    $region42: #{gci_forward.5} parent=5 // pred_check_branch
      %665 = sbr.rel (%p663) target = $region44
    $region43: #{gci_forward.5} parent=5 // pred_region
      %s666 = ssub.s32 %s10, 2
      // Predicated region
      $region45: #{gci_forward.5} parent=43 // pred_check
        %p667 = pneg %p100
      $region46: #{gci_forward.5} parent=43 // pred_check_branch
        %669 = sbr.rel (%p667) target = $region48
      $region47: #{gci_forward.5} parent=43 // pred_region
        %p670 = scmp.lt.s32.totalorder %s21, 1
        %s671 = scalar_select %p670, %s21, 1
        %s672 = smul.addr %s671, 2
        %s673 = scalar_lea.vmem %s2, %s672
      $region48: #{gci_forward.5} parent=43 // pred_fallthru
        _
      // Predicated region
      $region49: #{gci_forward.5} parent=43 // pred_check
        %p674 = pneg %p126
      $region50: #{gci_forward.5} parent=43 // pred_check_branch
        %676 = sbr.rel (%p674) target = $region52
      $region51: #{gci_forward.5} parent=43 // pred_region
        %p677 = scmp.lt.s32.totalorder %s21, 1
        %s678 = scalar_select %p677, %s21, 1
        %s679 = smul.addr %s678, 2
        %s680 = scalar_lea.vmem %s3, %s679
      $region52: #{gci_forward.5} parent=43 // pred_fallthru
        _
    $region44: #{gci_forward.5} parent=5 // pred_fallthru
      _
  $region6: #{gci_forward.5} parent=0 // loop_footer
    %s14 = sadd.s32 1, %s10
  $region7: #{gci_forward.5} parent=0 // loop_footer_branch
    %9 = sbr.rel target = $region3
  $region8: #{gci_forward.5} parent=0 // loop_exit
    _

// kernel: gci_forward.6
$region0: #{gci_forward.6}
  #allocation0 [shape = 'u32[]', space=smem, size = 0x4, offset = 0x4, fixed_abs, tag = 'smem constant byte address 0x4 - core index']
  #allocation1 [shape = 'u32[144,128]{1,0:T(1,128)}', space=vmem, size = 0x12000, scoped, tag = 'internal scratch']
  %s0 = inlined_call_operand.vmem [shape: bf16[2,64,256], index: 0, kind: input, shape index: {}]
  %s1 = inlined_call_operand.vmem [shape: bf16[256,256], index: 1, kind: input, shape index: {}]
  %s2 = inlined_call_operand.vmem [shape: bf16[256,256], index: 2, kind: input, shape index: {}]
  %s3 = inlined_call_operand.vmem [shape: f32[1,256], index: 3, kind: input, shape index: {}]
  %s4 = inlined_call_operand.vmem [shape: f32[1,256], index: 4, kind: input, shape index: {}]
  %s5 = inlined_call_operand.vmem [shape: f32[2,1,256], index: 5, kind: input, shape index: {}]
  %s6 = inlined_call_operand.vmem [shape: f32[2,1,256], index: 6, kind: input, shape index: {}]
  %s7 = inlined_call_operand.vmem [shape: f32[2,64,256], index: 7, kind: output, shape index: {0}]
  %s8 = inlined_call_operand.vmem [shape: f32[2,1,256], index: 8, kind: output, shape index: {1}]
  %s9 = inlined_call_operand.vmem [shape: f32[2,1,256], index: 9, kind: output, shape index: {2}]
  %10 = xla_tuple %s7, %s8, %s9
  %s11 = sld [smem:[#allocation0]]
  $region81: #{gci_forward.6} parent=0
    _
  %s13 = ssub.s32 1, %s11
  %s14 = scalar_select 0, %s13, %s11
  loop: start=0, step=1, limit=4
  $region2: #{gci_forward.6} parent=0 // loop_pre_header
    _
  $region3: #{gci_forward.6} parent=0 // loop_header
    %s16 = sphi 0, %s20
    %p17 = scmp.ge.s32.totalorder %s16, 4
    %s23 = sphi 0, %s35
    %s24 = sphi 0, %s31
    %s25 = sphi 0, %s23
    %s26 = sphi 0, %s24
    %s27 = sphi 0, %s25
    %s28 = sphi 0, %s26
    %s40 = sphi 0, %s42
    %s43 = sphi 0, %s40
    %s44 = sphi 0, %s43
    %s60 = sphi 0, %s44
    %s64 = sphi 0, %s64
    %s66 = sphi 0, %s64
    %s67 = sphi 0, %s66
    %s81 = sphi 0, %s67
    %s85 = sphi 0, %s85
    %s87 = sphi 0, %s85
    %s88 = sphi 0, %s87
    %s102 = sphi 0, %s88
    %s106 = sphi 0, %s106
    %s108 = sphi 0, %s106
    %s109 = sphi 0, %s108
    %s123 = sphi 0, %s109
    %s127 = sphi 0, %s127
    %s129 = sphi 0, %s127
    %s130 = sphi 0, %s129
    %s144 = sphi 0, %s130
    %s150 = sphi 0, %s152
    %s153 = sphi 0, %s150
    %s154 = sphi 0, %s153
    %s170 = sphi 0, %s154
    %s176 = sphi 0, %s178
    %s179 = sphi 0, %s176
    %s180 = sphi 0, %s179
    %s196 = sphi 0, %s180
    %s204 = sphi 0, %s206
    %s207 = sphi 0, %s204
    %s208 = sphi 0, %s207
    %s224 = sphi 0, %s208
    %s230 = sphi 0, %s232
    %s233 = sphi 0, %s230
    %s234 = sphi 0, %s233
    %s250 = sphi 0, %s234
    %s256 = sphi 0, %s258
    %s259 = sphi 0, %s256
    %s260 = sphi 0, %s259
    %s276 = sphi 0, %s260
  $region4: #{gci_forward.6} parent=0 // loop_header_branch
    %19 = sbr.rel (%p17) target = $region8
  $region5: #{gci_forward.6} parent=0 // loop_body
    %s21 = ssub.s32 %s16, 1
    %s22 = ssub.s32 %s16, 2
    %s29 = sadd.s32 1, %s24
    %p30 = scmp.ge.s32.totalorder %s29, 1
    %s31 = scalar_select %p30, 0, %s29
    %s32 = sadd.s32 1, %s23
    %s33 = scalar_select %p30, %s32, %s23
    %p34 = scmp.ge.s32.totalorder %s33, 2
    %s35 = scalar_select %p34, 0, %s33
    %s36 = ssub.s32 %s23, %s35
    %s37 = ssub.s32 %s24, %s31
    %s38 = sor.u32 %s36, %s37
    %p39 = scmp.eq.s32.totalorder %s38, 0
    %s41 = sadd.s32 %s40, 1
    %s42 = scalar_select %p39, %s40, %s41
    %p45 = pneg %p39
    %p46 = scmp.eq.s32.totalorder %s16, 1
    %p47 = por %p45, %p46
    %p48 = scmp.ne.s32.totalorder %s40, %s43
    %p49 = scmp.eq.s32.totalorder %s16, 0
    %p50 = por %p48, %p49
    %p51 = scmp.ne.s32.totalorder %s40, %s43
    %p52 = scmp.eq.s32.totalorder %s21, 1
    %p53 = por %p51, %p52
    %p54 = scmp.ne.s32.totalorder %s43, %s44
    %p55 = scmp.eq.s32.totalorder %s21, 0
    %p56 = por %p54, %p55
    %p57 = scmp.ne.s32.totalorder %s43, %s44
    %p58 = scmp.eq.s32.totalorder %s22, 1
    %p59 = por %p57, %p58
    %p61 = scmp.ne.s32.totalorder %s44, %s60
    %p62 = scmp.eq.s32.totalorder %s22, 0
    %p63 = por %p61, %p62
    %s65 = sadd.s32 %s64, 1
    %p68 = scmp.eq.s32.totalorder %s16, 1
    %p69 = scmp.ne.s32.totalorder %s64, %s66
    %p70 = scmp.eq.s32.totalorder %s16, 0
    %p71 = por %p69, %p70
    %p72 = scmp.ne.s32.totalorder %s64, %s66
    %p73 = scmp.eq.s32.totalorder %s21, 1
    %p74 = por %p72, %p73
    %p75 = scmp.ne.s32.totalorder %s66, %s67
    %p76 = scmp.eq.s32.totalorder %s21, 0
    %p77 = por %p75, %p76
    %p78 = scmp.ne.s32.totalorder %s66, %s67
    %p79 = scmp.eq.s32.totalorder %s22, 1
    %p80 = por %p78, %p79
    %p82 = scmp.ne.s32.totalorder %s67, %s81
    %p83 = scmp.eq.s32.totalorder %s22, 0
    %p84 = por %p82, %p83
    %s86 = sadd.s32 %s85, 1
    %p89 = scmp.eq.s32.totalorder %s16, 1
    %p90 = scmp.ne.s32.totalorder %s85, %s87
    %p91 = scmp.eq.s32.totalorder %s16, 0
    %p92 = por %p90, %p91
    %p93 = scmp.ne.s32.totalorder %s85, %s87
    %p94 = scmp.eq.s32.totalorder %s21, 1
    %p95 = por %p93, %p94
    %p96 = scmp.ne.s32.totalorder %s87, %s88
    %p97 = scmp.eq.s32.totalorder %s21, 0
    %p98 = por %p96, %p97
    %p99 = scmp.ne.s32.totalorder %s87, %s88
    %p100 = scmp.eq.s32.totalorder %s22, 1
    %p101 = por %p99, %p100
    %p103 = scmp.ne.s32.totalorder %s88, %s102
    %p104 = scmp.eq.s32.totalorder %s22, 0
    %p105 = por %p103, %p104
    %s107 = sadd.s32 %s106, 1
    %p110 = scmp.eq.s32.totalorder %s16, 1
    %p111 = scmp.ne.s32.totalorder %s106, %s108
    %p112 = scmp.eq.s32.totalorder %s16, 0
    %p113 = por %p111, %p112
    %p114 = scmp.ne.s32.totalorder %s106, %s108
    %p115 = scmp.eq.s32.totalorder %s21, 1
    %p116 = por %p114, %p115
    %p117 = scmp.ne.s32.totalorder %s108, %s109
    %p118 = scmp.eq.s32.totalorder %s21, 0
    %p119 = por %p117, %p118
    %p120 = scmp.ne.s32.totalorder %s108, %s109
    %p121 = scmp.eq.s32.totalorder %s22, 1
    %p122 = por %p120, %p121
    %p124 = scmp.ne.s32.totalorder %s109, %s123
    %p125 = scmp.eq.s32.totalorder %s22, 0
    %p126 = por %p124, %p125
    %s128 = sadd.s32 %s127, 1
    %p131 = scmp.eq.s32.totalorder %s16, 1
    %p132 = scmp.ne.s32.totalorder %s127, %s129
    %p133 = scmp.eq.s32.totalorder %s16, 0
    %p134 = por %p132, %p133
    %p135 = scmp.ne.s32.totalorder %s127, %s129
    %p136 = scmp.eq.s32.totalorder %s21, 1
    %p137 = por %p135, %p136
    %p138 = scmp.ne.s32.totalorder %s129, %s130
    %p139 = scmp.eq.s32.totalorder %s21, 0
    %p140 = por %p138, %p139
    %p141 = scmp.ne.s32.totalorder %s129, %s130
    %p142 = scmp.eq.s32.totalorder %s22, 1
    %p143 = por %p141, %p142
    %p145 = scmp.ne.s32.totalorder %s130, %s144
    %p146 = scmp.eq.s32.totalorder %s22, 0
    %p147 = por %p145, %p146
    %s148 = ssub.s32 %s23, %s35
    %p149 = scmp.eq.s32.totalorder %s148, 0
    %s151 = sadd.s32 %s150, 1
    %s152 = scalar_select %p149, %s150, %s151
    %p155 = pneg %p149
    %p156 = scmp.eq.s32.totalorder %s16, 1
    %p157 = por %p155, %p156
    %p158 = scmp.ne.s32.totalorder %s150, %s153
    %p159 = scmp.eq.s32.totalorder %s16, 0
    %p160 = por %p158, %p159
    %p161 = scmp.ne.s32.totalorder %s150, %s153
    %p162 = scmp.eq.s32.totalorder %s21, 1
    %p163 = por %p161, %p162
    %p164 = scmp.ne.s32.totalorder %s153, %s154
    %p165 = scmp.eq.s32.totalorder %s21, 0
    %p166 = por %p164, %p165
    %p167 = scmp.ne.s32.totalorder %s153, %s154
    %p168 = scmp.eq.s32.totalorder %s22, 1
    %p169 = por %p167, %p168
    %p171 = scmp.ne.s32.totalorder %s154, %s170
    %p172 = scmp.eq.s32.totalorder %s22, 0
    %p173 = por %p171, %p172
    %s174 = ssub.s32 %s23, %s35
    %p175 = scmp.eq.s32.totalorder %s174, 0
    %s177 = sadd.s32 %s176, 1
    %s178 = scalar_select %p175, %s176, %s177
    %p181 = pneg %p175
    %p182 = scmp.eq.s32.totalorder %s16, 1
    %p183 = por %p181, %p182
    %p184 = scmp.ne.s32.totalorder %s176, %s179
    %p185 = scmp.eq.s32.totalorder %s16, 0
    %p186 = por %p184, %p185
    %p187 = scmp.ne.s32.totalorder %s176, %s179
    %p188 = scmp.eq.s32.totalorder %s21, 1
    %p189 = por %p187, %p188
    %p190 = scmp.ne.s32.totalorder %s179, %s180
    %p191 = scmp.eq.s32.totalorder %s21, 0
    %p192 = por %p190, %p191
    %p193 = scmp.ne.s32.totalorder %s179, %s180
    %p194 = scmp.eq.s32.totalorder %s22, 1
    %p195 = por %p193, %p194
    %p197 = scmp.ne.s32.totalorder %s180, %s196
    %p198 = scmp.eq.s32.totalorder %s22, 0
    %p199 = por %p197, %p198
    %s200 = ssub.s32 %s23, %s35
    %s201 = ssub.s32 %s24, %s31
    %s202 = sor.u32 %s200, %s201
    %p203 = scmp.eq.s32.totalorder %s202, 0
    %s205 = sadd.s32 %s204, 1
    %s206 = scalar_select %p203, %s204, %s205
    %p209 = pneg %p203
    %p210 = scmp.eq.s32.totalorder %s16, 1
    %p211 = por %p209, %p210
    %p212 = scmp.ne.s32.totalorder %s204, %s207
    %p213 = scmp.eq.s32.totalorder %s16, 0
    %p214 = por %p212, %p213
    %p215 = scmp.ne.s32.totalorder %s204, %s207
    %p216 = scmp.eq.s32.totalorder %s21, 1
    %p217 = por %p215, %p216
    %p218 = scmp.ne.s32.totalorder %s207, %s208
    %p219 = scmp.eq.s32.totalorder %s21, 0
    %p220 = por %p218, %p219
    %p221 = scmp.ne.s32.totalorder %s207, %s208
    %p222 = scmp.eq.s32.totalorder %s22, 1
    %p223 = por %p221, %p222
    %p225 = scmp.ne.s32.totalorder %s208, %s224
    %p226 = scmp.eq.s32.totalorder %s22, 0
    %p227 = por %p225, %p226
    %s228 = ssub.s32 %s23, %s35
    %p229 = scmp.eq.s32.totalorder %s228, 0
    %s231 = sadd.s32 %s230, 1
    %s232 = scalar_select %p229, %s230, %s231
    %p235 = pneg %p229
    %p236 = scmp.eq.s32.totalorder %s16, 1
    %p237 = por %p235, %p236
    %p238 = scmp.ne.s32.totalorder %s230, %s233
    %p239 = scmp.eq.s32.totalorder %s16, 0
    %p240 = por %p238, %p239
    %p241 = scmp.ne.s32.totalorder %s230, %s233
    %p242 = scmp.eq.s32.totalorder %s21, 1
    %p243 = por %p241, %p242
    %p244 = scmp.ne.s32.totalorder %s233, %s234
    %p245 = scmp.eq.s32.totalorder %s21, 0
    %p246 = por %p244, %p245
    %p247 = scmp.ne.s32.totalorder %s233, %s234
    %p248 = scmp.eq.s32.totalorder %s22, 1
    %p249 = por %p247, %p248
    %p251 = scmp.ne.s32.totalorder %s234, %s250
    %p252 = scmp.eq.s32.totalorder %s22, 0
    %p253 = por %p251, %p252
    %s254 = ssub.s32 %s23, %s35
    %p255 = scmp.eq.s32.totalorder %s254, 0
    %s257 = sadd.s32 %s256, 1
    %s258 = scalar_select %p255, %s256, %s257
    %p261 = pneg %p255
    %p262 = scmp.eq.s32.totalorder %s16, 1
    %p263 = por %p261, %p262
    %p264 = scmp.ne.s32.totalorder %s256, %s259
    %p265 = scmp.eq.s32.totalorder %s16, 0
    %p266 = por %p264, %p265
    %p267 = scmp.ne.s32.totalorder %s256, %s259
    %p268 = scmp.eq.s32.totalorder %s21, 1
    %p269 = por %p267, %p268
    %p270 = scmp.ne.s32.totalorder %s259, %s260
    %p271 = scmp.eq.s32.totalorder %s21, 0
    %p272 = por %p270, %p271
    %p273 = scmp.ne.s32.totalorder %s259, %s260
    %p274 = scmp.eq.s32.totalorder %s22, 1
    %p275 = por %p273, %p274
    %p277 = scmp.ne.s32.totalorder %s260, %s276
    %p278 = scmp.eq.s32.totalorder %s22, 0
    %p279 = por %p277, %p278
    %p280 = scmp.le.s32.totalorder 1, %s16
    %p281 = scmp.lt.s32.totalorder %s16, 3
    %p282 = pnand %p280, %p281
    %p283 = pneg %p282
    // Predicated region
    $region9: #{gci_forward.6} parent=5 // pred_check
      _
    $region10: #{gci_forward.6} parent=5 // pred_check_branch
      %285 = sbr.rel (%p282) target = $region12
    $region11: #{gci_forward.6} parent=5 // pred_region
      %s286 = ssub.s32 %s16, 1
      // Predicated region
      $region13: #{gci_forward.6} parent=11 // pred_check
        %p287 = pneg %p77
      $region14: #{gci_forward.6} parent=11 // pred_check_branch
        %289 = sbr.rel (%p287) target = $region16
      $region15: #{gci_forward.6} parent=11 // pred_region
        _
      $region16: #{gci_forward.6} parent=11 // pred_fallthru
        _
      // Predicated region
      $region17: #{gci_forward.6} parent=11 // pred_check
        %p290 = pneg %p98
      $region18: #{gci_forward.6} parent=11 // pred_check_branch
        %292 = sbr.rel (%p290) target = $region20
      $region19: #{gci_forward.6} parent=11 // pred_region
        _
      $region20: #{gci_forward.6} parent=11 // pred_fallthru
        _
      // Predicated region
      $region21: #{gci_forward.6} parent=11 // pred_check
        %p293 = pneg %p119
      $region22: #{gci_forward.6} parent=11 // pred_check_branch
        %295 = sbr.rel (%p293) target = $region24
      $region23: #{gci_forward.6} parent=11 // pred_region
        _
      $region24: #{gci_forward.6} parent=11 // pred_fallthru
        _
      // Predicated region
      $region25: #{gci_forward.6} parent=11 // pred_check
        %p296 = pneg %p140
      $region26: #{gci_forward.6} parent=11 // pred_check_branch
        %298 = sbr.rel (%p296) target = $region28
      $region27: #{gci_forward.6} parent=11 // pred_region
        _
      $region28: #{gci_forward.6} parent=11 // pred_fallthru
        _
    $region12: #{gci_forward.6} parent=5 // pred_fallthru
      _
    %p299 = scmp.lt.s32.totalorder %s16, 2
    // Predicated region
    $region29: #{gci_forward.6} parent=5 // pred_check
      %p300 = pneg %p299
    $region30: #{gci_forward.6} parent=5 // pred_check_branch
      %302 = sbr.rel (%p300) target = $region32
    $region31: #{gci_forward.6} parent=5 // pred_region
      // Predicated region
      $region33: #{gci_forward.6} parent=31 // pred_check
        %p303 = pneg %p50
      $region34: #{gci_forward.6} parent=31 // pred_check_branch
        %305 = sbr.rel (%p303) target = $region36
      $region35: #{gci_forward.6} parent=31 // pred_region
        %s306 = smul.u32 8, %s24
        %p307 = scmp.lt.s32.totalorder %s23, 1
        %s308 = scalar_select %p307, %s23, 1
        %p309 = scmp.lt.s32.totalorder %s306, 7
        %s310 = scalar_select %p309, %s306, 7
        %s311 = smul.addr %s310, 2
        %s312 = smul.addr %s308, 16
        %s313 = sadd.s32 %s311, %s312
        %s314 = smul.addr %s313, 4
        %s315 = scalar_lea.vmem %s0, %s314
        %s316 = smul.u32 8, %s24
      $region36: #{gci_forward.6} parent=31 // pred_fallthru
        _
      // Predicated region
      $region37: #{gci_forward.6} parent=31 // pred_check
        %p317 = pneg %p160
      $region38: #{gci_forward.6} parent=31 // pred_check_branch
        %319 = sbr.rel (%p317) target = $region40
      $region39: #{gci_forward.6} parent=31 // pred_region
        %p320 = scmp.lt.s32.totalorder %s23, 1
        %s321 = scalar_select %p320, %s23, 1
        %s322 = smul.addr %s321, 2
        %s323 = scalar_lea.vmem %s5, %s322
      $region40: #{gci_forward.6} parent=31 // pred_fallthru
        _
      // Predicated region
      $region41: #{gci_forward.6} parent=31 // pred_check
        %p324 = pneg %p186
      $region42: #{gci_forward.6} parent=31 // pred_check_branch
        %326 = sbr.rel (%p324) target = $region44
      $region43: #{gci_forward.6} parent=31 // pred_region
        %p327 = scmp.lt.s32.totalorder %s23, 1
        %s328 = scalar_select %p327, %s23, 1
        %s329 = smul.addr %s328, 2
        %s330 = scalar_lea.vmem %s6, %s329
      $region44: #{gci_forward.6} parent=31 // pred_fallthru
        _
    $region32: #{gci_forward.6} parent=5 // pred_fallthru
      _
    %p331 = scmp.le.s32.totalorder 1, %s16
    %p332 = scmp.lt.s32.totalorder %s16, 3
    %p333 = pnand %p331, %p332
    %p334 = pneg %p333
    // Predicated region
    $region45: #{gci_forward.6} parent=5 // pred_check
      _
    $region46: #{gci_forward.6} parent=5 // pred_check_branch
      %336 = sbr.rel (%p333) target = $region48
    $region47: #{gci_forward.6} parent=5 // pred_region
      %s337 = ssub.s32 %s16, 1
      %s338 = smul.u32 8, %s26
      %p339 = scmp.lt.s32.totalorder %s25, 1
      %s340 = scalar_select %p339, %s25, 1
      %p341 = scmp.lt.s32.totalorder %s338, 7
      %s342 = scalar_select %p341, %s338, 7
      %s343 = smul.addr %s342, 2
      %s344 = smul.addr %s340, 16
      %s345 = sadd.s32 %s343, %s344
      %s346 = smul.addr %s345, 4
      %s347 = scalar_lea.vmem %s0, %s346
      %p348 = pneg %p56
      %p349 = pneg %p53
      %p350 = pneg %p77
      %p351 = pneg %p74
      %p352 = pneg %p98
      %p353 = pneg %p95
      %p354 = pneg %p119
      %p355 = pneg %p116
      %p356 = pneg %p140
      %p357 = pneg %p137
      %p358 = scmp.lt.s32.totalorder %s25, 1
      %s359 = scalar_select %p358, %s25, 1
      %s360 = smul.addr %s359, 2
      %s361 = scalar_lea.vmem %s5, %s360
      %p362 = pneg %p166
      %p363 = pneg %p163
      %p364 = scmp.lt.s32.totalorder %s25, 1
      %s365 = scalar_select %p364, %s25, 1
      %s366 = smul.addr %s365, 2
      %s367 = scalar_lea.vmem %s6, %s366
      %p368 = pneg %p192
      %p369 = pneg %p189
      %p370 = pneg %p220
      %p371 = pneg %p217
      %s372 = smul.u32 8, %s26
      %p373 = scmp.lt.s32.totalorder %s25, 1
      %s374 = scalar_select %p373, %s25, 1
      %p375 = scmp.lt.s32.totalorder %s372, 7
      %s376 = scalar_select %p375, %s372, 7
      %s377 = smul.addr %s376, 2
      %s378 = smul.addr %s374, 16
      %s379 = sadd.s32 %s377, %s378
      %s380 = smul.addr %s379, 8
      %s381 = scalar_lea.vmem %s7, %s380
      %p382 = pneg %p246
      %p383 = pneg %p243
      %p384 = scmp.lt.s32.totalorder %s25, 1
      %s385 = scalar_select %p384, %s25, 1
      %s386 = smul.addr %s385, 2
      %s387 = scalar_lea.vmem %s8, %s386
      %p388 = pneg %p272
      %p389 = pneg %p269
      %p390 = scmp.lt.s32.totalorder %s25, 1
      %s391 = scalar_select %p390, %s25, 1
      %s392 = smul.addr %s391, 2
      %s393 = scalar_lea.vmem %s9, %s392
      %s394 = smul.u32 8, %s26
      %p395 = scmp.lt.s32.totalorder %s25, 1
      %s396 = scalar_select %p395, %s25, 1
      %p397 = scmp.lt.s32.totalorder %s394, 7
      %s398 = scalar_select %p397, %s394, 7
      %s399 = smul.addr %s398, 2
      %s400 = smul.addr %s396, 16
      %s401 = sadd.s32 %s399, %s400
      %s402 = smul.addr %s401, 4
      %s403 = scalar_lea.vmem %s0, %s402
      %s404 = smul.u32 8, %s26
      %p405 = scmp.lt.s32.totalorder %s25, 1
      %s406 = scalar_select %p405, %s25, 1
      %s407 = smul.addr %s406, 2
      %s408 = scalar_lea.vmem %s5, %s407
      %p409 = scmp.lt.s32.totalorder %s25, 1
      %s410 = scalar_select %p409, %s25, 1
      %s411 = smul.addr %s410, 2
      %s412 = scalar_lea.vmem %s6, %s411
      %s413 = smul.u32 8, %s26
      %p414 = scmp.lt.s32.totalorder %s25, 1
      %s415 = scalar_select %p414, %s25, 1
      %p416 = scmp.lt.s32.totalorder %s413, 7
      %s417 = scalar_select %p416, %s413, 7
      %s418 = smul.addr %s417, 2
      %s419 = smul.addr %s415, 16
      %s420 = sadd.s32 %s418, %s419
      %s421 = smul.addr %s420, 8
      %s422 = scalar_lea.vmem %s7, %s421
      %s423 = smul.u32 8, %s26
      %p424 = scmp.lt.s32.totalorder %s25, 1
      %s425 = scalar_select %p424, %s25, 1
      %s426 = smul.addr %s425, 2
      %s427 = scalar_lea.vmem %s8, %s426
      %p428 = scmp.lt.s32.totalorder %s25, 1
      %s429 = scalar_select %p428, %s25, 1
      %s430 = smul.addr %s429, 2
      %s431 = scalar_lea.vmem %s9, %s430
      %p432 = scmp.eq.s32.totalorder %s26, 0
      // Predicated region
      $region49: #{gci_forward.6} parent=47 // pred_check
        %p433 = pneg %p432
      $region50: #{gci_forward.6} parent=47 // pred_check_branch
        %435 = sbr.rel (%p433) target = $region52
      $region51: #{gci_forward.6} parent=47 // pred_region
        %v436 = vlaneseq
        %vm437 = vcmp.ge.s32.totalorder %v436, 0
        %vm438 = vcmp.lt.s32.totalorder %v436, 256
        %vm439 = vmand %vm437, %vm438
        %440 = vst.msk [vmem:[%s427] sm:$0x3] %vm439, 0.0
        %441 = vst.msk [vmem:[%s431] sm:$0x3] %vm439, 0.0
      $region52: #{gci_forward.6} parent=47 // pred_fallthru
        _
      %v442 = vld [vmem:[%s403] sm:$0xff]
      %v443 = vld [vmem:[%s403 + $0x8] sm:$0xff]
      %v444 = vld [vmem:[%s403 + $0x10] sm:$0xff]
      %v445 = vld [vmem:[%s403 + $0x18] sm:$0xff]
      %v446 = vld [vmem:[%s403 + $0x20] sm:$0xff]
      %v447 = vld [vmem:[%s403 + $0x28] sm:$0xff]
      %v448 = vld [vmem:[%s403 + $0x30] sm:$0xff]
      %v449 = vld [vmem:[%s403 + $0x38] sm:$0xff]
      %v450 = vld [vmem:[%s1] sm:$0xff]
      %v451 = vld [vmem:[%s1 + $0x8] sm:$0xff]
      %v452 = vld [vmem:[%s1 + $0x10] sm:$0xff]
      %v453 = vld [vmem:[%s1 + $0x18] sm:$0xff]
      %v454 = vld [vmem:[%s1 + $0x20] sm:$0xff]
      %v455 = vld [vmem:[%s1 + $0x28] sm:$0xff]
      %v456 = vld [vmem:[%s1 + $0x30] sm:$0xff]
      %v457 = vld [vmem:[%s1 + $0x38] sm:$0xff]
      %v458 = vld [vmem:[%s1 + $0x40] sm:$0xff]
      %v459 = vld [vmem:[%s1 + $0x48] sm:$0xff]
      %v460 = vld [vmem:[%s1 + $0x50] sm:$0xff]
      %v461 = vld [vmem:[%s1 + $0x58] sm:$0xff]
      %v462 = vld [vmem:[%s1 + $0x60] sm:$0xff]
      %v463 = vld [vmem:[%s1 + $0x68] sm:$0xff]
      %v464 = vld [vmem:[%s1 + $0x70] sm:$0xff]
      %v465 = vld [vmem:[%s1 + $0x78] sm:$0xff]
      %v466 = vld [vmem:[%s1 + $0x80] sm:$0xff]
      %v467 = vld [vmem:[%s1 + $0x88] sm:$0xff]
      %v468 = vld [vmem:[%s1 + $0x90] sm:$0xff]
      %v469 = vld [vmem:[%s1 + $0x98] sm:$0xff]
      %v470 = vld [vmem:[%s1 + $0xa0] sm:$0xff]
      %v471 = vld [vmem:[%s1 + $0xa8] sm:$0xff]
      %v472 = vld [vmem:[%s1 + $0xb0] sm:$0xff]
      %v473 = vld [vmem:[%s1 + $0xb8] sm:$0xff]
      %v474 = vld [vmem:[%s1 + $0xc0] sm:$0xff]
      %v475 = vld [vmem:[%s1 + $0xc8] sm:$0xff]
      %v476 = vld [vmem:[%s1 + $0xd0] sm:$0xff]
      %v477 = vld [vmem:[%s1 + $0xd8] sm:$0xff]
      %v478 = vld [vmem:[%s1 + $0xe0] sm:$0xff]
      %v479 = vld [vmem:[%s1 + $0xe8] sm:$0xff]
      %v480 = vld [vmem:[%s1 + $0xf0] sm:$0xff]
      %v481 = vld [vmem:[%s1 + $0xf8] sm:$0xff]
      %v490 = vunpack.c.l.b16 %v442
      %v491 = vunpack.c.h.b16 %v442
      %v492 = vunpack.c.l.b16 %v443
      %v493 = vunpack.c.h.b16 %v443
      %v494 = vunpack.c.l.b16 %v444
      %v495 = vunpack.c.h.b16 %v444
      %v496 = vunpack.c.l.b16 %v445
      %v497 = vunpack.c.h.b16 %v445
      %v498 = vunpack.c.l.b16 %v446
      %v499 = vunpack.c.h.b16 %v446
      %v500 = vunpack.c.l.b16 %v447
      %v501 = vunpack.c.h.b16 %v447
      %v502 = vunpack.c.l.b16 %v448
      %v503 = vunpack.c.h.b16 %v448
      %v504 = vunpack.c.l.b16 %v449
      %v505 = vunpack.c.h.b16 %v449
      %v506 = vpack.c.b16 %v492, %v490
      %v507 = vpack.c.b16 %v493, %v491
      %v508 = vpack.c.b16 %v496, %v494
      %v509 = vpack.c.b16 %v497, %v495
      %v510 = vpack.c.b16 %v500, %v498
      %v511 = vpack.c.b16 %v501, %v499
      %v512 = vpack.c.b16 %v504, %v502
      %v513 = vpack.c.b16 %v505, %v503
      %v554 = vunpack.c.l.b16 %v450
      %v555 = vunpack.c.h.b16 %v450
      %v556 = vunpack.c.l.b16 %v451
      %v557 = vunpack.c.h.b16 %v451
      %v558 = vunpack.c.l.b16 %v452
      %v559 = vunpack.c.h.b16 %v452
      %v560 = vunpack.c.l.b16 %v453
      %v561 = vunpack.c.h.b16 %v453
      %v562 = vunpack.c.l.b16 %v454
      %v563 = vunpack.c.h.b16 %v454
      %v564 = vunpack.c.l.b16 %v455
      %v565 = vunpack.c.h.b16 %v455
      %v566 = vunpack.c.l.b16 %v456
      %v567 = vunpack.c.h.b16 %v456
      %v568 = vunpack.c.l.b16 %v457
      %v569 = vunpack.c.h.b16 %v457
      %v570 = vunpack.c.l.b16 %v458
      %v571 = vunpack.c.h.b16 %v458
      %v572 = vunpack.c.l.b16 %v459
      %v573 = vunpack.c.h.b16 %v459
      %v574 = vunpack.c.l.b16 %v460
      %v575 = vunpack.c.h.b16 %v460
      %v576 = vunpack.c.l.b16 %v461
      %v577 = vunpack.c.h.b16 %v461
      %v578 = vunpack.c.l.b16 %v462
      %v579 = vunpack.c.h.b16 %v462
      %v580 = vunpack.c.l.b16 %v463
      %v581 = vunpack.c.h.b16 %v463
      %v582 = vunpack.c.l.b16 %v464
      %v583 = vunpack.c.h.b16 %v464
      %v584 = vunpack.c.l.b16 %v465
      %v585 = vunpack.c.h.b16 %v465
      %v586 = vunpack.c.l.b16 %v466
      %v587 = vunpack.c.h.b16 %v466
      %v588 = vunpack.c.l.b16 %v467
      %v589 = vunpack.c.h.b16 %v467
      %v590 = vunpack.c.l.b16 %v468
      %v591 = vunpack.c.h.b16 %v468
      %v592 = vunpack.c.l.b16 %v469
      %v593 = vunpack.c.h.b16 %v469
      %v594 = vunpack.c.l.b16 %v470
      %v595 = vunpack.c.h.b16 %v470
      %v596 = vunpack.c.l.b16 %v471
      %v597 = vunpack.c.h.b16 %v471
      %v598 = vunpack.c.l.b16 %v472
      %v599 = vunpack.c.h.b16 %v472
      %v600 = vunpack.c.l.b16 %v473
      %v601 = vunpack.c.h.b16 %v473
      %v602 = vunpack.c.l.b16 %v474
      %v603 = vunpack.c.h.b16 %v474
      %v604 = vunpack.c.l.b16 %v475
      %v605 = vunpack.c.h.b16 %v475
      %v606 = vunpack.c.l.b16 %v476
      %v607 = vunpack.c.h.b16 %v476
      %v608 = vunpack.c.l.b16 %v477
      %v609 = vunpack.c.h.b16 %v477
      %v610 = vunpack.c.l.b16 %v478
      %v611 = vunpack.c.h.b16 %v478
      %v612 = vunpack.c.l.b16 %v479
      %v613 = vunpack.c.h.b16 %v479
      %v614 = vunpack.c.l.b16 %v480
      %v615 = vunpack.c.h.b16 %v480
      %v616 = vunpack.c.l.b16 %v481
      %v617 = vunpack.c.h.b16 %v481
      %v618 = vpack.c.b16 %v556, %v554
      %v619 = vpack.c.b16 %v557, %v555
      %v620 = vpack.c.b16 %v560, %v558
      %v621 = vpack.c.b16 %v561, %v559
      %v622 = vpack.c.b16 %v564, %v562
      %v623 = vpack.c.b16 %v565, %v563
      %v624 = vpack.c.b16 %v568, %v566
      %v625 = vpack.c.b16 %v569, %v567
      %v626 = vpack.c.b16 %v572, %v570
      %v627 = vpack.c.b16 %v573, %v571
      %v628 = vpack.c.b16 %v576, %v574
      %v629 = vpack.c.b16 %v577, %v575
      %v630 = vpack.c.b16 %v580, %v578
      %v631 = vpack.c.b16 %v581, %v579
      %v632 = vpack.c.b16 %v584, %v582
      %v633 = vpack.c.b16 %v585, %v583
      %v634 = vpack.c.b16 %v588, %v586
      %v635 = vpack.c.b16 %v589, %v587
      %v636 = vpack.c.b16 %v592, %v590
      %v637 = vpack.c.b16 %v593, %v591
      %v638 = vpack.c.b16 %v596, %v594
      %v639 = vpack.c.b16 %v597, %v595
      %v640 = vpack.c.b16 %v600, %v598
      %v641 = vpack.c.b16 %v601, %v599
      %v642 = vpack.c.b16 %v604, %v602
      %v643 = vpack.c.b16 %v605, %v603
      %v644 = vpack.c.b16 %v608, %v606
      %v645 = vpack.c.b16 %v609, %v607
      %v646 = vpack.c.b16 %v612, %v610
      %v647 = vpack.c.b16 %v613, %v611
      %v648 = vpack.c.b16 %v616, %v614
      %v649 = vpack.c.b16 %v617, %v615
      %682 = vmatprep.subr.bf16.mxu0 %v619
      %683 = vmatpush1.bf16.msra.mxu0 %v618
      %684 = vmatprep.subr.bf16.mxu0 %v621
      %685 = vmatpush1.bf16.msra.mxu0 %v620
      %686 = vmatprep.subr.bf16.mxu0 %v623
      %687 = vmatpush1.bf16.msra.mxu0 %v622
      %688 = vmatprep.subr.bf16.mxu0 %v625
      %689 = vmatpush1.bf16.msra.mxu0 %v624
      %690 = vmatprep.subr.bf16.mxu0 %v627
      %691 = vmatpush1.bf16.msra.mxu0 %v626
      %692 = vmatprep.subr.bf16.mxu0 %v629
      %693 = vmatpush1.bf16.msra.mxu0 %v628
      %694 = vmatprep.subr.bf16.mxu0 %v631
      %695 = vmatpush1.bf16.msra.mxu0 %v630
      %696 = vmatprep.subr.bf16.mxu0 %v633
      %697 = vmatpush1.bf16.msra.mxu0 %v632
      %698 = vmatprep.subr.bf16.mxu0 %v635
      %699 = vmatpush1.bf16.msra.mxu0 %v634
      %700 = vmatprep.subr.bf16.mxu0 %v637
      %701 = vmatpush1.bf16.msra.mxu0 %v636
      %702 = vmatprep.subr.bf16.mxu0 %v639
      %703 = vmatpush1.bf16.msra.mxu0 %v638
      %704 = vmatprep.subr.bf16.mxu0 %v641
      %705 = vmatpush1.bf16.msra.mxu0 %v640
      %706 = vmatprep.subr.bf16.mxu0 %v643
      %707 = vmatpush1.bf16.msra.mxu0 %v642
      %708 = vmatprep.subr.bf16.mxu0 %v645
      %709 = vmatpush1.bf16.msra.mxu0 %v644
      %710 = vmatprep.subr.bf16.mxu0 %v647
      %711 = vmatpush1.bf16.msra.mxu0 %v646
      %712 = vmatprep.subr.bf16.mxu0 %v649
      %713 = vmatpush1.bf16.msra.mxu0 %v648
      %714 = vmatprep.mubr.bf16.mxu0 %v507
      %715 = vmatmul.mubr.bf16.gmra.mrb[0].mxu0 %v506
      %v716 = vpop.f32.mrb[0].mxu0
      %v717 = vadd.f32 0.0, %v716
      %v718 = vpop.f32.mrb[0].mxu0
      %v719 = vadd.f32 0.0, %v718
      %v720 = vpop.f32.mrb[0].mxu0
      %v721 = vadd.f32 0.0, %v720
      %v722 = vpop.f32.mrb[0].mxu0
      %v723 = vadd.f32 0.0, %v722
      %724 = vmatprep.mubr.bf16.mxu0 %v509
      %725 = vmatmul.mubr.bf16.gmra.mrb[0].mxu0 %v508
      %v726 = vpop.f32.mrb[0].mxu0
      %v727 = vadd.f32 0.0, %v726
      %v728 = vpop.f32.mrb[0].mxu0
      %v729 = vadd.f32 0.0, %v728
      %v730 = vpop.f32.mrb[0].mxu0
      %v731 = vadd.f32 0.0, %v730
      %v732 = vpop.f32.mrb[0].mxu0
      %v733 = vadd.f32 0.0, %v732
      %734 = vmatprep.mubr.bf16.mxu0 %v511
      %735 = vmatmul.mubr.bf16.gmra.mrb[0].mxu0 %v510
      %v736 = vpop.f32.mrb[0].mxu0
      %v737 = vadd.f32 0.0, %v736
      %v738 = vpop.f32.mrb[0].mxu0
      %v739 = vadd.f32 0.0, %v738
      %v740 = vpop.f32.mrb[0].mxu0
      %v741 = vadd.f32 0.0, %v740
      %v742 = vpop.f32.mrb[0].mxu0
      %v743 = vadd.f32 0.0, %v742
      %744 = vmatprep.mubr.bf16.mxu0 %v513
      %745 = vmatmul.mubr.bf16.gmra.mrb[0].mxu0 %v512
      %v746 = vpop.f32.mrb[0].mxu0
      %v747 = vadd.f32 0.0, %v746
      %v748 = vpop.f32.mrb[0].mxu0
      %v749 = vadd.f32 0.0, %v748
      %v750 = vpop.f32.mrb[0].mxu0
      %v751 = vadd.f32 0.0, %v750
      %v752 = vpop.f32.mrb[0].mxu0
      %v753 = vadd.f32 0.0, %v752
      %754 = vdwg.mxu0
      %v755 = vld [vmem:[%s3] sm:$0x3]
      %v757 = vlaneseq
      %v758 = vshrl.u32 %v757, 7
      %v759 = vsub.s32 0, %v758
      %v760 = vrot.slane %v755, %v759
      %v761 = vlaneseq
      %v762 = vshrl.u32 %v761, 7
      %v763 = vsub.s32 1, %v762
      %v764 = vrot.slane %v755, %v763
      %v767 = vsub.f32 %v717, %v760
      %v768 = vsub.f32 %v719, %v764
      %v769 = vsub.f32 %v721, %v760
      %v770 = vsub.f32 %v723, %v764
      %v771 = vsub.f32 %v727, %v760
      %v772 = vsub.f32 %v729, %v764
      %v773 = vsub.f32 %v731, %v760
      %v774 = vsub.f32 %v733, %v764
      %v775 = vsub.f32 %v737, %v760
      %v776 = vsub.f32 %v739, %v764
      %v777 = vsub.f32 %v741, %v760
      %v778 = vsub.f32 %v743, %v764
      %v779 = vsub.f32 %v747, %v760
      %v780 = vsub.f32 %v749, %v764
      %v781 = vsub.f32 %v751, %v760
      %v782 = vsub.f32 %v753, %v764
      %v783 = vld [vmem:[%s4] sm:$0x3]
      %v785 = vlaneseq
      %v786 = vshrl.u32 %v785, 7
      %v787 = vsub.s32 0, %v786
      %v788 = vrot.slane %v783, %v787
      %v789 = vlaneseq
      %v790 = vshrl.u32 %v789, 7
      %v791 = vsub.s32 1, %v790
      %v792 = vrot.slane %v783, %v791
      %v795 = vmul.f32 %v767, %v788
      %v796 = vmul.f32 %v768, %v792
      %v797 = vmul.f32 %v769, %v788
      %v798 = vmul.f32 %v770, %v792
      %v799 = vmul.f32 %v771, %v788
      %v800 = vmul.f32 %v772, %v792
      %v801 = vmul.f32 %v773, %v788
      %v802 = vmul.f32 %v774, %v792
      %v803 = vmul.f32 %v775, %v788
      %v804 = vmul.f32 %v776, %v792
      %v805 = vmul.f32 %v777, %v788
      %v806 = vmul.f32 %v778, %v792
      %v807 = vmul.f32 %v779, %v788
      %v808 = vmul.f32 %v780, %v792
      %v809 = vmul.f32 %v781, %v788
      %v810 = vmul.f32 %v782, %v792
      %v811 = vld [vmem:[%s408] sm:$0x3]
      %v813 = vlaneseq
      %v814 = vshrl.u32 %v813, 7
      %v815 = vsub.s32 0, %v814
      %v816 = vrot.slane %v811, %v815
      %v817 = vlaneseq
      %v818 = vshrl.u32 %v817, 7
      %v819 = vsub.s32 1, %v818
      %v820 = vrot.slane %v811, %v819
      %v823 = vmul.f32 %v795, %v816
      %v824 = vmul.f32 %v796, %v820
      %v825 = vmul.f32 %v797, %v816
      %v826 = vmul.f32 %v798, %v820
      %v827 = vmul.f32 %v799, %v816
      %v828 = vmul.f32 %v800, %v820
      %v829 = vmul.f32 %v801, %v816
      %v830 = vmul.f32 %v802, %v820
      %v831 = vmul.f32 %v803, %v816
      %v832 = vmul.f32 %v804, %v820
      %v833 = vmul.f32 %v805, %v816
      %v834 = vmul.f32 %v806, %v820
      %v835 = vmul.f32 %v807, %v816
      %v836 = vmul.f32 %v808, %v820
      %v837 = vmul.f32 %v809, %v816
      %v838 = vmul.f32 %v810, %v820
      %v839 = vld [vmem:[%s412] sm:$0x3]
      %v841 = vlaneseq
      %v842 = vshrl.u32 %v841, 7
      %v843 = vsub.s32 0, %v842
      %v844 = vrot.slane %v839, %v843
      %v845 = vlaneseq
      %v846 = vshrl.u32 %v845, 7
      %v847 = vsub.s32 1, %v846
      %v848 = vrot.slane %v839, %v847
      %v851 = vadd.f32 %v823, %v844
      %v852 = vadd.f32 %v824, %v848
      %v853 = vadd.f32 %v825, %v844
      %v854 = vadd.f32 %v826, %v848
      %v855 = vadd.f32 %v827, %v844
      %v856 = vadd.f32 %v828, %v848
      %v857 = vadd.f32 %v829, %v844
      %v858 = vadd.f32 %v830, %v848
      %v859 = vadd.f32 %v831, %v844
      %v860 = vadd.f32 %v832, %v848
      %v861 = vadd.f32 %v833, %v844
      %v862 = vadd.f32 %v834, %v848
      %v863 = vadd.f32 %v835, %v844
      %v864 = vadd.f32 %v836, %v848
      %v865 = vadd.f32 %v837, %v844
      %v866 = vadd.f32 %v838, %v848
      %v867 = vmax.f32 %v851, 0.0
      %v868 = vmax.f32 %v852, 0.0
      %v869 = vmax.f32 %v853, 0.0
      %v870 = vmax.f32 %v854, 0.0
      %v871 = vmax.f32 %v855, 0.0
      %v872 = vmax.f32 %v856, 0.0
      %v873 = vmax.f32 %v857, 0.0
      %v874 = vmax.f32 %v858, 0.0
      %v875 = vmax.f32 %v859, 0.0
      %v876 = vmax.f32 %v860, 0.0
      %v877 = vmax.f32 %v861, 0.0
      %v878 = vmax.f32 %v862, 0.0
      %v879 = vmax.f32 %v863, 0.0
      %v880 = vmax.f32 %v864, 0.0
      %v881 = vmax.f32 %v865, 0.0
      %v882 = vmax.f32 %v866, 0.0
      %v883 = vpack.c.bf16 %v869, %v867
      %v884 = vpack.c.bf16 %v870, %v868
      %v885 = vpack.c.bf16 %v873, %v871
      %v886 = vpack.c.bf16 %v874, %v872
      %v887 = vpack.c.bf16 %v877, %v875
      %v888 = vpack.c.bf16 %v878, %v876
      %v889 = vpack.c.bf16 %v881, %v879
      %v890 = vpack.c.bf16 %v882, %v880
      %v891 = vld [vmem:[%s2] sm:$0xff]
      %v892 = vld [vmem:[%s2 + $0x8] sm:$0xff]
      %v893 = vld [vmem:[%s2 + $0x10] sm:$0xff]
      %v894 = vld [vmem:[%s2 + $0x18] sm:$0xff]
      %v895 = vld [vmem:[%s2 + $0x20] sm:$0xff]
      %v896 = vld [vmem:[%s2 + $0x28] sm:$0xff]
      %v897 = vld [vmem:[%s2 + $0x30] sm:$0xff]
      %v898 = vld [vmem:[%s2 + $0x38] sm:$0xff]
      %v899 = vld [vmem:[%s2 + $0x40] sm:$0xff]
      %v900 = vld [vmem:[%s2 + $0x48] sm:$0xff]
      %v901 = vld [vmem:[%s2 + $0x50] sm:$0xff]
      %v902 = vld [vmem:[%s2 + $0x58] sm:$0xff]
      %v903 = vld [vmem:[%s2 + $0x60] sm:$0xff]
      %v904 = vld [vmem:[%s2 + $0x68] sm:$0xff]
      %v905 = vld [vmem:[%s2 + $0x70] sm:$0xff]
      %v906 = vld [vmem:[%s2 + $0x78] sm:$0xff]
      %v907 = vld [vmem:[%s2 + $0x80] sm:$0xff]
      %v908 = vld [vmem:[%s2 + $0x88] sm:$0xff]
      %v909 = vld [vmem:[%s2 + $0x90] sm:$0xff]
      %v910 = vld [vmem:[%s2 + $0x98] sm:$0xff]
      %v911 = vld [vmem:[%s2 + $0xa0] sm:$0xff]
      %v912 = vld [vmem:[%s2 + $0xa8] sm:$0xff]
      %v913 = vld [vmem:[%s2 + $0xb0] sm:$0xff]
      %v914 = vld [vmem:[%s2 + $0xb8] sm:$0xff]
      %v915 = vld [vmem:[%s2 + $0xc0] sm:$0xff]
      %v916 = vld [vmem:[%s2 + $0xc8] sm:$0xff]
      %v917 = vld [vmem:[%s2 + $0xd0] sm:$0xff]
      %v918 = vld [vmem:[%s2 + $0xd8] sm:$0xff]
      %v919 = vld [vmem:[%s2 + $0xe0] sm:$0xff]
      %v920 = vld [vmem:[%s2 + $0xe8] sm:$0xff]
      %v921 = vld [vmem:[%s2 + $0xf0] sm:$0xff]
      %v922 = vld [vmem:[%s2 + $0xf8] sm:$0xff]
      %v955 = vunpack.c.l.b16 %v891
      %v956 = vunpack.c.h.b16 %v891
      %v957 = vunpack.c.l.b16 %v892
      %v958 = vunpack.c.h.b16 %v892
      %v959 = vunpack.c.l.b16 %v893
      %v960 = vunpack.c.h.b16 %v893
      %v961 = vunpack.c.l.b16 %v894
      %v962 = vunpack.c.h.b16 %v894
      %v963 = vunpack.c.l.b16 %v895
      %v964 = vunpack.c.h.b16 %v895
      %v965 = vunpack.c.l.b16 %v896
      %v966 = vunpack.c.h.b16 %v896
      %v967 = vunpack.c.l.b16 %v897
      %v968 = vunpack.c.h.b16 %v897
      %v969 = vunpack.c.l.b16 %v898
      %v970 = vunpack.c.h.b16 %v898
      %v971 = vunpack.c.l.b16 %v899
      %v972 = vunpack.c.h.b16 %v899
      %v973 = vunpack.c.l.b16 %v900
      %v974 = vunpack.c.h.b16 %v900
      %v975 = vunpack.c.l.b16 %v901
      %v976 = vunpack.c.h.b16 %v901
      %v977 = vunpack.c.l.b16 %v902
      %v978 = vunpack.c.h.b16 %v902
      %v979 = vunpack.c.l.b16 %v903
      %v980 = vunpack.c.h.b16 %v903
      %v981 = vunpack.c.l.b16 %v904
      %v982 = vunpack.c.h.b16 %v904
      %v983 = vunpack.c.l.b16 %v905
      %v984 = vunpack.c.h.b16 %v905
      %v985 = vunpack.c.l.b16 %v906
      %v986 = vunpack.c.h.b16 %v906
      %v987 = vunpack.c.l.b16 %v907
      %v988 = vunpack.c.h.b16 %v907
      %v989 = vunpack.c.l.b16 %v908
      %v990 = vunpack.c.h.b16 %v908
      %v991 = vunpack.c.l.b16 %v909
      %v992 = vunpack.c.h.b16 %v909
      %v993 = vunpack.c.l.b16 %v910
      %v994 = vunpack.c.h.b16 %v910
      %v995 = vunpack.c.l.b16 %v911
      %v996 = vunpack.c.h.b16 %v911
      %v997 = vunpack.c.l.b16 %v912
      %v998 = vunpack.c.h.b16 %v912
      %v999 = vunpack.c.l.b16 %v913
      %v1000 = vunpack.c.h.b16 %v913
      %v1001 = vunpack.c.l.b16 %v914
      %v1002 = vunpack.c.h.b16 %v914
      %v1003 = vunpack.c.l.b16 %v915
      %v1004 = vunpack.c.h.b16 %v915
      %v1005 = vunpack.c.l.b16 %v916
      %v1006 = vunpack.c.h.b16 %v916
      %v1007 = vunpack.c.l.b16 %v917
      %v1008 = vunpack.c.h.b16 %v917
      %v1009 = vunpack.c.l.b16 %v918
      %v1010 = vunpack.c.h.b16 %v918
      %v1011 = vunpack.c.l.b16 %v919
      %v1012 = vunpack.c.h.b16 %v919
      %v1013 = vunpack.c.l.b16 %v920
      %v1014 = vunpack.c.h.b16 %v920
      %v1015 = vunpack.c.l.b16 %v921
      %v1016 = vunpack.c.h.b16 %v921
      %v1017 = vunpack.c.l.b16 %v922
      %v1018 = vunpack.c.h.b16 %v922
      %v1019 = vpack.c.b16 %v957, %v955
      %v1020 = vpack.c.b16 %v958, %v956
      %v1021 = vpack.c.b16 %v961, %v959
      %v1022 = vpack.c.b16 %v962, %v960
      %v1023 = vpack.c.b16 %v965, %v963
      %v1024 = vpack.c.b16 %v966, %v964
      %v1025 = vpack.c.b16 %v969, %v967
      %v1026 = vpack.c.b16 %v970, %v968
      %v1027 = vpack.c.b16 %v973, %v971
      %v1028 = vpack.c.b16 %v974, %v972
      %v1029 = vpack.c.b16 %v977, %v975
      %v1030 = vpack.c.b16 %v978, %v976
      %v1031 = vpack.c.b16 %v981, %v979
      %v1032 = vpack.c.b16 %v982, %v980
      %v1033 = vpack.c.b16 %v985, %v983
      %v1034 = vpack.c.b16 %v986, %v984
      %v1035 = vpack.c.b16 %v989, %v987
      %v1036 = vpack.c.b16 %v990, %v988
      %v1037 = vpack.c.b16 %v993, %v991
      %v1038 = vpack.c.b16 %v994, %v992
      %v1039 = vpack.c.b16 %v997, %v995
      %v1040 = vpack.c.b16 %v998, %v996
      %v1041 = vpack.c.b16 %v1001, %v999
      %v1042 = vpack.c.b16 %v1002, %v1000
      %v1043 = vpack.c.b16 %v1005, %v1003
      %v1044 = vpack.c.b16 %v1006, %v1004
      %v1045 = vpack.c.b16 %v1009, %v1007
      %v1046 = vpack.c.b16 %v1010, %v1008
      %v1047 = vpack.c.b16 %v1013, %v1011
      %v1048 = vpack.c.b16 %v1014, %v1012
      %v1049 = vpack.c.b16 %v1017, %v1015
      %v1050 = vpack.c.b16 %v1018, %v1016
      %1083 = vmatprep.subr.bf16.mxu0 %v1020
      %1084 = vmatpush1.bf16.msra.mxu0 %v1019
      %1085 = vmatprep.subr.bf16.mxu0 %v1022
      %1086 = vmatpush1.bf16.msra.mxu0 %v1021
      %1087 = vmatprep.subr.bf16.mxu0 %v1024
      %1088 = vmatpush1.bf16.msra.mxu0 %v1023
      %1089 = vmatprep.subr.bf16.mxu0 %v1026
      %1090 = vmatpush1.bf16.msra.mxu0 %v1025
      %1091 = vmatprep.subr.bf16.mxu0 %v1028
      %1092 = vmatpush1.bf16.msra.mxu0 %v1027
      %1093 = vmatprep.subr.bf16.mxu0 %v1030
      %1094 = vmatpush1.bf16.msra.mxu0 %v1029
      %1095 = vmatprep.subr.bf16.mxu0 %v1032
      %1096 = vmatpush1.bf16.msra.mxu0 %v1031
      %1097 = vmatprep.subr.bf16.mxu0 %v1034
      %1098 = vmatpush1.bf16.msra.mxu0 %v1033
      %1099 = vmatprep.subr.bf16.mxu0 %v1036
      %1100 = vmatpush1.bf16.msra.mxu0 %v1035
      %1101 = vmatprep.subr.bf16.mxu0 %v1038
      %1102 = vmatpush1.bf16.msra.mxu0 %v1037
      %1103 = vmatprep.subr.bf16.mxu0 %v1040
      %1104 = vmatpush1.bf16.msra.mxu0 %v1039
      %1105 = vmatprep.subr.bf16.mxu0 %v1042
      %1106 = vmatpush1.bf16.msra.mxu0 %v1041
      %1107 = vmatprep.subr.bf16.mxu0 %v1044
      %1108 = vmatpush1.bf16.msra.mxu0 %v1043
      %1109 = vmatprep.subr.bf16.mxu0 %v1046
      %1110 = vmatpush1.bf16.msra.mxu0 %v1045
      %1111 = vmatprep.subr.bf16.mxu0 %v1048
      %1112 = vmatpush1.bf16.msra.mxu0 %v1047
      %1113 = vmatprep.subr.bf16.mxu0 %v1050
      %1114 = vmatpush1.bf16.msra.mxu0 %v1049
      %1115 = vmatprep.mubr.bf16.mxu0 %v884
      %1116 = vmatmul.mubr.bf16.gmra.mrb[0].mxu0 %v883
      %v1117 = vpop.f32.mrb[0].mxu0
      %v1118 = vadd.f32 0.0, %v1117
      %v1119 = vpop.f32.mrb[0].mxu0
      %v1120 = vadd.f32 0.0, %v1119
      %v1121 = vpop.f32.mrb[0].mxu0
      %v1122 = vadd.f32 0.0, %v1121
      %v1123 = vpop.f32.mrb[0].mxu0
      %v1124 = vadd.f32 0.0, %v1123
      %1125 = vmatprep.mubr.bf16.mxu0 %v886
      %1126 = vmatmul.mubr.bf16.gmra.mrb[0].mxu0 %v885
      %v1127 = vpop.f32.mrb[0].mxu0
      %v1128 = vadd.f32 0.0, %v1127
      %v1129 = vpop.f32.mrb[0].mxu0
      %v1130 = vadd.f32 0.0, %v1129
      %v1131 = vpop.f32.mrb[0].mxu0
      %v1132 = vadd.f32 0.0, %v1131
      %v1133 = vpop.f32.mrb[0].mxu0
      %v1134 = vadd.f32 0.0, %v1133
      %1135 = vmatprep.mubr.bf16.mxu0 %v888
      %1136 = vmatmul.mubr.bf16.gmra.mrb[0].mxu0 %v887
      %v1137 = vpop.f32.mrb[0].mxu0
      %v1138 = vadd.f32 0.0, %v1137
      %v1139 = vpop.f32.mrb[0].mxu0
      %v1140 = vadd.f32 0.0, %v1139
      %v1141 = vpop.f32.mrb[0].mxu0
      %v1142 = vadd.f32 0.0, %v1141
      %v1143 = vpop.f32.mrb[0].mxu0
      %v1144 = vadd.f32 0.0, %v1143
      %1145 = vmatprep.mubr.bf16.mxu0 %v890
      %1146 = vmatmul.mubr.bf16.gmra.mrb[0].mxu0 %v889
      %v1147 = vpop.f32.mrb[0].mxu0
      %v1148 = vadd.f32 0.0, %v1147
      %v1149 = vpop.f32.mrb[0].mxu0
      %v1150 = vadd.f32 0.0, %v1149
      %v1151 = vpop.f32.mrb[0].mxu0
      %v1152 = vadd.f32 0.0, %v1151
      %v1153 = vpop.f32.mrb[0].mxu0
      %v1154 = vadd.f32 0.0, %v1153
      %1155 = vdwg.mxu0
      %1156 = vst [vmem:[%s422] sm:$0xff] %v1118
      %1157 = vst [vmem:[%s422 + $0x8] sm:$0xff] %v1120
      %1158 = vst [vmem:[%s422 + $0x10] sm:$0xff] %v1122
      %1159 = vst [vmem:[%s422 + $0x18] sm:$0xff] %v1124
      %1160 = vst [vmem:[%s422 + $0x20] sm:$0xff] %v1128
      %1161 = vst [vmem:[%s422 + $0x28] sm:$0xff] %v1130
      %1162 = vst [vmem:[%s422 + $0x30] sm:$0xff] %v1132
      %1163 = vst [vmem:[%s422 + $0x38] sm:$0xff] %v1134
      %1164 = vst [vmem:[%s422 + $0x40] sm:$0xff] %v1138
      %1165 = vst [vmem:[%s422 + $0x48] sm:$0xff] %v1140
      %1166 = vst [vmem:[%s422 + $0x50] sm:$0xff] %v1142
      %1167 = vst [vmem:[%s422 + $0x58] sm:$0xff] %v1144
      %1168 = vst [vmem:[%s422 + $0x60] sm:$0xff] %v1148
      %1169 = vst [vmem:[%s422 + $0x68] sm:$0xff] %v1150
      %1170 = vst [vmem:[%s422 + $0x70] sm:$0xff] %v1152
      %1171 = vst [vmem:[%s422 + $0x78] sm:$0xff] %v1154
      %v1172 = vmul.f32 %v1118, %v1118
      %v1173 = vmul.f32 %v1120, %v1120
      %v1174 = vmul.f32 %v1122, %v1122
      %v1175 = vmul.f32 %v1124, %v1124
      %v1176 = vmul.f32 %v1128, %v1128
      %v1177 = vmul.f32 %v1130, %v1130
      %v1178 = vmul.f32 %v1132, %v1132
      %v1179 = vmul.f32 %v1134, %v1134
      %v1180 = vmul.f32 %v1138, %v1138
      %v1181 = vmul.f32 %v1140, %v1140
      %v1182 = vmul.f32 %v1142, %v1142
      %v1183 = vmul.f32 %v1144, %v1144
      %v1184 = vmul.f32 %v1148, %v1148
      %v1185 = vmul.f32 %v1150, %v1150
      %v1186 = vmul.f32 %v1152, %v1152
      %v1187 = vmul.f32 %v1154, %v1154
      %v1188 = vld [vmem:[%s427] sm:$0x3]
      %v1189 = vadd.f32 %v1118, %v1122
      %v1190 = vadd.f32 %v1189, %v1128
      %v1191 = vadd.f32 %v1190, %v1132
      %v1192 = vadd.f32 %v1191, %v1138
      %v1193 = vadd.f32 %v1192, %v1142
      %v1194 = vadd.f32 %v1193, %v1148
      %v1195 = vadd.f32 %v1194, %v1152
      %v1196 = vrot.slane %v1195, 4
      %v1197 = vadd.f32 %v1195, %v1196
      %v1198 = vrot.slane %v1197, 2
      %v1199 = vadd.f32 %v1197, %v1198
      %v1200 = vrot.slane %v1199, 1
      %v1201 = vadd.f32 %v1199, %v1200
      %v1202 = vadd.f32 %v1120, %v1124
      %v1203 = vadd.f32 %v1202, %v1130
      %v1204 = vadd.f32 %v1203, %v1134
      %v1205 = vadd.f32 %v1204, %v1140
      %v1206 = vadd.f32 %v1205, %v1144
      %v1207 = vadd.f32 %v1206, %v1150
      %v1208 = vadd.f32 %v1207, %v1154
      %v1209 = vrot.slane %v1208, 4
      %v1210 = vadd.f32 %v1208, %v1209
      %v1211 = vrot.slane %v1210, 2
      %v1212 = vadd.f32 %v1210, %v1211
      %v1213 = vrot.slane %v1212, 1
      %v1214 = vadd.f32 %v1212, %v1213
      %v1217 = vcombine.low %v1201, %v1214
      %v1219 = vunpack.c.l.s4 1966171168
      %v1220 = vunpack.c.0.s8 %v1219
      %v1221 = vlaneseq
      %v1222 = vshrl.u32 %v1221, 7
      %v1223 = vsub.s32 %v1220, %v1222
      %v1224 = vrot.slane %v1217, %v1223
      %v1226 = vunpack.c.l.s4 1966171168
      %v1227 = vunpack.c.0.s8 %v1226
      %v1228 = vlaneseq
      %v1229 = vshrl.u32 %v1228, 7
      %v1230 = vsub.s32 %v1227, %v1229
      %v1231 = vrot.slane %v1224, %v1230
      %v1233 = vadd.f32 %v1188, %v1231
      %v1234 = vlaneseq
      %vm1235 = vcmp.ge.s32.totalorder %v1234, 0
      %vm1236 = vcmp.lt.s32.totalorder %v1234, 256
      %vm1237 = vmand %vm1235, %vm1236
      %1238 = vst.msk [vmem:[%s427] sm:$0x3] %vm1237, %v1233
      %v1239 = vld [vmem:[%s431] sm:$0x3]
      %v1240 = vadd.f32 %v1172, %v1174
      %v1241 = vadd.f32 %v1240, %v1176
      %v1242 = vadd.f32 %v1241, %v1178
      %v1243 = vadd.f32 %v1242, %v1180
      %v1244 = vadd.f32 %v1243, %v1182
      %v1245 = vadd.f32 %v1244, %v1184
      %v1246 = vadd.f32 %v1245, %v1186
      %v1247 = vrot.slane %v1246, 4
      %v1248 = vadd.f32 %v1246, %v1247
      %v1249 = vrot.slane %v1248, 2
      %v1250 = vadd.f32 %v1248, %v1249
      %v1251 = vrot.slane %v1250, 1
      %v1252 = vadd.f32 %v1250, %v1251
      %v1253 = vadd.f32 %v1173, %v1175
      %v1254 = vadd.f32 %v1253, %v1177
      %v1255 = vadd.f32 %v1254, %v1179
      %v1256 = vadd.f32 %v1255, %v1181
      %v1257 = vadd.f32 %v1256, %v1183
      %v1258 = vadd.f32 %v1257, %v1185
      %v1259 = vadd.f32 %v1258, %v1187
      %v1260 = vrot.slane %v1259, 4
      %v1261 = vadd.f32 %v1259, %v1260
      %v1262 = vrot.slane %v1261, 2
      %v1263 = vadd.f32 %v1261, %v1262
      %v1264 = vrot.slane %v1263, 1
      %v1265 = vadd.f32 %v1263, %v1264
      %v1268 = vcombine.low %v1252, %v1265
      %v1270 = vunpack.c.l.s4 1966171168
      %v1271 = vunpack.c.0.s8 %v1270
      %v1272 = vlaneseq
      %v1273 = vshrl.u32 %v1272, 7
      %v1274 = vsub.s32 %v1271, %v1273
      %v1275 = vrot.slane %v1268, %v1274
      %v1277 = vunpack.c.l.s4 1966171168
      %v1278 = vunpack.c.0.s8 %v1277
      %v1279 = vlaneseq
      %v1280 = vshrl.u32 %v1279, 7
      %v1281 = vsub.s32 %v1278, %v1280
      %v1282 = vrot.slane %v1275, %v1281
      %v1284 = vadd.f32 %v1239, %v1282
      %1285 = vst.msk [vmem:[%s431] sm:$0x3] %vm1237, %v1284
      %s1286 = smul.u32 8, %s26
      %p1287 = scmp.lt.s32.totalorder %s25, 1
      %s1288 = scalar_select %p1287, %s25, 1
      %p1289 = scmp.lt.s32.totalorder %s1286, 7
      %s1290 = scalar_select %p1289, %s1286, 7
      %s1291 = smul.addr %s1290, 2
      %s1292 = smul.addr %s1288, 16
      %s1293 = sadd.s32 %s1291, %s1292
      %s1294 = smul.addr %s1293, 8
      %s1295 = scalar_lea.vmem %s7, %s1294
      %p1296 = scmp.lt.s32.totalorder %s25, 1
      %s1297 = scalar_select %p1296, %s25, 1
      %s1298 = smul.addr %s1297, 2
      %s1299 = scalar_lea.vmem %s8, %s1298
      %p1300 = scmp.lt.s32.totalorder %s25, 1
      %s1301 = scalar_select %p1300, %s25, 1
      %s1302 = smul.addr %s1301, 2
      %s1303 = scalar_lea.vmem %s9, %s1302
      // Predicated region
      $region53: #{gci_forward.6} parent=47 // pred_check
        %p1304 = pneg %p217
      $region54: #{gci_forward.6} parent=47 // pred_check_branch
        %1306 = sbr.rel (%p1304) target = $region56
      $region55: #{gci_forward.6} parent=47 // pred_region
        %s1307 = smul.u32 8, %s26
      $region56: #{gci_forward.6} parent=47 // pred_fallthru
        _
      // Predicated region
      $region57: #{gci_forward.6} parent=47 // pred_check
        %p1308 = pneg %p243
      $region58: #{gci_forward.6} parent=47 // pred_check_branch
        %1310 = sbr.rel (%p1308) target = $region60
      $region59: #{gci_forward.6} parent=47 // pred_region
        _
      $region60: #{gci_forward.6} parent=47 // pred_fallthru
        _
      // Predicated region
      $region61: #{gci_forward.6} parent=47 // pred_check
        %p1311 = pneg %p269
      $region62: #{gci_forward.6} parent=47 // pred_check_branch
        %1313 = sbr.rel (%p1311) target = $region64
      $region63: #{gci_forward.6} parent=47 // pred_region
        _
      $region64: #{gci_forward.6} parent=47 // pred_fallthru
        _
    $region48: #{gci_forward.6} parent=5 // pred_fallthru
      _
    %p1314 = scmp.le.s32.totalorder 2, %s16
    // Predicated region
    $region65: #{gci_forward.6} parent=5 // pred_check
      %p1315 = pneg %p1314
    $region66: #{gci_forward.6} parent=5 // pred_check_branch
      %1317 = sbr.rel (%p1315) target = $region68
    $region67: #{gci_forward.6} parent=5 // pred_region
      %s1318 = ssub.s32 %s16, 2
      // Predicated region
      $region69: #{gci_forward.6} parent=67 // pred_check
        %p1319 = pneg %p223
      $region70: #{gci_forward.6} parent=67 // pred_check_branch
        %1321 = sbr.rel (%p1319) target = $region72
      $region71: #{gci_forward.6} parent=67 // pred_region
        %s1322 = smul.u32 8, %s28
        %p1323 = scmp.lt.s32.totalorder %s27, 1
        %s1324 = scalar_select %p1323, %s27, 1
        %p1325 = scmp.lt.s32.totalorder %s1322, 7
        %s1326 = scalar_select %p1325, %s1322, 7
        %s1327 = smul.addr %s1326, 2
        %s1328 = smul.addr %s1324, 16
        %s1329 = sadd.s32 %s1327, %s1328
        %s1330 = smul.addr %s1329, 8
        %s1331 = scalar_lea.vmem %s7, %s1330
      $region72: #{gci_forward.6} parent=67 // pred_fallthru
        _
      // Predicated region
      $region73: #{gci_forward.6} parent=67 // pred_check
        %p1332 = pneg %p249
      $region74: #{gci_forward.6} parent=67 // pred_check_branch
        %1334 = sbr.rel (%p1332) target = $region76
      $region75: #{gci_forward.6} parent=67 // pred_region
        %p1335 = scmp.lt.s32.totalorder %s27, 1
        %s1336 = scalar_select %p1335, %s27, 1
        %s1337 = smul.addr %s1336, 2
        %s1338 = scalar_lea.vmem %s8, %s1337
      $region76: #{gci_forward.6} parent=67 // pred_fallthru
        _
      // Predicated region
      $region77: #{gci_forward.6} parent=67 // pred_check
        %p1339 = pneg %p275
      $region78: #{gci_forward.6} parent=67 // pred_check_branch
        %1341 = sbr.rel (%p1339) target = $region80
      $region79: #{gci_forward.6} parent=67 // pred_region
        %p1342 = scmp.lt.s32.totalorder %s27, 1
        %s1343 = scalar_select %p1342, %s27, 1
        %s1344 = smul.addr %s1343, 2
        %s1345 = scalar_lea.vmem %s9, %s1344
      $region80: #{gci_forward.6} parent=67 // pred_fallthru
        _
    $region68: #{gci_forward.6} parent=5 // pred_fallthru
      _
  $region6: #{gci_forward.6} parent=0 // loop_footer
    %s20 = sadd.s32 1, %s16
  $region7: #{gci_forward.6} parent=0 // loop_footer_branch
    %15 = sbr.rel target = $region3
  $region8: #{gci_forward.6} parent=0 // loop_exit
    _

</llo_original>
